<compile_context>
chip_gen: v5e
topology: v5e:2x2
jax: 0.10.0
libtpu: 0.0.40
codegen_flags: <defaults>
</compile_context>

<pallas_src>
import math

import jax
import jax.numpy as jnp
from jax.experimental import pallas as pl
from jax.experimental.pallas import tpu as pltpu

C_PAD = 128  # lane-dense channel padding used for every layer


def _round_up(x, m):
    return (x + m - 1) // m * m


# ---------------------------------------------------------------------------
# Fused whole-network kernel (generated from a static per-network "plan")
# ---------------------------------------------------------------------------

def _make_kernel(plan):
    conv1 = plan["conv1"]
    blocks = plan["blocks"]
    fc = plan["fc"]

    def kernel(x_ref, w_ref, v_ref, o_ref, buf_a, buf_b):
        def vrow(i):                                   # (1, C_PAD) f32 scale/shift/bias
            return v_ref[i:i + 1, :]

        def mdot(rows, tap_idx):                       # bf16 x bf16 MXU, f32 accumulate
            return jnp.dot(rows.astype(jnp.bfloat16), w_ref[tap_idx],
                           preferred_element_type=jnp.float32)

        def rows_at(buf, start, size, stride=1):
            if stride == 1:
                return buf[pl.ds(start, size), :]
            return buf[pl.ds(start, size, stride=stride), :]

        def write_padded(buf, val, length):            # rows [1, 1+length) = val, rest 0
            buf[...] = jnp.zeros_like(buf)
            buf[1:1 + length, :] = val.astype(buf.dtype)

        # Stage the (already zero-padded) input sample in VMEM scratch.
        buf_a[...] = x_ref[0]

        # conv1: k=4 "valid" conv over the full embedding width + folded BN + ReLU.
        l0 = conv1["L_out"]
        acc = jnp.zeros((l0, C_PAD), jnp.float32)
        for dt, ti in enumerate(conv1["taps"]):
            acc = acc + mdot(rows_at(buf_a, dt, l0), ti)
        y = jnp.maximum(acc * vrow(conv1["s"]) + vrow(conv1["t"]), 0.0)
        write_padded(buf_b, y, l0)

        cur, tmp = buf_b, buf_a
        for blk in blocks:
            s = blk["stride"]
            l1 = blk["L_out"]
            # c1 = relu(bn1(conv k=3, stride=s, pad=1))
            acc = jnp.zeros((l1, C_PAD), jnp.float32)
            for dt, ti in enumerate(blk["taps1"]):
                acc = acc + mdot(rows_at(cur, dt, l1, s), ti)
            c1 = jnp.maximum(acc * vrow(blk["s1"]) + vrow(blk["t1"]), 0.0)
            # shortcut: strided 1x1 conv (+bias, no BN) or identity; read before
            # `cur` is overwritten below.
            if blk["proj_tap"] is not None:
                shortcut = (mdot(rows_at(cur, 1, l1, s), blk["proj_tap"])
                            + vrow(blk["proj_b"]))
            else:
                shortcut = rows_at(cur, 1, l1)
            write_padded(tmp, c1, l1)
            # c2 = relu(bn2(conv(k=3, stride 1, pad=1)(c1) + shortcut))
            # (matches torch: BN2 is applied AFTER the residual add)
            acc = jnp.zeros((l1, C_PAD), jnp.float32)
            for dt, ti in enumerate(blk["taps2"]):
                acc = acc + mdot(rows_at(tmp, dt, l1), ti)
            c2 = jnp.maximum((acc + shortcut) * vrow(blk["s2"]) + vrow(blk["t2"]), 0.0)
            write_padded(cur, c2, l1)

        # fc: the channel-major flatten (torch y.view(bz,-1) on (B,C,12)) is
        # folded into 12 per-position weight taps.
        acc = jnp.zeros((1, C_PAD), jnp.float32)
        for l, ti in enumerate(fc["taps"]):
            acc = acc + mdot(rows_at(cur, 1 + l, 1), ti)
        logits = acc + vrow(fc["b"])
        o_ref[0] = jnp.broadcast_to(logits, (8, C_PAD)).astype(o_ref.dtype)

    return kernel


# ---------------------------------------------------------------------------
# Parameter init (torch layout), BN folding, padded packing
# ---------------------------------------------------------------------------

def _bn_fold(bn, eps=1e-5):
    scale = bn["gamma"] / jnp.sqrt(bn["var"] + eps)
    shift = bn["beta"] - bn["mean"] * scale
    return scale.astype(jnp.float32), shift.astype(jnp.float32)


def init_params(key, *, vocab, dw, dp, n_pos, class_num, layers, channel0=16):
    keys = iter(jax.random.split(key, 256))

    def nrm(shape, scale=0.1):
        return (scale * jax.random.normal(next(keys), shape)).astype(jnp.float32)

    def bn(c):
        return {
            "gamma": 1.0 + 0.1 * jax.random.normal(next(keys), (c,)),
            "beta": 0.1 * jax.random.normal(next(keys), (c,)),
            "mean": 0.1 * jax.random.normal(next(keys), (c,)),
            "var": 1.0 + 0.1 * jnp.abs(jax.random.normal(next(keys), (c,))),
        }

    d = dw + 2 * dp
    p = {}
    # pad_embfinetune=False -> pad rows are zeros (row 0 of word emb, last row of pos emb).
    p["x_embedding"] = jnp.concatenate(
        [jnp.zeros((1, dw), jnp.float32), nrm((vocab, dw), 1.0)], axis=0)
    p["pos_embedding"] = jnp.concatenate(
        [nrm((n_pos - 1, dp), 1.0), jnp.zeros((1, dp), jnp.float32)], axis=0)

    # conv1: Conv2d(1, 16, (4, d)) + BatchNorm2d + ReLU
    p["conv1_w"] = nrm((channel0, 1, 4, d), 1.0 / math.sqrt(4.0 * d))
    p["conv1_b"] = nrm((channel0,), 0.1)
    p["conv1_bn"] = bn(channel0)

    ch = channel0
    stages = []
    for nblocks in layers:
        blks = []
        for kb in range(nblocks):
            in_ch = ch
            out_ch = in_ch * 2 if kb == 0 else in_ch
            stride = 2 if kb == 0 else 1
            blk = {"stride": stride,
                   "w1": nrm((out_ch, in_ch, 3), 1.0 / math.sqrt(3.0 * in_ch)),
                   "b1": nrm((out_ch,), 0.1),
                   "bn1": bn(out_ch),
                   "w2": nrm((out_ch, out_ch, 3), 1.0 / math.sqrt(3.0 * out_ch)),
                   "b2": nrm((out_ch,), 0.1),
                   "bn2": bn(out_ch)}
            if kb == 0:  # 1x1 strided projection shortcut (bias, no BN) as in torch
                blk["wp"] = nrm((out_ch, in_ch, 1), 1.0 / math.sqrt(1.0 * in_ch))
                blk["bp"] = nrm((out_ch,), 0.1)
            blks.append(blk)
            ch = out_ch
        stages.append(blks)
    p["stages"] = stages

    # fc: Linear(channel * 12, class_num)  (12 is the module's hard-coded final length)
    p["fc_w"] = nrm((class_num, ch * 12), 1.0 / math.sqrt(ch * 12.0))
    p["fc_b"] = nrm((class_num,), 0.1)
    return p


def pack_params(params, *, max_len):
    taps, vecs = [], []

    def add_tap(m):  # (cin, cout) -> padded (C_PAD, C_PAD)
        cin, cout = m.shape
        assert cin <= C_PAD and cout <= C_PAD
        taps.append(jnp.zeros((C_PAD, C_PAD), jnp.float32)
                    .at[:cin, :cout].set(m.astype(jnp.float32)))
        return len(taps) - 1

    def add_vec(v):
        c = v.shape[0]
        assert c <= C_PAD
        vecs.append(jnp.zeros((C_PAD,), jnp.float32).at[:c].set(v.astype(jnp.float32)))
        return len(vecs) - 1

    plan = {}

    # conv1 (bias folded into the BN shift).
    w2d, b1 = params["conv1_w"], params["conv1_b"]
    s, t = _bn_fold(params["conv1_bn"])
    length = max_len - 3
    plan["conv1"] = {
        "L_out": length,
        "taps": [add_tap(w2d[:, 0, dt, :].T) for dt in range(4)],
        "s": add_vec(s),
        "t": add_vec(s * b1 + t),
    }

    blocks = []
    for stage in params["stages"]:
        for blk in stage:
            stride = blk["stride"]
            l_out = (length + 2 - 3) // stride + 1
            s1, t1 = _bn_fold(blk["bn1"])
            s2, t2 = _bn_fold(blk["bn2"])
            entry = {
                "stride": stride,
                "L_out": l_out,
                "taps1": [add_tap(blk["w1"][:, :, dt].T) for dt in range(3)],
                "s1": add_vec(s1),
                "t1": add_vec(s1 * blk["b1"] + t1),
                "taps2": [add_tap(blk["w2"][:, :, dt].T) for dt in range(3)],
                "s2": add_vec(s2),
                "t2": add_vec(s2 * blk["b2"] + t2),
                "proj_tap": None,
                "proj_b": None,
            }
            if "wp" in blk:
                entry["proj_tap"] = add_tap(blk["wp"][:, :, 0].T)
                entry["proj_b"] = add_vec(blk["bp"])
            blocks.append(entry)
            length = l_out
    plan["blocks"] = blocks

    nr, in_feat = params["fc_w"].shape
    assert length == 12 and in_feat == length * (in_feat // 12), (length, in_feat)
    ch = in_feat // 12
    wfc = params["fc_w"].reshape(nr, ch, 12)     # [r, c, l] = fc_w[r, c*12 + l]
    plan["fc"] = {
        "taps": [add_tap(wfc[:, :, l].T) for l in range(12)],
        "b": add_vec(params["fc_b"]),
    }

    w_all = jnp.stack(taps, axis=0).astype(jnp.bfloat16)           # (NT, 128, 128)
    v = jnp.stack(vecs, axis=0)                                    # (NV_raw, 128)
    nv = _round_up(v.shape[0], 8)
    v_all = jnp.zeros((nv, C_PAD), jnp.float32).at[:v.shape[0]].set(v)
    return w_all, v_all, plan


# ---------------------------------------------------------------------------
# Forward wrapper
# ---------------------------------------------------------------------------

def make_forward(params, *, max_len, class_num):
    w_all, v_all, plan = pack_params(params, max_len=max_len)
    rows = _round_up(max_len, 8)
    d = params["x_embedding"].shape[1] + 2 * params["pos_embedding"].shape[1]
    assert d <= C_PAD and rows >= max_len - 1
    kernel = _make_kernel(plan)
    nt, nv = w_all.shape[0], v_all.shape[0]
    x_emb, pos_emb = params["x_embedding"], params["pos_embedding"]

    def forward(x_ids, e1, e2, dist1, dist2):
        del e1, e2  # in the torch signature but unused by its forward
        b = x_ids.shape[0]
        xcat = jnp.concatenate(
            [x_emb[x_ids], pos_emb[dist1], pos_emb[dist2]], axis=-1)   # (B, n, d)
        x_in = jnp.zeros((b, rows, C_PAD), jnp.float32)
        x_in = x_in.at[:, :max_len, :d].set(xcat.astype(jnp.float32))

        out = pl.pallas_call(
            kernel,
            out_shape=jax.ShapeDtypeStruct((b, 8, C_PAD), jnp.float32),
            grid=(b,),
            in_specs=[
                pl.BlockSpec((1, rows, C_PAD), lambda i: (i, 0, 0)),   # one sample
                pl.BlockSpec((nt, C_PAD, C_PAD), lambda i: (0, 0, 0)),  # all weights
                pl.BlockSpec((nv, C_PAD), lambda i: (0, 0)),            # scale/shift/bias
            ],
            out_specs=pl.BlockSpec((1, 8, C_PAD), lambda i: (i, 0, 0)),
            scratch_shapes=[
                pltpu.VMEM((rows, C_PAD), jnp.float32),   # activation ping
                pltpu.VMEM((rows, C_PAD), jnp.float32),   # activation pong
            ],
            compiler_params=pltpu.CompilerParams(
                dimension_semantics=("parallel",)),
        )(x_in, w_all, v_all)
        return out[:, 0, :class_num]

    return forward


# ---------------------------------------------------------------------------
# Pure-JAX f32 reference (same eval-mode BN semantics) for a sanity check
# ---------------------------------------------------------------------------

def reference_forward(params, x_ids, dist1, dist2):
    x = jnp.concatenate([params["x_embedding"][x_ids],
                         params["pos_embedding"][dist1],
                         params["pos_embedding"][dist2]], axis=-1).astype(jnp.float32)

    def conv1d_cl(z, w, b, stride, pad):        # z (B,L,Cin), w torch (Cout,Cin,k)
        k = w.shape[-1]
        if pad:
            z = jnp.pad(z, ((0, 0), (pad, pad), (0, 0)))
        l_out = (z.shape[1] - k) // stride + 1
        acc = jnp.zeros((z.shape[0], l_out, w.shape[0]), jnp.float32)
        for dt in range(k):
            sl = z[:, dt: dt + stride * (l_out - 1) + 1: stride, :]
            acc = acc + jnp.einsum("blc,co->blo", sl, w[:, :, dt].T.astype(jnp.float32))
        return acc + b.astype(jnp.float32)

    def bn_relu(z, bn, relu=True):
        s, t = _bn_fold(bn)
        z = z * s + t
        return jnp.maximum(z, 0.0) if relu else z

    wc1 = jnp.transpose(params["conv1_w"][:, 0, :, :], (0, 2, 1))   # (c0, d, 4)
    y = bn_relu(conv1d_cl(x, wc1, params["conv1_b"], 1, 0), params["conv1_bn"])

    for stage in params["stages"]:
        for blk in stage:
            c1 = bn_relu(conv1d_cl(y, blk["w1"], blk["b1"], blk["stride"], 1), blk["bn1"])
            c2 = conv1d_cl(c1, blk["w2"], blk["b2"], 1, 1)
            short = conv1d_cl(y, blk["wp"], blk["bp"], blk["stride"], 0) if "wp" in blk else y
            y = bn_relu(c2 + short, blk["bn2"])

    b_, l_, c_ = y.shape
    flat = jnp.transpose(y, (0, 2, 1)).reshape(b_, c_ * l_)
    return flat @ params["fc_w"].T + params["fc_b"]


# ---------------------------------------------------------------------------

if __name__ == "__main__":
    key = jax.random.PRNGKey(0)
    k_param, k_x, k_d1, k_d2 = jax.random.split(key, 4)

    # max_len=92 makes the final sequence length 12, matching the module's
    # hard-coded Linear(channel * 12, class_num).
    vocab, dw, dp, n_pos = 30, 8, 4, 10
    max_len, class_num = 92, 5
    layers = [1, 1, 1]
    batch = 2

    params = init_params(k_param, vocab=vocab, dw=dw, dp=dp, n_pos=n_pos,
                         class_num=class_num, layers=layers)
    fwd = jax.jit(make_forward(params, max_len=max_len, class_num=class_num))

    x_ids = jax.random.randint(k_x, (batch, max_len), 0, vocab + 1)
    dist1 = jax.random.randint(k_d1, (batch, max_len), 0, n_pos)
    dist2 = jax.random.randint(k_d2, (batch, max_len), 0, n_pos)
    e1 = jnp.zeros((batch,), jnp.int32)
    e2 = jnp.zeros((batch,), jnp.int32)

    logits = fwd(x_ids, e1, e2, dist1, dist2)
    jax.block_until_ready(logits)

    assert logits.shape == (batch, class_num), logits.shape
    assert bool(jnp.all(jnp.isfinite(logits)))

    # Sanity check against the pure-JAX f32 reference (kernel feeds the MXU
    # bf16 operands with f32 accumulation, so allow a loose tolerance).
    ref = reference_forward(params, x_ids, dist1, dist2)
    err = float(jnp.max(jnp.abs(logits - ref)))
    scale = float(jnp.max(jnp.abs(ref)))
    assert err <= 0.1 * scale + 0.05, (err, scale)

    print("KERNEL_OK")
</pallas_src>

<mosaic_0001>
module attributes {stable_mosaic.version = 11 : i64} {
  func.func @kernel(%arg0: i32, %arg1: memref<1x96x128xf32, #tpu.memory_space<vmem>>, %arg2: memref<37x128x128xbf16, #tpu.memory_space<vmem>>, %arg3: memref<24x128xf32, #tpu.memory_space<vmem>>, %arg4: memref<1x8x128xf32, #tpu.memory_space<vmem>>, %arg5: memref<96x128xf32, #tpu.memory_space<vmem>>, %arg6: memref<96x128xf32, #tpu.memory_space<vmem>>) attributes {dimension_semantics = [#tpu.dimension_semantics<parallel>], iteration_bounds = array<i64: 2>, scalar_prefetch = 0 : i64, scratch_operands = 2 : i64, tpu.core_type = #tpu.core_type<tc>, window_params = [{transform_indices = @transform_0, window_bounds = array<i64: 1, 96, 128>}, {pipeline_mode = #tpu.pipeline_mode<synchronous>, transform_indices = @transform_1, window_bounds = array<i64: 37, 128, 128>}, {pipeline_mode = #tpu.pipeline_mode<synchronous>, transform_indices = @transform_2, window_bounds = array<i64: 24, 128>}, {transform_indices = @transform_3, window_bounds = array<i64: 1, 8, 128>}]} {
    %c0 = arith.constant 0 : index
    %c0_0 = arith.constant 0 : index
    %c0_1 = arith.constant 0 : index
    %0 = vector.load %arg1[%c0, %c0_0, %c0_1] : memref<1x96x128xf32, #tpu.memory_space<vmem>>, vector<1x96x128xf32>
    %1 = vector.shape_cast %0 : vector<1x96x128xf32> to vector<96x128xf32>
    %c0_2 = arith.constant 0 : index
    %c0_3 = arith.constant 0 : index
    %2 = vector.load %arg5[%c0_2, %c0_3] : memref<96x128xf32, #tpu.memory_space<vmem>>, vector<96x128xf32>
    tpu.vector_store %arg5[%c0_2, %c0_3], %1 {strides = array<i32>} : memref<96x128xf32, #tpu.memory_space<vmem>>, vector<96x128xf32>,
    %cst = arith.constant 0.000000e+00 : f32
    %3 = vector.broadcast %cst : f32 to vector<89x128xf32>
    %c0_4 = arith.constant 0 : index
    %c0_5 = arith.constant 0 : index
    %4 = vector.load %arg5[%c0_4, %c0_5] : memref<96x128xf32, #tpu.memory_space<vmem>>, vector<89x128xf32>
    %5 = arith.truncf %4 : vector<89x128xf32> to vector<89x128xbf16>
    %c0_6 = arith.constant 0 : index
    %c0_7 = arith.constant 0 : index
    %c0_8 = arith.constant 0 : index
    %6 = vector.load %arg2[%c0_6, %c0_7, %c0_8] : memref<37x128x128xbf16, #tpu.memory_space<vmem>>, vector<1x128x128xbf16>
    %7 = vector.shape_cast %6 : vector<1x128x128xbf16> to vector<128x128xbf16>
    %cst_9 = arith.constant dense<0.000000e+00> : vector<89x128xf32>
    %8 = tpu.matmul %5, %7, %cst_9 {dimension_numbers = #tpu.dot_dimension_numbers<[1], [0], [0], [1], [0, 0, 1, 1], [], []>} : vector<89x128xbf16>, vector<128x128xbf16>, vector<89x128xf32> -> vector<89x128xf32>
    %9 = arith.addf %3, %8 : vector<89x128xf32>
    %c1 = arith.constant 1 : index
    %c0_10 = arith.constant 0 : index
    %10 = vector.load %arg5[%c1, %c0_10] : memref<96x128xf32, #tpu.memory_space<vmem>>, vector<89x128xf32>
    %11 = arith.truncf %10 : vector<89x128xf32> to vector<89x128xbf16>
    %c1_11 = arith.constant 1 : index
    %c0_12 = arith.constant 0 : index
    %c0_13 = arith.constant 0 : index
    %12 = vector.load %arg2[%c1_11, %c0_12, %c0_13] : memref<37x128x128xbf16, #tpu.memory_space<vmem>>, vector<1x128x128xbf16>
    %13 = vector.shape_cast %12 : vector<1x128x128xbf16> to vector<128x128xbf16>
    %cst_14 = arith.constant dense<0.000000e+00> : vector<89x128xf32>
    %14 = tpu.matmul %11, %13, %cst_14 {dimension_numbers = #tpu.dot_dimension_numbers<[1], [0], [0], [1], [0, 0, 1, 1], [], []>} : vector<89x128xbf16>, vector<128x128xbf16>, vector<89x128xf32> -> vector<89x128xf32>
    %15 = arith.addf %9, %14 : vector<89x128xf32>
    %c2 = arith.constant 2 : index
    %c0_15 = arith.constant 0 : index
    %16 = vector.load %arg5[%c2, %c0_15] : memref<96x128xf32, #tpu.memory_space<vmem>>, vector<89x128xf32>
    %17 = arith.truncf %16 : vector<89x128xf32> to vector<89x128xbf16>
    %c2_16 = arith.constant 2 : index
    %c0_17 = arith.constant 0 : index
    %c0_18 = arith.constant 0 : index
    %18 = vector.load %arg2[%c2_16, %c0_17, %c0_18] : memref<37x128x128xbf16, #tpu.memory_space<vmem>>, vector<1x128x128xbf16>
    %19 = vector.shape_cast %18 : vector<1x128x128xbf16> to vector<128x128xbf16>
    %cst_19 = arith.constant dense<0.000000e+00> : vector<89x128xf32>
    %20 = tpu.matmul %17, %19, %cst_19 {dimension_numbers = #tpu.dot_dimension_numbers<[1], [0], [0], [1], [0, 0, 1, 1], [], []>} : vector<89x128xbf16>, vector<128x128xbf16>, vector<89x128xf32> -> vector<89x128xf32>
    %21 = arith.addf %15, %20 : vector<89x128xf32>
    %c3 = arith.constant 3 : index
    %c0_20 = arith.constant 0 : index
    %22 = vector.load %arg5[%c3, %c0_20] : memref<96x128xf32, #tpu.memory_space<vmem>>, vector<89x128xf32>
    %23 = arith.truncf %22 : vector<89x128xf32> to vector<89x128xbf16>
    %c3_21 = arith.constant 3 : index
    %c0_22 = arith.constant 0 : index
    %c0_23 = arith.constant 0 : index
    %24 = vector.load %arg2[%c3_21, %c0_22, %c0_23] : memref<37x128x128xbf16, #tpu.memory_space<vmem>>, vector<1x128x128xbf16>
    %25 = vector.shape_cast %24 : vector<1x128x128xbf16> to vector<128x128xbf16>
    %cst_24 = arith.constant dense<0.000000e+00> : vector<89x128xf32>
    %26 = tpu.matmul %23, %25, %cst_24 {dimension_numbers = #tpu.dot_dimension_numbers<[1], [0], [0], [1], [0, 0, 1, 1], [], []>} : vector<89x128xbf16>, vector<128x128xbf16>, vector<89x128xf32> -> vector<89x128xf32>
    %27 = arith.addf %21, %26 : vector<89x128xf32>
    %c0_25 = arith.constant 0 : index
    %c0_26 = arith.constant 0 : index
    %28 = vector.load %arg3[%c0_25, %c0_26] : memref<24x128xf32, #tpu.memory_space<vmem>>, vector<1x128xf32>
    %29 = vector.broadcast %28 : vector<1x128xf32> to vector<89x128xf32>
    %30 = arith.mulf %27, %29 : vector<89x128xf32>
    %c1_27 = arith.constant 1 : index
    %c0_28 = arith.constant 0 : index
    %31 = vector.load %arg3[%c1_27, %c0_28] : memref<24x128xf32, #tpu.memory_space<vmem>>, vector<1x128xf32>
    %32 = vector.broadcast %31 : vector<1x128xf32> to vector<89x128xf32>
    %33 = arith.addf %30, %32 : vector<89x128xf32>
    %cst_29 = arith.constant 0.000000e+00 : f32
    %34 = vector.broadcast %cst_29 : f32 to vector<89x128xf32>
    %35 = arith.maximumf %33, %34 : vector<89x128xf32>
    %cst_30 = arith.constant 0.000000e+00 : f32
    %36 = vector.broadcast %cst_30 : f32 to vector<96x128xf32>
    %c0_31 = arith.constant 0 : index
    %c0_32 = arith.constant 0 : index
    %37 = vector.load %arg6[%c0_31, %c0_32] : memref<96x128xf32, #tpu.memory_space<vmem>>, vector<96x128xf32>
    tpu.vector_store %arg6[%c0_31, %c0_32], %36 {strides = array<i32>} : memref<96x128xf32, #tpu.memory_space<vmem>>, vector<96x128xf32>,
    %c1_33 = arith.constant 1 : index
    %c0_34 = arith.constant 0 : index
    %38 = vector.load %arg6[%c1_33, %c0_34] : memref<96x128xf32, #tpu.memory_space<vmem>>, vector<89x128xf32>
    tpu.vector_store %arg6[%c1_33, %c0_34], %35 {strides = array<i32>} : memref<96x128xf32, #tpu.memory_space<vmem>>, vector<89x128xf32>,
    %cst_35 = arith.constant 0.000000e+00 : f32
    %39 = vector.broadcast %cst_35 : f32 to vector<45x128xf32>
    %c0_36 = arith.constant 0 : index
    %c0_37 = arith.constant 0 : index
    %40 = tpu.strided_load %arg6[%c0_36, %c0_37] {strides = array<i32: 2, 1>} : memref<96x128xf32, #tpu.memory_space<vmem>>, vector<45x128xf32>
    %41 = arith.truncf %40 : vector<45x128xf32> to vector<45x128xbf16>
    %c4 = arith.constant 4 : index
    %c0_38 = arith.constant 0 : index
    %c0_39 = arith.constant 0 : index
    %42 = vector.load %arg2[%c4, %c0_38, %c0_39] : memref<37x128x128xbf16, #tpu.memory_space<vmem>>, vector<1x128x128xbf16>
    %43 = vector.shape_cast %42 : vector<1x128x128xbf16> to vector<128x128xbf16>
    %cst_40 = arith.constant dense<0.000000e+00> : vector<45x128xf32>
    %44 = tpu.matmul %41, %43, %cst_40 {dimension_numbers = #tpu.dot_dimension_numbers<[1], [0], [0], [1], [0, 0, 1, 1], [], []>} : vector<45x128xbf16>, vector<128x128xbf16>, vector<45x128xf32> -> vector<45x128xf32>
    %45 = arith.addf %39, %44 : vector<45x128xf32>
    %c1_41 = arith.constant 1 : index
    %c0_42 = arith.constant 0 : index
    %46 = tpu.strided_load %arg6[%c1_41, %c0_42] {strides = array<i32: 2, 1>} : memref<96x128xf32, #tpu.memory_space<vmem>>, vector<45x128xf32>
    %47 = arith.truncf %46 : vector<45x128xf32> to vector<45x128xbf16>
    %c5 = arith.constant 5 : index
    %c0_43 = arith.constant 0 : index
    %c0_44 = arith.constant 0 : index
    %48 = vector.load %arg2[%c5, %c0_43, %c0_44] : memref<37x128x128xbf16, #tpu.memory_space<vmem>>, vector<1x128x128xbf16>
    %49 = vector.shape_cast %48 : vector<1x128x128xbf16> to vector<128x128xbf16>
    %cst_45 = arith.constant dense<0.000000e+00> : vector<45x128xf32>
    %50 = tpu.matmul %47, %49, %cst_45 {dimension_numbers = #tpu.dot_dimension_numbers<[1], [0], [0], [1], [0, 0, 1, 1], [], []>} : vector<45x128xbf16>, vector<128x128xbf16>, vector<45x128xf32> -> vector<45x128xf32>
    %51 = arith.addf %45, %50 : vector<45x128xf32>
    %c2_46 = arith.constant 2 : index
    %c0_47 = arith.constant 0 : index
    %52 = tpu.strided_load %arg6[%c2_46, %c0_47] {strides = array<i32: 2, 1>} : memref<96x128xf32, #tpu.memory_space<vmem>>, vector<45x128xf32>
    %53 = arith.truncf %52 : vector<45x128xf32> to vector<45x128xbf16>
    %c6 = arith.constant 6 : index
    %c0_48 = arith.constant 0 : index
    %c0_49 = arith.constant 0 : index
    %54 = vector.load %arg2[%c6, %c0_48, %c0_49] : memref<37x128x128xbf16, #tpu.memory_space<vmem>>, vector<1x128x128xbf16>
    %55 = vector.shape_cast %54 : vector<1x128x128xbf16> to vector<128x128xbf16>
    %cst_50 = arith.constant dense<0.000000e+00> : vector<45x128xf32>
    %56 = tpu.matmul %53, %55, %cst_50 {dimension_numbers = #tpu.dot_dimension_numbers<[1], [0], [0], [1], [0, 0, 1, 1], [], []>} : vector<45x128xbf16>, vector<128x128xbf16>, vector<45x128xf32> -> vector<45x128xf32>
    %57 = arith.addf %51, %56 : vector<45x128xf32>
    %c2_51 = arith.constant 2 : index
    %c0_52 = arith.constant 0 : index
    %58 = vector.load %arg3[%c2_51, %c0_52] : memref<24x128xf32, #tpu.memory_space<vmem>>, vector<1x128xf32>
    %59 = vector.broadcast %58 : vector<1x128xf32> to vector<45x128xf32>
    %60 = arith.mulf %57, %59 : vector<45x128xf32>
    %c3_53 = arith.constant 3 : index
    %c0_54 = arith.constant 0 : index
    %61 = vector.load %arg3[%c3_53, %c0_54] : memref<24x128xf32, #tpu.memory_space<vmem>>, vector<1x128xf32>
    %62 = vector.broadcast %61 : vector<1x128xf32> to vector<45x128xf32>
    %63 = arith.addf %60, %62 : vector<45x128xf32>
    %cst_55 = arith.constant 0.000000e+00 : f32
    %64 = vector.broadcast %cst_55 : f32 to vector<45x128xf32>
    %65 = arith.maximumf %63, %64 : vector<45x128xf32>
    %c1_56 = arith.constant 1 : index
    %c0_57 = arith.constant 0 : index
    %66 = tpu.strided_load %arg6[%c1_56, %c0_57] {strides = array<i32: 2, 1>} : memref<96x128xf32, #tpu.memory_space<vmem>>, vector<45x128xf32>
    %67 = arith.truncf %66 : vector<45x128xf32> to vector<45x128xbf16>
    %c10 = arith.constant 10 : index
    %c0_58 = arith.constant 0 : index
    %c0_59 = arith.constant 0 : index
    %68 = vector.load %arg2[%c10, %c0_58, %c0_59] : memref<37x128x128xbf16, #tpu.memory_space<vmem>>, vector<1x128x128xbf16>
    %69 = vector.shape_cast %68 : vector<1x128x128xbf16> to vector<128x128xbf16>
    %cst_60 = arith.constant dense<0.000000e+00> : vector<45x128xf32>
    %70 = tpu.matmul %67, %69, %cst_60 {dimension_numbers = #tpu.dot_dimension_numbers<[1], [0], [0], [1], [0, 0, 1, 1], [], []>} : vector<45x128xbf16>, vector<128x128xbf16>, vector<45x128xf32> -> vector<45x128xf32>
    %c6_61 = arith.constant 6 : index
    %c0_62 = arith.constant 0 : index
    %71 = vector.load %arg3[%c6_61, %c0_62] : memref<24x128xf32, #tpu.memory_space<vmem>>, vector<1x128xf32>
    %72 = vector.broadcast %71 : vector<1x128xf32> to vector<45x128xf32>
    %73 = arith.addf %70, %72 : vector<45x128xf32>
    %cst_63 = arith.constant 0.000000e+00 : f32
    %74 = vector.broadcast %cst_63 : f32 to vector<96x128xf32>
    %c0_64 = arith.constant 0 : index
    %c0_65 = arith.constant 0 : index
    %75 = vector.load %arg5[%c0_64, %c0_65] : memref<96x128xf32, #tpu.memory_space<vmem>>, vector<96x128xf32>
    tpu.vector_store %arg5[%c0_64, %c0_65], %74 {strides = array<i32>} : memref<96x128xf32, #tpu.memory_space<vmem>>, vector<96x128xf32>,
    %c1_66 = arith.constant 1 : index
    %c0_67 = arith.constant 0 : index
    %76 = vector.load %arg5[%c1_66, %c0_67] : memref<96x128xf32, #tpu.memory_space<vmem>>, vector<45x128xf32>
    tpu.vector_store %arg5[%c1_66, %c0_67], %65 {strides = array<i32>} : memref<96x128xf32, #tpu.memory_space<vmem>>, vector<45x128xf32>,
    %cst_68 = arith.constant 0.000000e+00 : f32
    %77 = vector.broadcast %cst_68 : f32 to vector<45x128xf32>
    %c0_69 = arith.constant 0 : index
    %c0_70 = arith.constant 0 : index
    %78 = vector.load %arg5[%c0_69, %c0_70] : memref<96x128xf32, #tpu.memory_space<vmem>>, vector<45x128xf32>
    %79 = arith.truncf %78 : vector<45x128xf32> to vector<45x128xbf16>
    %c7 = arith.constant 7 : index
    %c0_71 = arith.constant 0 : index
    %c0_72 = arith.constant 0 : index
    %80 = vector.load %arg2[%c7, %c0_71, %c0_72] : memref<37x128x128xbf16, #tpu.memory_space<vmem>>, vector<1x128x128xbf16>
    %81 = vector.shape_cast %80 : vector<1x128x128xbf16> to vector<128x128xbf16>
    %cst_73 = arith.constant dense<0.000000e+00> : vector<45x128xf32>
    %82 = tpu.matmul %79, %81, %cst_73 {dimension_numbers = #tpu.dot_dimension_numbers<[1], [0], [0], [1], [0, 0, 1, 1], [], []>} : vector<45x128xbf16>, vector<128x128xbf16>, vector<45x128xf32> -> vector<45x128xf32>
    %83 = arith.addf %77, %82 : vector<45x128xf32>
    %c1_74 = arith.constant 1 : index
    %c0_75 = arith.constant 0 : index
    %84 = vector.load %arg5[%c1_74, %c0_75] : memref<96x128xf32, #tpu.memory_space<vmem>>, vector<45x128xf32>
    %85 = arith.truncf %84 : vector<45x128xf32> to vector<45x128xbf16>
    %c8 = arith.constant 8 : index
    %c0_76 = arith.constant 0 : index
    %c0_77 = arith.constant 0 : index
    %86 = vector.load %arg2[%c8, %c0_76, %c0_77] : memref<37x128x128xbf16, #tpu.memory_space<vmem>>, vector<1x128x128xbf16>
    %87 = vector.shape_cast %86 : vector<1x128x128xbf16> to vector<128x128xbf16>
    %cst_78 = arith.constant dense<0.000000e+00> : vector<45x128xf32>
    %88 = tpu.matmul %85, %87, %cst_78 {dimension_numbers = #tpu.dot_dimension_numbers<[1], [0], [0], [1], [0, 0, 1, 1], [], []>} : vector<45x128xbf16>, vector<128x128xbf16>, vector<45x128xf32> -> vector<45x128xf32>
    %89 = arith.addf %83, %88 : vector<45x128xf32>
    %c2_79 = arith.constant 2 : index
    %c0_80 = arith.constant 0 : index
    %90 = vector.load %arg5[%c2_79, %c0_80] : memref<96x128xf32, #tpu.memory_space<vmem>>, vector<45x128xf32>
    %91 = arith.truncf %90 : vector<45x128xf32> to vector<45x128xbf16>
    %c9 = arith.constant 9 : index
    %c0_81 = arith.constant 0 : index
    %c0_82 = arith.constant 0 : index
    %92 = vector.load %arg2[%c9, %c0_81, %c0_82] : memref<37x128x128xbf16, #tpu.memory_space<vmem>>, vector<1x128x128xbf16>
    %93 = vector.shape_cast %92 : vector<1x128x128xbf16> to vector<128x128xbf16>
    %cst_83 = arith.constant dense<0.000000e+00> : vector<45x128xf32>
    %94 = tpu.matmul %91, %93, %cst_83 {dimension_numbers = #tpu.dot_dimension_numbers<[1], [0], [0], [1], [0, 0, 1, 1], [], []>} : vector<45x128xbf16>, vector<128x128xbf16>, vector<45x128xf32> -> vector<45x128xf32>
    %95 = arith.addf %89, %94 : vector<45x128xf32>
    %96 = arith.addf %95, %73 : vector<45x128xf32>
    %c4_84 = arith.constant 4 : index
    %c0_85 = arith.constant 0 : index
    %97 = vector.load %arg3[%c4_84, %c0_85] : memref<24x128xf32, #tpu.memory_space<vmem>>, vector<1x128xf32>
    %98 = vector.broadcast %97 : vector<1x128xf32> to vector<45x128xf32>
    %99 = arith.mulf %96, %98 : vector<45x128xf32>
    %c5_86 = arith.constant 5 : index
    %c0_87 = arith.constant 0 : index
    %100 = vector.load %arg3[%c5_86, %c0_87] : memref<24x128xf32, #tpu.memory_space<vmem>>, vector<1x128xf32>
    %101 = vector.broadcast %100 : vector<1x128xf32> to vector<45x128xf32>
    %102 = arith.addf %99, %101 : vector<45x128xf32>
    %cst_88 = arith.constant 0.000000e+00 : f32
    %103 = vector.broadcast %cst_88 : f32 to vector<45x128xf32>
    %104 = arith.maximumf %102, %103 : vector<45x128xf32>
    %cst_89 = arith.constant 0.000000e+00 : f32
    %105 = vector.broadcast %cst_89 : f32 to vector<96x128xf32>
    %c0_90 = arith.constant 0 : index
    %c0_91 = arith.constant 0 : index
    %106 = vector.load %arg6[%c0_90, %c0_91] : memref<96x128xf32, #tpu.memory_space<vmem>>, vector<96x128xf32>
    tpu.vector_store %arg6[%c0_90, %c0_91], %105 {strides = array<i32>} : memref<96x128xf32, #tpu.memory_space<vmem>>, vector<96x128xf32>,
    %c1_92 = arith.constant 1 : index
    %c0_93 = arith.constant 0 : index
    %107 = vector.load %arg6[%c1_92, %c0_93] : memref<96x128xf32, #tpu.memory_space<vmem>>, vector<45x128xf32>
    tpu.vector_store %arg6[%c1_92, %c0_93], %104 {strides = array<i32>} : memref<96x128xf32, #tpu.memory_space<vmem>>, vector<45x128xf32>,
    %cst_94 = arith.constant 0.000000e+00 : f32
    %108 = vector.broadcast %cst_94 : f32 to vector<23x128xf32>
    %c0_95 = arith.constant 0 : index
    %c0_96 = arith.constant 0 : index
    %109 = tpu.strided_load %arg6[%c0_95, %c0_96] {strides = array<i32: 2, 1>} : memref<96x128xf32, #tpu.memory_space<vmem>>, vector<23x128xf32>
    %110 = arith.truncf %109 : vector<23x128xf32> to vector<23x128xbf16>
    %c11 = arith.constant 11 : index
    %c0_97 = arith.constant 0 : index
    %c0_98 = arith.constant 0 : index
    %111 = vector.load %arg2[%c11, %c0_97, %c0_98] : memref<37x128x128xbf16, #tpu.memory_space<vmem>>, vector<1x128x128xbf16>
    %112 = vector.shape_cast %111 : vector<1x128x128xbf16> to vector<128x128xbf16>
    %cst_99 = arith.constant dense<0.000000e+00> : vector<23x128xf32>
    %113 = tpu.matmul %110, %112, %cst_99 {dimension_numbers = #tpu.dot_dimension_numbers<[1], [0], [0], [1], [0, 0, 1, 1], [], []>} : vector<23x128xbf16>, vector<128x128xbf16>, vector<23x128xf32> -> vector<23x128xf32>
    %114 = arith.addf %108, %113 : vector<23x128xf32>
    %c1_100 = arith.constant 1 : index
    %c0_101 = arith.constant 0 : index
    %115 = tpu.strided_load %arg6[%c1_100, %c0_101] {strides = array<i32: 2, 1>} : memref<96x128xf32, #tpu.memory_space<vmem>>, vector<23x128xf32>
    %116 = arith.truncf %115 : vector<23x128xf32> to vector<23x128xbf16>
    %c12 = arith.constant 12 : index
    %c0_102 = arith.constant 0 : index
    %c0_103 = arith.constant 0 : index
    %117 = vector.load %arg2[%c12, %c0_102, %c0_103] : memref<37x128x128xbf16, #tpu.memory_space<vmem>>, vector<1x128x128xbf16>
    %118 = vector.shape_cast %117 : vector<1x128x128xbf16> to vector<128x128xbf16>
    %cst_104 = arith.constant dense<0.000000e+00> : vector<23x128xf32>
    %119 = tpu.matmul %116, %118, %cst_104 {dimension_numbers = #tpu.dot_dimension_numbers<[1], [0], [0], [1], [0, 0, 1, 1], [], []>} : vector<23x128xbf16>, vector<128x128xbf16>, vector<23x128xf32> -> vector<23x128xf32>
    %120 = arith.addf %114, %119 : vector<23x128xf32>
    %c2_105 = arith.constant 2 : index
    %c0_106 = arith.constant 0 : index
    %121 = tpu.strided_load %arg6[%c2_105, %c0_106] {strides = array<i32: 2, 1>} : memref<96x128xf32, #tpu.memory_space<vmem>>, vector<23x128xf32>
    %122 = arith.truncf %121 : vector<23x128xf32> to vector<23x128xbf16>
    %c13 = arith.constant 13 : index
    %c0_107 = arith.constant 0 : index
    %c0_108 = arith.constant 0 : index
    %123 = vector.load %arg2[%c13, %c0_107, %c0_108] : memref<37x128x128xbf16, #tpu.memory_space<vmem>>, vector<1x128x128xbf16>
    %124 = vector.shape_cast %123 : vector<1x128x128xbf16> to vector<128x128xbf16>
    %cst_109 = arith.constant dense<0.000000e+00> : vector<23x128xf32>
    %125 = tpu.matmul %122, %124, %cst_109 {dimension_numbers = #tpu.dot_dimension_numbers<[1], [0], [0], [1], [0, 0, 1, 1], [], []>} : vector<23x128xbf16>, vector<128x128xbf16>, vector<23x128xf32> -> vector<23x128xf32>
    %126 = arith.addf %120, %125 : vector<23x128xf32>
    %c7_110 = arith.constant 7 : index
    %c0_111 = arith.constant 0 : index
    %127 = vector.load %arg3[%c7_110, %c0_111] : memref<24x128xf32, #tpu.memory_space<vmem>>, vector<1x128xf32>
    %128 = vector.broadcast %127 : vector<1x128xf32> to vector<23x128xf32>
    %129 = arith.mulf %126, %128 : vector<23x128xf32>
    %c8_112 = arith.constant 8 : index
    %c0_113 = arith.constant 0 : index
    %130 = vector.load %arg3[%c8_112, %c0_113] : memref<24x128xf32, #tpu.memory_space<vmem>>, vector<1x128xf32>
    %131 = vector.broadcast %130 : vector<1x128xf32> to vector<23x128xf32>
    %132 = arith.addf %129, %131 : vector<23x128xf32>
    %cst_114 = arith.constant 0.000000e+00 : f32
    %133 = vector.broadcast %cst_114 : f32 to vector<23x128xf32>
    %134 = arith.maximumf %132, %133 : vector<23x128xf32>
    %c1_115 = arith.constant 1 : index
    %c0_116 = arith.constant 0 : index
    %135 = tpu.strided_load %arg6[%c1_115, %c0_116] {strides = array<i32: 2, 1>} : memref<96x128xf32, #tpu.memory_space<vmem>>, vector<23x128xf32>
    %136 = arith.truncf %135 : vector<23x128xf32> to vector<23x128xbf16>
    %c17 = arith.constant 17 : index
    %c0_117 = arith.constant 0 : index
    %c0_118 = arith.constant 0 : index
    %137 = vector.load %arg2[%c17, %c0_117, %c0_118] : memref<37x128x128xbf16, #tpu.memory_space<vmem>>, vector<1x128x128xbf16>
    %138 = vector.shape_cast %137 : vector<1x128x128xbf16> to vector<128x128xbf16>
    %cst_119 = arith.constant dense<0.000000e+00> : vector<23x128xf32>
    %139 = tpu.matmul %136, %138, %cst_119 {dimension_numbers = #tpu.dot_dimension_numbers<[1], [0], [0], [1], [0, 0, 1, 1], [], []>} : vector<23x128xbf16>, vector<128x128xbf16>, vector<23x128xf32> -> vector<23x128xf32>
    %c11_120 = arith.constant 11 : index
    %c0_121 = arith.constant 0 : index
    %140 = vector.load %arg3[%c11_120, %c0_121] : memref<24x128xf32, #tpu.memory_space<vmem>>, vector<1x128xf32>
    %141 = vector.broadcast %140 : vector<1x128xf32> to vector<23x128xf32>
    %142 = arith.addf %139, %141 : vector<23x128xf32>
    %cst_122 = arith.constant 0.000000e+00 : f32
    %143 = vector.broadcast %cst_122 : f32 to vector<96x128xf32>
    %c0_123 = arith.constant 0 : index
    %c0_124 = arith.constant 0 : index
    %144 = vector.load %arg5[%c0_123, %c0_124] : memref<96x128xf32, #tpu.memory_space<vmem>>, vector<96x128xf32>
    tpu.vector_store %arg5[%c0_123, %c0_124], %143 {strides = array<i32>} : memref<96x128xf32, #tpu.memory_space<vmem>>, vector<96x128xf32>,
    %c1_125 = arith.constant 1 : index
    %c0_126 = arith.constant 0 : index
    %145 = vector.load %arg5[%c1_125, %c0_126] : memref<96x128xf32, #tpu.memory_space<vmem>>, vector<23x128xf32>
    tpu.vector_store %arg5[%c1_125, %c0_126], %134 {strides = array<i32>} : memref<96x128xf32, #tpu.memory_space<vmem>>, vector<23x128xf32>,
    %cst_127 = arith.constant 0.000000e+00 : f32
    %146 = vector.broadcast %cst_127 : f32 to vector<23x128xf32>
    %c0_128 = arith.constant 0 : index
    %c0_129 = arith.constant 0 : index
    %147 = vector.load %arg5[%c0_128, %c0_129] : memref<96x128xf32, #tpu.memory_space<vmem>>, vector<23x128xf32>
    %148 = arith.truncf %147 : vector<23x128xf32> to vector<23x128xbf16>
    %c14 = arith.constant 14 : index
    %c0_130 = arith.constant 0 : index
    %c0_131 = arith.constant 0 : index
    %149 = vector.load %arg2[%c14, %c0_130, %c0_131] : memref<37x128x128xbf16, #tpu.memory_space<vmem>>, vector<1x128x128xbf16>
    %150 = vector.shape_cast %149 : vector<1x128x128xbf16> to vector<128x128xbf16>
    %cst_132 = arith.constant dense<0.000000e+00> : vector<23x128xf32>
    %151 = tpu.matmul %148, %150, %cst_132 {dimension_numbers = #tpu.dot_dimension_numbers<[1], [0], [0], [1], [0, 0, 1, 1], [], []>} : vector<23x128xbf16>, vector<128x128xbf16>, vector<23x128xf32> -> vector<23x128xf32>
    %152 = arith.addf %146, %151 : vector<23x128xf32>
    %c1_133 = arith.constant 1 : index
    %c0_134 = arith.constant 0 : index
    %153 = vector.load %arg5[%c1_133, %c0_134] : memref<96x128xf32, #tpu.memory_space<vmem>>, vector<23x128xf32>
    %154 = arith.truncf %153 : vector<23x128xf32> to vector<23x128xbf16>
    %c15 = arith.constant 15 : index
    %c0_135 = arith.constant 0 : index
    %c0_136 = arith.constant 0 : index
    %155 = vector.load %arg2[%c15, %c0_135, %c0_136] : memref<37x128x128xbf16, #tpu.memory_space<vmem>>, vector<1x128x128xbf16>
    %156 = vector.shape_cast %155 : vector<1x128x128xbf16> to vector<128x128xbf16>
    %cst_137 = arith.constant dense<0.000000e+00> : vector<23x128xf32>
    %157 = tpu.matmul %154, %156, %cst_137 {dimension_numbers = #tpu.dot_dimension_numbers<[1], [0], [0], [1], [0, 0, 1, 1], [], []>} : vector<23x128xbf16>, vector<128x128xbf16>, vector<23x128xf32> -> vector<23x128xf32>
    %158 = arith.addf %152, %157 : vector<23x128xf32>
    %c2_138 = arith.constant 2 : index
    %c0_139 = arith.constant 0 : index
    %159 = vector.load %arg5[%c2_138, %c0_139] : memref<96x128xf32, #tpu.memory_space<vmem>>, vector<23x128xf32>
    %160 = arith.truncf %159 : vector<23x128xf32> to vector<23x128xbf16>
    %c16 = arith.constant 16 : index
    %c0_140 = arith.constant 0 : index
    %c0_141 = arith.constant 0 : index
    %161 = vector.load %arg2[%c16, %c0_140, %c0_141] : memref<37x128x128xbf16, #tpu.memory_space<vmem>>, vector<1x128x128xbf16>
    %162 = vector.shape_cast %161 : vector<1x128x128xbf16> to vector<128x128xbf16>
    %cst_142 = arith.constant dense<0.000000e+00> : vector<23x128xf32>
    %163 = tpu.matmul %160, %162, %cst_142 {dimension_numbers = #tpu.dot_dimension_numbers<[1], [0], [0], [1], [0, 0, 1, 1], [], []>} : vector<23x128xbf16>, vector<128x128xbf16>, vector<23x128xf32> -> vector<23x128xf32>
    %164 = arith.addf %158, %163 : vector<23x128xf32>
    %165 = arith.addf %164, %142 : vector<23x128xf32>
    %c9_143 = arith.constant 9 : index
    %c0_144 = arith.constant 0 : index
    %166 = vector.load %arg3[%c9_143, %c0_144] : memref<24x128xf32, #tpu.memory_space<vmem>>, vector<1x128xf32>
    %167 = vector.broadcast %166 : vector<1x128xf32> to vector<23x128xf32>
    %168 = arith.mulf %165, %167 : vector<23x128xf32>
    %c10_145 = arith.constant 10 : index
    %c0_146 = arith.constant 0 : index
    %169 = vector.load %arg3[%c10_145, %c0_146] : memref<24x128xf32, #tpu.memory_space<vmem>>, vector<1x128xf32>
    %170 = vector.broadcast %169 : vector<1x128xf32> to vector<23x128xf32>
    %171 = arith.addf %168, %170 : vector<23x128xf32>
    %cst_147 = arith.constant 0.000000e+00 : f32
    %172 = vector.broadcast %cst_147 : f32 to vector<23x128xf32>
    %173 = arith.maximumf %171, %172 : vector<23x128xf32>
    %cst_148 = arith.constant 0.000000e+00 : f32
    %174 = vector.broadcast %cst_148 : f32 to vector<96x128xf32>
    %c0_149 = arith.constant 0 : index
    %c0_150 = arith.constant 0 : index
    %175 = vector.load %arg6[%c0_149, %c0_150] : memref<96x128xf32, #tpu.memory_space<vmem>>, vector<96x128xf32>
    tpu.vector_store %arg6[%c0_149, %c0_150], %174 {strides = array<i32>} : memref<96x128xf32, #tpu.memory_space<vmem>>, vector<96x128xf32>,
    %c1_151 = arith.constant 1 : index
    %c0_152 = arith.constant 0 : index
    %176 = vector.load %arg6[%c1_151, %c0_152] : memref<96x128xf32, #tpu.memory_space<vmem>>, vector<23x128xf32>
    tpu.vector_store %arg6[%c1_151, %c0_152], %173 {strides = array<i32>} : memref<96x128xf32, #tpu.memory_space<vmem>>, vector<23x128xf32>,
    %cst_153 = arith.constant 0.000000e+00 : f32
    %177 = vector.broadcast %cst_153 : f32 to vector<12x128xf32>
    %c0_154 = arith.constant 0 : index
    %c0_155 = arith.constant 0 : index
    %178 = tpu.strided_load %arg6[%c0_154, %c0_155] {strides = array<i32: 2, 1>} : memref<96x128xf32, #tpu.memory_space<vmem>>, vector<12x128xf32>
    %179 = arith.truncf %178 : vector<12x128xf32> to vector<12x128xbf16>
    %c18 = arith.constant 18 : index
    %c0_156 = arith.constant 0 : index
    %c0_157 = arith.constant 0 : index
    %180 = vector.load %arg2[%c18, %c0_156, %c0_157] : memref<37x128x128xbf16, #tpu.memory_space<vmem>>, vector<1x128x128xbf16>
    %181 = vector.shape_cast %180 : vector<1x128x128xbf16> to vector<128x128xbf16>
    %cst_158 = arith.constant dense<0.000000e+00> : vector<12x128xf32>
    %182 = tpu.matmul %179, %181, %cst_158 {dimension_numbers = #tpu.dot_dimension_numbers<[1], [0], [0], [1], [0, 0, 1, 1], [], []>} : vector<12x128xbf16>, vector<128x128xbf16>, vector<12x128xf32> -> vector<12x128xf32>
    %183 = arith.addf %177, %182 : vector<12x128xf32>
    %c1_159 = arith.constant 1 : index
    %c0_160 = arith.constant 0 : index
    %184 = tpu.strided_load %arg6[%c1_159, %c0_160] {strides = array<i32: 2, 1>} : memref<96x128xf32, #tpu.memory_space<vmem>>, vector<12x128xf32>
    %185 = arith.truncf %184 : vector<12x128xf32> to vector<12x128xbf16>
    %c19 = arith.constant 19 : index
    %c0_161 = arith.constant 0 : index
    %c0_162 = arith.constant 0 : index
    %186 = vector.load %arg2[%c19, %c0_161, %c0_162] : memref<37x128x128xbf16, #tpu.memory_space<vmem>>, vector<1x128x128xbf16>
    %187 = vector.shape_cast %186 : vector<1x128x128xbf16> to vector<128x128xbf16>
    %cst_163 = arith.constant dense<0.000000e+00> : vector<12x128xf32>
    %188 = tpu.matmul %185, %187, %cst_163 {dimension_numbers = #tpu.dot_dimension_numbers<[1], [0], [0], [1], [0, 0, 1, 1], [], []>} : vector<12x128xbf16>, vector<128x128xbf16>, vector<12x128xf32> -> vector<12x128xf32>
    %189 = arith.addf %183, %188 : vector<12x128xf32>
    %c2_164 = arith.constant 2 : index
    %c0_165 = arith.constant 0 : index
    %190 = tpu.strided_load %arg6[%c2_164, %c0_165] {strides = array<i32: 2, 1>} : memref<96x128xf32, #tpu.memory_space<vmem>>, vector<12x128xf32>
    %191 = arith.truncf %190 : vector<12x128xf32> to vector<12x128xbf16>
    %c20 = arith.constant 20 : index
    %c0_166 = arith.constant 0 : index
    %c0_167 = arith.constant 0 : index
    %192 = vector.load %arg2[%c20, %c0_166, %c0_167] : memref<37x128x128xbf16, #tpu.memory_space<vmem>>, vector<1x128x128xbf16>
    %193 = vector.shape_cast %192 : vector<1x128x128xbf16> to vector<128x128xbf16>
    %cst_168 = arith.constant dense<0.000000e+00> : vector<12x128xf32>
    %194 = tpu.matmul %191, %193, %cst_168 {dimension_numbers = #tpu.dot_dimension_numbers<[1], [0], [0], [1], [0, 0, 1, 1], [], []>} : vector<12x128xbf16>, vector<128x128xbf16>, vector<12x128xf32> -> vector<12x128xf32>
    %195 = arith.addf %189, %194 : vector<12x128xf32>
    %c12_169 = arith.constant 12 : index
    %c0_170 = arith.constant 0 : index
    %196 = vector.load %arg3[%c12_169, %c0_170] : memref<24x128xf32, #tpu.memory_space<vmem>>, vector<1x128xf32>
    %197 = vector.broadcast %196 : vector<1x128xf32> to vector<12x128xf32>
    %198 = arith.mulf %195, %197 : vector<12x128xf32>
    %c13_171 = arith.constant 13 : index
    %c0_172 = arith.constant 0 : index
    %199 = vector.load %arg3[%c13_171, %c0_172] : memref<24x128xf32, #tpu.memory_space<vmem>>, vector<1x128xf32>
    %200 = vector.broadcast %199 : vector<1x128xf32> to vector<12x128xf32>
    %201 = arith.addf %198, %200 : vector<12x128xf32>
    %cst_173 = arith.constant 0.000000e+00 : f32
    %202 = vector.broadcast %cst_173 : f32 to vector<12x128xf32>
    %203 = arith.maximumf %201, %202 : vector<12x128xf32>
    %c1_174 = arith.constant 1 : index
    %c0_175 = arith.constant 0 : index
    %204 = tpu.strided_load %arg6[%c1_174, %c0_175] {strides = array<i32: 2, 1>} : memref<96x128xf32, #tpu.memory_space<vmem>>, vector<12x128xf32>
    %205 = arith.truncf %204 : vector<12x128xf32> to vector<12x128xbf16>
    %c24 = arith.constant 24 : index
    %c0_176 = arith.constant 0 : index
    %c0_177 = arith.constant 0 : index
    %206 = vector.load %arg2[%c24, %c0_176, %c0_177] : memref<37x128x128xbf16, #tpu.memory_space<vmem>>, vector<1x128x128xbf16>
    %207 = vector.shape_cast %206 : vector<1x128x128xbf16> to vector<128x128xbf16>
    %cst_178 = arith.constant dense<0.000000e+00> : vector<12x128xf32>
    %208 = tpu.matmul %205, %207, %cst_178 {dimension_numbers = #tpu.dot_dimension_numbers<[1], [0], [0], [1], [0, 0, 1, 1], [], []>} : vector<12x128xbf16>, vector<128x128xbf16>, vector<12x128xf32> -> vector<12x128xf32>
    %c16_179 = arith.constant 16 : index
    %c0_180 = arith.constant 0 : index
    %209 = vector.load %arg3[%c16_179, %c0_180] : memref<24x128xf32, #tpu.memory_space<vmem>>, vector<1x128xf32>
    %210 = vector.broadcast %209 : vector<1x128xf32> to vector<12x128xf32>
    %211 = arith.addf %208, %210 : vector<12x128xf32>
    %cst_181 = arith.constant 0.000000e+00 : f32
    %212 = vector.broadcast %cst_181 : f32 to vector<96x128xf32>
    %c0_182 = arith.constant 0 : index
    %c0_183 = arith.constant 0 : index
    %213 = vector.load %arg5[%c0_182, %c0_183] : memref<96x128xf32, #tpu.memory_space<vmem>>, vector<96x128xf32>
    tpu.vector_store %arg5[%c0_182, %c0_183], %212 {strides = array<i32>} : memref<96x128xf32, #tpu.memory_space<vmem>>, vector<96x128xf32>,
    %c1_184 = arith.constant 1 : index
    %c0_185 = arith.constant 0 : index
    %214 = vector.load %arg5[%c1_184, %c0_185] : memref<96x128xf32, #tpu.memory_space<vmem>>, vector<12x128xf32>
    tpu.vector_store %arg5[%c1_184, %c0_185], %203 {strides = array<i32>} : memref<96x128xf32, #tpu.memory_space<vmem>>, vector<12x128xf32>,
    %cst_186 = arith.constant 0.000000e+00 : f32
    %215 = vector.broadcast %cst_186 : f32 to vector<12x128xf32>
    %c0_187 = arith.constant 0 : index
    %c0_188 = arith.constant 0 : index
    %216 = vector.load %arg5[%c0_187, %c0_188] : memref<96x128xf32, #tpu.memory_space<vmem>>, vector<12x128xf32>
    %217 = arith.truncf %216 : vector<12x128xf32> to vector<12x128xbf16>
    %c21 = arith.constant 21 : index
    %c0_189 = arith.constant 0 : index
    %c0_190 = arith.constant 0 : index
    %218 = vector.load %arg2[%c21, %c0_189, %c0_190] : memref<37x128x128xbf16, #tpu.memory_space<vmem>>, vector<1x128x128xbf16>
    %219 = vector.shape_cast %218 : vector<1x128x128xbf16> to vector<128x128xbf16>
    %cst_191 = arith.constant dense<0.000000e+00> : vector<12x128xf32>
    %220 = tpu.matmul %217, %219, %cst_191 {dimension_numbers = #tpu.dot_dimension_numbers<[1], [0], [0], [1], [0, 0, 1, 1], [], []>} : vector<12x128xbf16>, vector<128x128xbf16>, vector<12x128xf32> -> vector<12x128xf32>
    %221 = arith.addf %215, %220 : vector<12x128xf32>
    %c1_192 = arith.constant 1 : index
    %c0_193 = arith.constant 0 : index
    %222 = vector.load %arg5[%c1_192, %c0_193] : memref<96x128xf32, #tpu.memory_space<vmem>>, vector<12x128xf32>
    %223 = arith.truncf %222 : vector<12x128xf32> to vector<12x128xbf16>
    %c22 = arith.constant 22 : index
    %c0_194 = arith.constant 0 : index
    %c0_195 = arith.constant 0 : index
    %224 = vector.load %arg2[%c22, %c0_194, %c0_195] : memref<37x128x128xbf16, #tpu.memory_space<vmem>>, vector<1x128x128xbf16>
    %225 = vector.shape_cast %224 : vector<1x128x128xbf16> to vector<128x128xbf16>
    %cst_196 = arith.constant dense<0.000000e+00> : vector<12x128xf32>
    %226 = tpu.matmul %223, %225, %cst_196 {dimension_numbers = #tpu.dot_dimension_numbers<[1], [0], [0], [1], [0, 0, 1, 1], [], []>} : vector<12x128xbf16>, vector<128x128xbf16>, vector<12x128xf32> -> vector<12x128xf32>
    %227 = arith.addf %221, %226 : vector<12x128xf32>
    %c2_197 = arith.constant 2 : index
    %c0_198 = arith.constant 0 : index
    %228 = vector.load %arg5[%c2_197, %c0_198] : memref<96x128xf32, #tpu.memory_space<vmem>>, vector<12x128xf32>
    %229 = arith.truncf %228 : vector<12x128xf32> to vector<12x128xbf16>
    %c23 = arith.constant 23 : index
    %c0_199 = arith.constant 0 : index
    %c0_200 = arith.constant 0 : index
    %230 = vector.load %arg2[%c23, %c0_199, %c0_200] : memref<37x128x128xbf16, #tpu.memory_space<vmem>>, vector<1x128x128xbf16>
    %231 = vector.shape_cast %230 : vector<1x128x128xbf16> to vector<128x128xbf16>
    %cst_201 = arith.constant dense<0.000000e+00> : vector<12x128xf32>
    %232 = tpu.matmul %229, %231, %cst_201 {dimension_numbers = #tpu.dot_dimension_numbers<[1], [0], [0], [1], [0, 0, 1, 1], [], []>} : vector<12x128xbf16>, vector<128x128xbf16>, vector<12x128xf32> -> vector<12x128xf32>
    %233 = arith.addf %227, %232 : vector<12x128xf32>
    %234 = arith.addf %233, %211 : vector<12x128xf32>
    %c14_202 = arith.constant 14 : index
    %c0_203 = arith.constant 0 : index
    %235 = vector.load %arg3[%c14_202, %c0_203] : memref<24x128xf32, #tpu.memory_space<vmem>>, vector<1x128xf32>
    %236 = vector.broadcast %235 : vector<1x128xf32> to vector<12x128xf32>
    %237 = arith.mulf %234, %236 : vector<12x128xf32>
    %c15_204 = arith.constant 15 : index
    %c0_205 = arith.constant 0 : index
    %238 = vector.load %arg3[%c15_204, %c0_205] : memref<24x128xf32, #tpu.memory_space<vmem>>, vector<1x128xf32>
    %239 = vector.broadcast %238 : vector<1x128xf32> to vector<12x128xf32>
    %240 = arith.addf %237, %239 : vector<12x128xf32>
    %cst_206 = arith.constant 0.000000e+00 : f32
    %241 = vector.broadcast %cst_206 : f32 to vector<12x128xf32>
    %242 = arith.maximumf %240, %241 : vector<12x128xf32>
    %cst_207 = arith.constant 0.000000e+00 : f32
    %243 = vector.broadcast %cst_207 : f32 to vector<96x128xf32>
    %c0_208 = arith.constant 0 : index
    %c0_209 = arith.constant 0 : index
    %244 = vector.load %arg6[%c0_208, %c0_209] : memref<96x128xf32, #tpu.memory_space<vmem>>, vector<96x128xf32>
    tpu.vector_store %arg6[%c0_208, %c0_209], %243 {strides = array<i32>} : memref<96x128xf32, #tpu.memory_space<vmem>>, vector<96x128xf32>,
    %c1_210 = arith.constant 1 : index
    %c0_211 = arith.constant 0 : index
    %245 = vector.load %arg6[%c1_210, %c0_211] : memref<96x128xf32, #tpu.memory_space<vmem>>, vector<12x128xf32>
    tpu.vector_store %arg6[%c1_210, %c0_211], %242 {strides = array<i32>} : memref<96x128xf32, #tpu.memory_space<vmem>>, vector<12x128xf32>,
    %cst_212 = arith.constant 0.000000e+00 : f32
    %246 = vector.broadcast %cst_212 : f32 to vector<1x128xf32>
    %c1_213 = arith.constant 1 : index
    %c0_214 = arith.constant 0 : index
    %247 = vector.load %arg6[%c1_213, %c0_214] : memref<96x128xf32, #tpu.memory_space<vmem>>, vector<1x128xf32>
    %248 = arith.truncf %247 : vector<1x128xf32> to vector<1x128xbf16>
    %c25 = arith.constant 25 : index
    %c0_215 = arith.constant 0 : index
    %c0_216 = arith.constant 0 : index
    %249 = vector.load %arg2[%c25, %c0_215, %c0_216] : memref<37x128x128xbf16, #tpu.memory_space<vmem>>, vector<1x128x128xbf16>
    %250 = vector.shape_cast %249 : vector<1x128x128xbf16> to vector<128x128xbf16>
    %cst_217 = arith.constant dense<0.000000e+00> : vector<1x128xf32>
    %251 = tpu.matmul %248, %250, %cst_217 {dimension_numbers = #tpu.dot_dimension_numbers<[1], [0], [0], [1], [0, 0, 1, 1], [], []>} : vector<1x128xbf16>, vector<128x128xbf16>, vector<1x128xf32> -> vector<1x128xf32>
    %252 = arith.addf %246, %251 : vector<1x128xf32>
    %c2_218 = arith.constant 2 : index
    %c0_219 = arith.constant 0 : index
    %253 = vector.load %arg6[%c2_218, %c0_219] : memref<96x128xf32, #tpu.memory_space<vmem>>, vector<1x128xf32>
    %254 = arith.truncf %253 : vector<1x128xf32> to vector<1x128xbf16>
    %c26 = arith.constant 26 : index
    %c0_220 = arith.constant 0 : index
    %c0_221 = arith.constant 0 : index
    %255 = vector.load %arg2[%c26, %c0_220, %c0_221] : memref<37x128x128xbf16, #tpu.memory_space<vmem>>, vector<1x128x128xbf16>
    %256 = vector.shape_cast %255 : vector<1x128x128xbf16> to vector<128x128xbf16>
    %cst_222 = arith.constant dense<0.000000e+00> : vector<1x128xf32>
    %257 = tpu.matmul %254, %256, %cst_222 {dimension_numbers = #tpu.dot_dimension_numbers<[1], [0], [0], [1], [0, 0, 1, 1], [], []>} : vector<1x128xbf16>, vector<128x128xbf16>, vector<1x128xf32> -> vector<1x128xf32>
    %258 = arith.addf %252, %257 : vector<1x128xf32>
    %c3_223 = arith.constant 3 : index
    %c0_224 = arith.constant 0 : index
    %259 = vector.load %arg6[%c3_223, %c0_224] : memref<96x128xf32, #tpu.memory_space<vmem>>, vector<1x128xf32>
    %260 = arith.truncf %259 : vector<1x128xf32> to vector<1x128xbf16>
    %c27 = arith.constant 27 : index
    %c0_225 = arith.constant 0 : index
    %c0_226 = arith.constant 0 : index
    %261 = vector.load %arg2[%c27, %c0_225, %c0_226] : memref<37x128x128xbf16, #tpu.memory_space<vmem>>, vector<1x128x128xbf16>
    %262 = vector.shape_cast %261 : vector<1x128x128xbf16> to vector<128x128xbf16>
    %cst_227 = arith.constant dense<0.000000e+00> : vector<1x128xf32>
    %263 = tpu.matmul %260, %262, %cst_227 {dimension_numbers = #tpu.dot_dimension_numbers<[1], [0], [0], [1], [0, 0, 1, 1], [], []>} : vector<1x128xbf16>, vector<128x128xbf16>, vector<1x128xf32> -> vector<1x128xf32>
    %264 = arith.addf %258, %263 : vector<1x128xf32>
    %c4_228 = arith.constant 4 : index
    %c0_229 = arith.constant 0 : index
    %265 = vector.load %arg6[%c4_228, %c0_229] : memref<96x128xf32, #tpu.memory_space<vmem>>, vector<1x128xf32>
    %266 = arith.truncf %265 : vector<1x128xf32> to vector<1x128xbf16>
    %c28 = arith.constant 28 : index
    %c0_230 = arith.constant 0 : index
    %c0_231 = arith.constant 0 : index
    %267 = vector.load %arg2[%c28, %c0_230, %c0_231] : memref<37x128x128xbf16, #tpu.memory_space<vmem>>, vector<1x128x128xbf16>
    %268 = vector.shape_cast %267 : vector<1x128x128xbf16> to vector<128x128xbf16>
    %cst_232 = arith.constant dense<0.000000e+00> : vector<1x128xf32>
    %269 = tpu.matmul %266, %268, %cst_232 {dimension_numbers = #tpu.dot_dimension_numbers<[1], [0], [0], [1], [0, 0, 1, 1], [], []>} : vector<1x128xbf16>, vector<128x128xbf16>, vector<1x128xf32> -> vector<1x128xf32>
    %270 = arith.addf %264, %269 : vector<1x128xf32>
    %c5_233 = arith.constant 5 : index
    %c0_234 = arith.constant 0 : index
    %271 = vector.load %arg6[%c5_233, %c0_234] : memref<96x128xf32, #tpu.memory_space<vmem>>, vector<1x128xf32>
    %272 = arith.truncf %271 : vector<1x128xf32> to vector<1x128xbf16>
    %c29 = arith.constant 29 : index
    %c0_235 = arith.constant 0 : index
    %c0_236 = arith.constant 0 : index
    %273 = vector.load %arg2[%c29, %c0_235, %c0_236] : memref<37x128x128xbf16, #tpu.memory_space<vmem>>, vector<1x128x128xbf16>
    %274 = vector.shape_cast %273 : vector<1x128x128xbf16> to vector<128x128xbf16>
    %cst_237 = arith.constant dense<0.000000e+00> : vector<1x128xf32>
    %275 = tpu.matmul %272, %274, %cst_237 {dimension_numbers = #tpu.dot_dimension_numbers<[1], [0], [0], [1], [0, 0, 1, 1], [], []>} : vector<1x128xbf16>, vector<128x128xbf16>, vector<1x128xf32> -> vector<1x128xf32>
    %276 = arith.addf %270, %275 : vector<1x128xf32>
    %c6_238 = arith.constant 6 : index
    %c0_239 = arith.constant 0 : index
    %277 = vector.load %arg6[%c6_238, %c0_239] : memref<96x128xf32, #tpu.memory_space<vmem>>, vector<1x128xf32>
    %278 = arith.truncf %277 : vector<1x128xf32> to vector<1x128xbf16>
    %c30 = arith.constant 30 : index
    %c0_240 = arith.constant 0 : index
    %c0_241 = arith.constant 0 : index
    %279 = vector.load %arg2[%c30, %c0_240, %c0_241] : memref<37x128x128xbf16, #tpu.memory_space<vmem>>, vector<1x128x128xbf16>
    %280 = vector.shape_cast %279 : vector<1x128x128xbf16> to vector<128x128xbf16>
    %cst_242 = arith.constant dense<0.000000e+00> : vector<1x128xf32>
    %281 = tpu.matmul %278, %280, %cst_242 {dimension_numbers = #tpu.dot_dimension_numbers<[1], [0], [0], [1], [0, 0, 1, 1], [], []>} : vector<1x128xbf16>, vector<128x128xbf16>, vector<1x128xf32> -> vector<1x128xf32>
    %282 = arith.addf %276, %281 : vector<1x128xf32>
    %c7_243 = arith.constant 7 : index
    %c0_244 = arith.constant 0 : index
    %283 = vector.load %arg6[%c7_243, %c0_244] : memref<96x128xf32, #tpu.memory_space<vmem>>, vector<1x128xf32>
    %284 = arith.truncf %283 : vector<1x128xf32> to vector<1x128xbf16>
    %c31 = arith.constant 31 : index
    %c0_245 = arith.constant 0 : index
    %c0_246 = arith.constant 0 : index
    %285 = vector.load %arg2[%c31, %c0_245, %c0_246] : memref<37x128x128xbf16, #tpu.memory_space<vmem>>, vector<1x128x128xbf16>
    %286 = vector.shape_cast %285 : vector<1x128x128xbf16> to vector<128x128xbf16>
    %cst_247 = arith.constant dense<0.000000e+00> : vector<1x128xf32>
    %287 = tpu.matmul %284, %286, %cst_247 {dimension_numbers = #tpu.dot_dimension_numbers<[1], [0], [0], [1], [0, 0, 1, 1], [], []>} : vector<1x128xbf16>, vector<128x128xbf16>, vector<1x128xf32> -> vector<1x128xf32>
    %288 = arith.addf %282, %287 : vector<1x128xf32>
    %c8_248 = arith.constant 8 : index
    %c0_249 = arith.constant 0 : index
    %289 = vector.load %arg6[%c8_248, %c0_249] : memref<96x128xf32, #tpu.memory_space<vmem>>, vector<1x128xf32>
    %290 = arith.truncf %289 : vector<1x128xf32> to vector<1x128xbf16>
    %c32 = arith.constant 32 : index
    %c0_250 = arith.constant 0 : index
    %c0_251 = arith.constant 0 : index
    %291 = vector.load %arg2[%c32, %c0_250, %c0_251] : memref<37x128x128xbf16, #tpu.memory_space<vmem>>, vector<1x128x128xbf16>
    %292 = vector.shape_cast %291 : vector<1x128x128xbf16> to vector<128x128xbf16>
    %cst_252 = arith.constant dense<0.000000e+00> : vector<1x128xf32>
    %293 = tpu.matmul %290, %292, %cst_252 {dimension_numbers = #tpu.dot_dimension_numbers<[1], [0], [0], [1], [0, 0, 1, 1], [], []>} : vector<1x128xbf16>, vector<128x128xbf16>, vector<1x128xf32> -> vector<1x128xf32>
    %294 = arith.addf %288, %293 : vector<1x128xf32>
    %c9_253 = arith.constant 9 : index
    %c0_254 = arith.constant 0 : index
    %295 = vector.load %arg6[%c9_253, %c0_254] : memref<96x128xf32, #tpu.memory_space<vmem>>, vector<1x128xf32>
    %296 = arith.truncf %295 : vector<1x128xf32> to vector<1x128xbf16>
    %c33 = arith.constant 33 : index
    %c0_255 = arith.constant 0 : index
    %c0_256 = arith.constant 0 : index
    %297 = vector.load %arg2[%c33, %c0_255, %c0_256] : memref<37x128x128xbf16, #tpu.memory_space<vmem>>, vector<1x128x128xbf16>
    %298 = vector.shape_cast %297 : vector<1x128x128xbf16> to vector<128x128xbf16>
    %cst_257 = arith.constant dense<0.000000e+00> : vector<1x128xf32>
    %299 = tpu.matmul %296, %298, %cst_257 {dimension_numbers = #tpu.dot_dimension_numbers<[1], [0], [0], [1], [0, 0, 1, 1], [], []>} : vector<1x128xbf16>, vector<128x128xbf16>, vector<1x128xf32> -> vector<1x128xf32>
    %300 = arith.addf %294, %299 : vector<1x128xf32>
    %c10_258 = arith.constant 10 : index
    %c0_259 = arith.constant 0 : index
    %301 = vector.load %arg6[%c10_258, %c0_259] : memref<96x128xf32, #tpu.memory_space<vmem>>, vector<1x128xf32>
    %302 = arith.truncf %301 : vector<1x128xf32> to vector<1x128xbf16>
    %c34 = arith.constant 34 : index
    %c0_260 = arith.constant 0 : index
    %c0_261 = arith.constant 0 : index
    %303 = vector.load %arg2[%c34, %c0_260, %c0_261] : memref<37x128x128xbf16, #tpu.memory_space<vmem>>, vector<1x128x128xbf16>
    %304 = vector.shape_cast %303 : vector<1x128x128xbf16> to vector<128x128xbf16>
    %cst_262 = arith.constant dense<0.000000e+00> : vector<1x128xf32>
    %305 = tpu.matmul %302, %304, %cst_262 {dimension_numbers = #tpu.dot_dimension_numbers<[1], [0], [0], [1], [0, 0, 1, 1], [], []>} : vector<1x128xbf16>, vector<128x128xbf16>, vector<1x128xf32> -> vector<1x128xf32>
    %306 = arith.addf %300, %305 : vector<1x128xf32>
    %c11_263 = arith.constant 11 : index
    %c0_264 = arith.constant 0 : index
    %307 = vector.load %arg6[%c11_263, %c0_264] : memref<96x128xf32, #tpu.memory_space<vmem>>, vector<1x128xf32>
    %308 = arith.truncf %307 : vector<1x128xf32> to vector<1x128xbf16>
    %c35 = arith.constant 35 : index
    %c0_265 = arith.constant 0 : index
    %c0_266 = arith.constant 0 : index
    %309 = vector.load %arg2[%c35, %c0_265, %c0_266] : memref<37x128x128xbf16, #tpu.memory_space<vmem>>, vector<1x128x128xbf16>
    %310 = vector.shape_cast %309 : vector<1x128x128xbf16> to vector<128x128xbf16>
    %cst_267 = arith.constant dense<0.000000e+00> : vector<1x128xf32>
    %311 = tpu.matmul %308, %310, %cst_267 {dimension_numbers = #tpu.dot_dimension_numbers<[1], [0], [0], [1], [0, 0, 1, 1], [], []>} : vector<1x128xbf16>, vector<128x128xbf16>, vector<1x128xf32> -> vector<1x128xf32>
    %312 = arith.addf %306, %311 : vector<1x128xf32>
    %c12_268 = arith.constant 12 : index
    %c0_269 = arith.constant 0 : index
    %313 = vector.load %arg6[%c12_268, %c0_269] : memref<96x128xf32, #tpu.memory_space<vmem>>, vector<1x128xf32>
    %314 = arith.truncf %313 : vector<1x128xf32> to vector<1x128xbf16>
    %c36 = arith.constant 36 : index
    %c0_270 = arith.constant 0 : index
    %c0_271 = arith.constant 0 : index
    %315 = vector.load %arg2[%c36, %c0_270, %c0_271] : memref<37x128x128xbf16, #tpu.memory_space<vmem>>, vector<1x128x128xbf16>
    %316 = vector.shape_cast %315 : vector<1x128x128xbf16> to vector<128x128xbf16>
    %cst_272 = arith.constant dense<0.000000e+00> : vector<1x128xf32>
    %317 = tpu.matmul %314, %316, %cst_272 {dimension_numbers = #tpu.dot_dimension_numbers<[1], [0], [0], [1], [0, 0, 1, 1], [], []>} : vector<1x128xbf16>, vector<128x128xbf16>, vector<1x128xf32> -> vector<1x128xf32>
    %318 = arith.addf %312, %317 : vector<1x128xf32>
    %c17_273 = arith.constant 17 : index
    %c0_274 = arith.constant 0 : index
    %319 = vector.load %arg3[%c17_273, %c0_274] : memref<24x128xf32, #tpu.memory_space<vmem>>, vector<1x128xf32>
    %320 = arith.addf %318, %319 : vector<1x128xf32>
    %321 = vector.shape_cast %320 : vector<1x128xf32> to vector<1x128xf32>
    %322 = vector.broadcast %321 : vector<1x128xf32> to vector<8x128xf32>
    %c0_275 = arith.constant 0 : index
    %c0_276 = arith.constant 0 : index
    %c0_277 = arith.constant 0 : index
    %323 = vector.load %arg4[%c0_275, %c0_276, %c0_277] : memref<1x8x128xf32, #tpu.memory_space<vmem>>, vector<1x8x128xf32>
    %324 = vector.shape_cast %323 : vector<1x8x128xf32> to vector<8x128xf32>
    %325 = vector.shape_cast %322 : vector<8x128xf32> to vector<1x8x128xf32>
    tpu.vector_store %arg4[%c0_275, %c0_276, %c0_277], %325 {strides = array<i32>} : memref<1x8x128xf32, #tpu.memory_space<vmem>>, vector<1x8x128xf32>,
    return
  }
  func.func @transform_0(%arg0: i32) -> (i32, i32, i32) {
    %c0_i32 = arith.constant 0 : i32
    %c0_i32_0 = arith.constant 0 : i32
    %c0_i32_1 = arith.constant 0 : i32
    return %arg0, %c0_i32, %c0_i32_0 : i32, i32, i32
  }
  func.func @transform_1(%arg0: i32) -> (i32, i32, i32) {
    %c0_i32 = arith.constant 0 : i32
    %c0_i32_0 = arith.constant 0 : i32
    %c0_i32_1 = arith.constant 0 : i32
    %c0_i32_2 = arith.constant 0 : i32
    return %c0_i32, %c0_i32_0, %c0_i32_1 : i32, i32, i32
  }
  func.func @transform_2(%arg0: i32) -> (i32, i32) {
    %c0_i32 = arith.constant 0 : i32
    %c0_i32_0 = arith.constant 0 : i32
    %c0_i32_1 = arith.constant 0 : i32
    return %c0_i32, %c0_i32_0 : i32, i32
  }
  func.func @transform_3(%arg0: i32) -> (i32, i32, i32) {
    %c0_i32 = arith.constant 0 : i32
    %c0_i32_0 = arith.constant 0 : i32
    %c0_i32_1 = arith.constant 0 : i32
    return %arg0, %c0_i32, %c0_i32_0 : i32, i32, i32
  }
}

</mosaic_0001>

<llo_original>
// kernel: forward.1
$region0: #{forward.1}
  #allocation0 [shape = 'u32[]', space=smem, size = 0x4, offset = 0x4, fixed_abs, tag = 'smem constant byte address 0x4 - core index']
  #allocation1 [shape = 'u32[72,128]{1,0:T(1,128)}', space=vmem, size = 0x9000, scoped, tag = 'internal scratch']
  #allocation2 [shape = 'f32[96,128]{1,0:T(8,128)}', space=vmem, size = 0xc000, scoped, tag = 'scratch operand']
  #allocation3 [shape = 'f32[96,128]{1,0:T(8,128)}', space=vmem, size = 0xc000, scoped, tag = 'scratch operand']
  %s0 = inlined_call_operand.vmem [shape: f32[2,96,128], index: 0, kind: input, shape index: {}]
  %s1 = inlined_call_operand.vmem [shape: bf16[37,128,128], index: 1, kind: input, shape index: {}]
  %s2 = inlined_call_operand.vmem [shape: f32[24,128], index: 2, kind: input, shape index: {}]
  %s3 = inlined_call_operand.vmem [shape: f32[2,8,128], index: 3, kind: output, shape index: {}]
  %s4 = sld [smem:[#allocation0]]
  $region45: #{forward.1} parent=0
    _
  %s6 = ssub.s32 1, %s4
  %s7 = scalar_select 0, %s6, %s4
  loop: start=0, step=1, limit=4
  $region2: #{forward.1} parent=0 // loop_pre_header
    _
  $region3: #{forward.1} parent=0 // loop_header
    %s9 = sphi 0, %s13
    %p10 = scmp.ge.s32.totalorder %s9, 4
    %s19 = sphi 0, %s21
    %s22 = sphi 0, %s19
    %s23 = sphi 0, %s22
    %s39 = sphi 0, %s23
    %s43 = sphi 0, %s43
    %s45 = sphi 0, %s43
    %s46 = sphi 0, %s45
    %s60 = sphi 0, %s46
    %s64 = sphi 0, %s64
    %s66 = sphi 0, %s64
    %s67 = sphi 0, %s66
    %s81 = sphi 0, %s67
    %s87 = sphi 0, %s89
    %s90 = sphi 0, %s87
    %s91 = sphi 0, %s90
    %s107 = sphi 0, %s91
  $region4: #{forward.1} parent=0 // loop_header_branch
    %12 = sbr.rel (%p10) target = $region8
  $region5: #{forward.1} parent=0 // loop_body
    %s14 = ssub.s32 %s9, 1
    %s15 = ssub.s32 %s9, 2
    %s16 = sadd.s32 %s9, 1
    %s17 = ssub.s32 %s9, %s16
    %p18 = scmp.eq.s32.totalorder %s17, 0
    %s20 = sadd.s32 %s19, 1
    %s21 = scalar_select %p18, %s19, %s20
    %p24 = pneg %p18
    %p25 = scmp.eq.s32.totalorder %s9, 1
    %p26 = por %p24, %p25
    %p27 = scmp.ne.s32.totalorder %s19, %s22
    %p28 = scmp.eq.s32.totalorder %s9, 0
    %p29 = por %p27, %p28
    %p30 = scmp.ne.s32.totalorder %s19, %s22
    %p31 = scmp.eq.s32.totalorder %s14, 1
    %p32 = por %p30, %p31
    %p33 = scmp.ne.s32.totalorder %s22, %s23
    %p34 = scmp.eq.s32.totalorder %s14, 0
    %p35 = por %p33, %p34
    %p36 = scmp.ne.s32.totalorder %s22, %s23
    %p37 = scmp.eq.s32.totalorder %s15, 1
    %p38 = por %p36, %p37
    %p40 = scmp.ne.s32.totalorder %s23, %s39
    %p41 = scmp.eq.s32.totalorder %s15, 0
    %p42 = por %p40, %p41
    %s44 = sadd.s32 %s43, 1
    %p47 = scmp.eq.s32.totalorder %s9, 1
    %p48 = scmp.ne.s32.totalorder %s43, %s45
    %p49 = scmp.eq.s32.totalorder %s9, 0
    %p50 = por %p48, %p49
    %p51 = scmp.ne.s32.totalorder %s43, %s45
    %p52 = scmp.eq.s32.totalorder %s14, 1
    %p53 = por %p51, %p52
    %p54 = scmp.ne.s32.totalorder %s45, %s46
    %p55 = scmp.eq.s32.totalorder %s14, 0
    %p56 = por %p54, %p55
    %p57 = scmp.ne.s32.totalorder %s45, %s46
    %p58 = scmp.eq.s32.totalorder %s15, 1
    %p59 = por %p57, %p58
    %p61 = scmp.ne.s32.totalorder %s46, %s60
    %p62 = scmp.eq.s32.totalorder %s15, 0
    %p63 = por %p61, %p62
    %s65 = sadd.s32 %s64, 1
    %p68 = scmp.eq.s32.totalorder %s9, 1
    %p69 = scmp.ne.s32.totalorder %s64, %s66
    %p70 = scmp.eq.s32.totalorder %s9, 0
    %p71 = por %p69, %p70
    %p72 = scmp.ne.s32.totalorder %s64, %s66
    %p73 = scmp.eq.s32.totalorder %s14, 1
    %p74 = por %p72, %p73
    %p75 = scmp.ne.s32.totalorder %s66, %s67
    %p76 = scmp.eq.s32.totalorder %s14, 0
    %p77 = por %p75, %p76
    %p78 = scmp.ne.s32.totalorder %s66, %s67
    %p79 = scmp.eq.s32.totalorder %s15, 1
    %p80 = por %p78, %p79
    %p82 = scmp.ne.s32.totalorder %s67, %s81
    %p83 = scmp.eq.s32.totalorder %s15, 0
    %p84 = por %p82, %p83
    %s85 = ssub.s32 %s9, %s16
    %p86 = scmp.eq.s32.totalorder %s85, 0
    %s88 = sadd.s32 %s87, 1
    %s89 = scalar_select %p86, %s87, %s88
    %p92 = pneg %p86
    %p93 = scmp.eq.s32.totalorder %s9, 1
    %p94 = por %p92, %p93
    %p95 = scmp.ne.s32.totalorder %s87, %s90
    %p96 = scmp.eq.s32.totalorder %s9, 0
    %p97 = por %p95, %p96
    %p98 = scmp.ne.s32.totalorder %s87, %s90
    %p99 = scmp.eq.s32.totalorder %s14, 1
    %p100 = por %p98, %p99
    %p101 = scmp.ne.s32.totalorder %s90, %s91
    %p102 = scmp.eq.s32.totalorder %s14, 0
    %p103 = por %p101, %p102
    %p104 = scmp.ne.s32.totalorder %s90, %s91
    %p105 = scmp.eq.s32.totalorder %s15, 1
    %p106 = por %p104, %p105
    %p108 = scmp.ne.s32.totalorder %s91, %s107
    %p109 = scmp.eq.s32.totalorder %s15, 0
    %p110 = por %p108, %p109
    %p111 = scmp.le.s32.totalorder 1, %s9
    %p112 = scmp.lt.s32.totalorder %s9, 3
    %p113 = pnand %p111, %p112
    %p114 = pneg %p113
    // Predicated region
    $region9: #{forward.1} parent=5 // pred_check
      _
    $region10: #{forward.1} parent=5 // pred_check_branch
      %116 = sbr.rel (%p113) target = $region12
    $region11: #{forward.1} parent=5 // pred_region
      %s117 = ssub.s32 %s9, 1
      // Predicated region
      $region13: #{forward.1} parent=11 // pred_check
        %p118 = pneg %p56
      $region14: #{forward.1} parent=11 // pred_check_branch
        %120 = sbr.rel (%p118) target = $region16
      $region15: #{forward.1} parent=11 // pred_region
        _
      $region16: #{forward.1} parent=11 // pred_fallthru
        _
      // Predicated region
      $region17: #{forward.1} parent=11 // pred_check
        %p121 = pneg %p77
      $region18: #{forward.1} parent=11 // pred_check_branch
        %123 = sbr.rel (%p121) target = $region20
      $region19: #{forward.1} parent=11 // pred_region
        _
      $region20: #{forward.1} parent=11 // pred_fallthru
        _
    $region12: #{forward.1} parent=5 // pred_fallthru
      _
    %p124 = scmp.lt.s32.totalorder %s9, 2
    // Predicated region
    $region21: #{forward.1} parent=5 // pred_check
      %p125 = pneg %p124
    $region22: #{forward.1} parent=5 // pred_check_branch
      %127 = sbr.rel (%p125) target = $region24
    $region23: #{forward.1} parent=5 // pred_region
      // Predicated region
      $region25: #{forward.1} parent=23 // pred_check
        %p128 = pneg %p29
      $region26: #{forward.1} parent=23 // pred_check_branch
        %130 = sbr.rel (%p128) target = $region28
      $region27: #{forward.1} parent=23 // pred_region
        %p131 = scmp.lt.s32.totalorder %s9, 1
        %s132 = scalar_select %p131, %s9, 1
        %s133 = smul.addr %s132, 12
        %s134 = smul.addr %s133, 8
        %s135 = scalar_lea.vmem %s0, %s134
      $region28: #{forward.1} parent=23 // pred_fallthru
        _
    $region24: #{forward.1} parent=5 // pred_fallthru
      _
    %p136 = scmp.le.s32.totalorder 1, %s9
    %p137 = scmp.lt.s32.totalorder %s9, 3
    %p138 = pnand %p136, %p137
    %p139 = pneg %p138
    // Predicated region
    $region29: #{forward.1} parent=5 // pred_check
      _
    $region30: #{forward.1} parent=5 // pred_check_branch
      %141 = sbr.rel (%p138) target = $region32
    $region31: #{forward.1} parent=5 // pred_region
      %s142 = ssub.s32 %s9, 1
      %p143 = scmp.lt.s32.totalorder %s14, 1
      %s144 = scalar_select %p143, %s14, 1
      %s145 = smul.addr %s144, 12
      %s146 = smul.addr %s145, 8
      %s147 = scalar_lea.vmem %s0, %s146
      %p148 = pneg %p35
      %p149 = pneg %p32
      %p150 = pneg %p56
      %p151 = pneg %p53
      %p152 = pneg %p77
      %p153 = pneg %p74
      %p154 = pneg %p103
      %p155 = pneg %p100
      %p156 = scmp.lt.s32.totalorder %s14, 1
      %s157 = scalar_select %p156, %s14, 1
      %s158 = smul.addr %s157, 8
      %s159 = scalar_lea.vmem %s3, %s158
      %p160 = scmp.lt.s32.totalorder %s14, 1
      %s161 = scalar_select %p160, %s14, 1
      %s162 = smul.addr %s161, 12
      %s163 = smul.addr %s162, 8
      %s164 = scalar_lea.vmem %s0, %s163
      %p165 = scmp.lt.s32.totalorder %s14, 1
      %s166 = scalar_select %p165, %s14, 1
      %s167 = smul.addr %s166, 8
      %s168 = scalar_lea.vmem %s3, %s167
      %v169 = vld [vmem:[%s164] sm:$0xff]
      %v170 = vld [vmem:[%s164 + $0x8] sm:$0xff]
      %v171 = vld [vmem:[%s164 + $0x10] sm:$0xff]
      %v172 = vld [vmem:[%s164 + $0x18] sm:$0xff]
      %v173 = vld [vmem:[%s164 + $0x20] sm:$0xff]
      %v174 = vld [vmem:[%s164 + $0x28] sm:$0xff]
      %v175 = vld [vmem:[%s164 + $0x30] sm:$0xff]
      %v176 = vld [vmem:[%s164 + $0x38] sm:$0xff]
      %v177 = vld [vmem:[%s164 + $0x40] sm:$0xff]
      %v178 = vld [vmem:[%s164 + $0x48] sm:$0xff]
      %v179 = vld [vmem:[%s164 + $0x50] sm:$0xff]
      %v180 = vld [vmem:[%s164 + $0x58] sm:$0xff]
      %181 = vst [vmem:[#allocation2] sm:$0xff] %v169
      %182 = vst [vmem:[#allocation2 + $0x8] sm:$0xff] %v170
      %183 = vst [vmem:[#allocation2 + $0x10] sm:$0xff] %v171
      %184 = vst [vmem:[#allocation2 + $0x18] sm:$0xff] %v172
      %185 = vst [vmem:[#allocation2 + $0x20] sm:$0xff] %v173
      %186 = vst [vmem:[#allocation2 + $0x28] sm:$0xff] %v174
      %187 = vst [vmem:[#allocation2 + $0x30] sm:$0xff] %v175
      %188 = vst [vmem:[#allocation2 + $0x38] sm:$0xff] %v176
      %189 = vst [vmem:[#allocation2 + $0x40] sm:$0xff] %v177
      %190 = vst [vmem:[#allocation2 + $0x48] sm:$0xff] %v178
      %191 = vst [vmem:[#allocation2 + $0x50] sm:$0xff] %v179
      %192 = vst [vmem:[#allocation2 + $0x58] sm:$0xff] %v180
      %v193 = vld [vmem:[#allocation2] sm:$0xff]
      %v194 = vld [vmem:[#allocation2 + $0x8] sm:$0xff]
      %v195 = vld [vmem:[#allocation2 + $0x10] sm:$0xff]
      %v196 = vld [vmem:[#allocation2 + $0x18] sm:$0xff]
      %v197 = vld [vmem:[#allocation2 + $0x20] sm:$0xff]
      %v198 = vld [vmem:[#allocation2 + $0x28] sm:$0xff]
      %v199 = vld [vmem:[#allocation2 + $0x30] sm:$0xff]
      %v200 = vld [vmem:[#allocation2 + $0x38] sm:$0xff]
      %v201 = vld [vmem:[#allocation2 + $0x40] sm:$0xff]
      %v202 = vld [vmem:[#allocation2 + $0x48] sm:$0xff]
      %v203 = vld [vmem:[#allocation2 + $0x50] sm:$0xff]
      %v204 = vld [vmem:[#allocation2 + $0x58] sm:$0x1]
      %v205 = vpack.c.bf16 %v194, %v193
      %v206 = vpack.c.bf16 %v196, %v195
      %v207 = vpack.c.bf16 %v198, %v197
      %v208 = vpack.c.bf16 %v200, %v199
      %v209 = vpack.c.bf16 %v202, %v201
      %v210 = vpack.c.bf16 %v204, %v203
      %v211 = vld [vmem:[%s1] sm:$0xf]
      %v212 = vld [vmem:[%s1 + $0x4] sm:$0xf]
      %v213 = vld [vmem:[%s1 + $0x8] sm:$0xf]
      %v214 = vld [vmem:[%s1 + $0xc] sm:$0xf]
      %v215 = vld [vmem:[%s1 + $0x10] sm:$0xf]
      %v216 = vld [vmem:[%s1 + $0x14] sm:$0xf]
      %v217 = vld [vmem:[%s1 + $0x18] sm:$0xf]
      %v218 = vld [vmem:[%s1 + $0x1c] sm:$0xf]
      %v219 = vld [vmem:[%s1 + $0x20] sm:$0xf]
      %v220 = vld [vmem:[%s1 + $0x24] sm:$0xf]
      %v221 = vld [vmem:[%s1 + $0x28] sm:$0xf]
      %v222 = vld [vmem:[%s1 + $0x2c] sm:$0xf]
      %v223 = vld [vmem:[%s1 + $0x30] sm:$0xf]
      %v224 = vld [vmem:[%s1 + $0x34] sm:$0xf]
      %v225 = vld [vmem:[%s1 + $0x38] sm:$0xf]
      %v226 = vld [vmem:[%s1 + $0x3c] sm:$0xf]
      %v227 = vld [vmem:[#allocation2 + $0x1] sm:$0xff]
      %v228 = vld [vmem:[#allocation2 + $0x9] sm:$0xff]
      %v229 = vld [vmem:[#allocation2 + $0x11] sm:$0xff]
      %v230 = vld [vmem:[#allocation2 + $0x19] sm:$0xff]
      %v231 = vld [vmem:[#allocation2 + $0x21] sm:$0xff]
      %v232 = vld [vmem:[#allocation2 + $0x29] sm:$0xff]
      %v233 = vld [vmem:[#allocation2 + $0x31] sm:$0xff]
      %v234 = vld [vmem:[#allocation2 + $0x39] sm:$0xff]
      %v235 = vld [vmem:[#allocation2 + $0x41] sm:$0xff]
      %v236 = vld [vmem:[#allocation2 + $0x49] sm:$0xff]
      %v237 = vld [vmem:[#allocation2 + $0x51] sm:$0xff]
      %v238 = vld [vmem:[#allocation2 + $0x59] sm:$0x1]
      %v239 = vpack.c.bf16 %v228, %v227
      %v240 = vpack.c.bf16 %v230, %v229
      %v241 = vpack.c.bf16 %v232, %v231
      %v242 = vpack.c.bf16 %v234, %v233
      %v243 = vpack.c.bf16 %v236, %v235
      %v244 = vpack.c.bf16 %v238, %v237
      %s245 = scalar_lea.vmem %s1, 64
      %v246 = vld [vmem:[%s245] sm:$0xf]
      %v247 = vld [vmem:[%s245 + $0x4] sm:$0xf]
      %v248 = vld [vmem:[%s245 + $0x8] sm:$0xf]
      %v249 = vld [vmem:[%s245 + $0xc] sm:$0xf]
      %v250 = vld [vmem:[%s245 + $0x10] sm:$0xf]
      %v251 = vld [vmem:[%s245 + $0x14] sm:$0xf]
      %v252 = vld [vmem:[%s245 + $0x18] sm:$0xf]
      %v253 = vld [vmem:[%s245 + $0x1c] sm:$0xf]
      %v254 = vld [vmem:[%s245 + $0x20] sm:$0xf]
      %v255 = vld [vmem:[%s245 + $0x24] sm:$0xf]
      %v256 = vld [vmem:[%s245 + $0x28] sm:$0xf]
      %v257 = vld [vmem:[%s245 + $0x2c] sm:$0xf]
      %v258 = vld [vmem:[%s245 + $0x30] sm:$0xf]
      %v259 = vld [vmem:[%s245 + $0x34] sm:$0xf]
      %v260 = vld [vmem:[%s245 + $0x38] sm:$0xf]
      %v261 = vld [vmem:[%s245 + $0x3c] sm:$0xf]
      %v278 = vunpack.c.l.b16 %v246
      %v279 = vunpack.c.l.b16 %v247
      %v280 = vunpack.c.l.b16 %v248
      %v281 = vunpack.c.l.b16 %v249
      %v282 = vunpack.c.l.b16 %v250
      %v283 = vunpack.c.l.b16 %v251
      %v284 = vunpack.c.l.b16 %v252
      %v285 = vunpack.c.l.b16 %v253
      %v286 = vunpack.c.l.b16 %v254
      %v287 = vunpack.c.l.b16 %v255
      %v288 = vunpack.c.l.b16 %v256
      %v289 = vunpack.c.l.b16 %v257
      %v290 = vunpack.c.l.b16 %v258
      %v291 = vunpack.c.l.b16 %v259
      %v292 = vunpack.c.l.b16 %v260
      %v293 = vunpack.c.l.b16 %v261
      %v294 = vpack.c.b16 %v279, %v278
      %v295 = vpack.c.b16 %v281, %v280
      %v296 = vpack.c.b16 %v283, %v282
      %v297 = vpack.c.b16 %v285, %v284
      %v298 = vpack.c.b16 %v287, %v286
      %v299 = vpack.c.b16 %v289, %v288
      %v300 = vpack.c.b16 %v291, %v290
      %v301 = vpack.c.b16 %v293, %v292
      %310 = vmatpush.bf16.msra.mxu0 %v301
      %311 = vmatpush.bf16.msra.mxu0 %v300
      %312 = vmatpush.bf16.msra.mxu0 %v299
      %313 = vmatpush.bf16.msra.mxu0 %v298
      %314 = vmatpush.bf16.msra.mxu0 %v297
      %315 = vmatpush.bf16.msra.mxu0 %v296
      %316 = vmatpush.bf16.msra.mxu0 %v295
      %317 = vmatpush.bf16.msra.mxu0 %v294
      %318 = vmatmul.bf16.gmra.mxu0 %v239
      %v319 = vpop.f32.mrf.mxu0
      %v320 = vadd.f32 0.0, %v319
      %v321 = vpop.f32.mrf.mxu0
      %v322 = vadd.f32 0.0, %v321
      %323 = vmatmul.bf16.gmra.mxu0 %v240
      %v324 = vpop.f32.mrf.mxu0
      %v325 = vadd.f32 0.0, %v324
      %v326 = vpop.f32.mrf.mxu0
      %v327 = vadd.f32 0.0, %v326
      %328 = vmatmul.bf16.gmra.mxu0 %v241
      %v329 = vpop.f32.mrf.mxu0
      %v330 = vadd.f32 0.0, %v329
      %v331 = vpop.f32.mrf.mxu0
      %v332 = vadd.f32 0.0, %v331
      %333 = vmatmul.bf16.gmra.mxu0 %v242
      %v334 = vpop.f32.mrf.mxu0
      %v335 = vadd.f32 0.0, %v334
      %v336 = vpop.f32.mrf.mxu0
      %v337 = vadd.f32 0.0, %v336
      %338 = vmatmul.bf16.gmra.mxu0 %v243
      %v339 = vpop.f32.mrf.mxu0
      %v340 = vadd.f32 0.0, %v339
      %v341 = vpop.f32.mrf.mxu0
      %v342 = vadd.f32 0.0, %v341
      %343 = vmatmul.bf16.gmra.mxu0 %v244
      %v344 = vpop.f32.mrf.mxu0
      %v345 = vadd.f32 0.0, %v344
      %v346 = vpop.f32.mrf.mxu0
      %v347 = vadd.f32 0.0, %v346
      %348 = vdwg.mxu0
      %v365 = vunpack.c.l.b16 %v211
      %v366 = vunpack.c.l.b16 %v212
      %v367 = vunpack.c.l.b16 %v213
      %v368 = vunpack.c.l.b16 %v214
      %v369 = vunpack.c.l.b16 %v215
      %v370 = vunpack.c.l.b16 %v216
      %v371 = vunpack.c.l.b16 %v217
      %v372 = vunpack.c.l.b16 %v218
      %v373 = vunpack.c.l.b16 %v219
      %v374 = vunpack.c.l.b16 %v220
      %v375 = vunpack.c.l.b16 %v221
      %v376 = vunpack.c.l.b16 %v222
      %v377 = vunpack.c.l.b16 %v223
      %v378 = vunpack.c.l.b16 %v224
      %v379 = vunpack.c.l.b16 %v225
      %v380 = vunpack.c.l.b16 %v226
      %v381 = vpack.c.b16 %v366, %v365
      %v382 = vpack.c.b16 %v368, %v367
      %v383 = vpack.c.b16 %v370, %v369
      %v384 = vpack.c.b16 %v372, %v371
      %v385 = vpack.c.b16 %v374, %v373
      %v386 = vpack.c.b16 %v376, %v375
      %v387 = vpack.c.b16 %v378, %v377
      %v388 = vpack.c.b16 %v380, %v379
      %397 = vmatpush.bf16.msra.mxu0 %v388
      %398 = vmatpush.bf16.msra.mxu0 %v387
      %399 = vmatpush.bf16.msra.mxu0 %v386
      %400 = vmatpush.bf16.msra.mxu0 %v385
      %401 = vmatpush.bf16.msra.mxu0 %v384
      %402 = vmatpush.bf16.msra.mxu0 %v383
      %403 = vmatpush.bf16.msra.mxu0 %v382
      %404 = vmatpush.bf16.msra.mxu0 %v381
      %405 = vmatmul.bf16.gmra.mxu0 %v205
      %v406 = vpop.f32.mrf.mxu0
      %v407 = vadd.f32 %v320, %v406
      %v408 = vpop.f32.mrf.mxu0
      %v409 = vadd.f32 %v322, %v408
      %410 = vmatmul.bf16.gmra.mxu0 %v206
      %v411 = vpop.f32.mrf.mxu0
      %v412 = vadd.f32 %v325, %v411
      %v413 = vpop.f32.mrf.mxu0
      %v414 = vadd.f32 %v327, %v413
      %415 = vmatmul.bf16.gmra.mxu0 %v207
      %v416 = vpop.f32.mrf.mxu0
      %v417 = vadd.f32 %v330, %v416
      %v418 = vpop.f32.mrf.mxu0
      %v419 = vadd.f32 %v332, %v418
      %420 = vmatmul.bf16.gmra.mxu0 %v208
      %v421 = vpop.f32.mrf.mxu0
      %v422 = vadd.f32 %v335, %v421
      %v423 = vpop.f32.mrf.mxu0
      %v424 = vadd.f32 %v337, %v423
      %425 = vmatmul.bf16.gmra.mxu0 %v209
      %v426 = vpop.f32.mrf.mxu0
      %v427 = vadd.f32 %v340, %v426
      %v428 = vpop.f32.mrf.mxu0
      %v429 = vadd.f32 %v342, %v428
      %430 = vmatmul.bf16.gmra.mxu0 %v210
      %v431 = vpop.f32.mrf.mxu0
      %v432 = vadd.f32 %v345, %v431
      %v433 = vpop.f32.mrf.mxu0
      %v434 = vadd.f32 %v347, %v433
      %435 = vdwg.mxu0
      %v436 = vld [vmem:[#allocation2 + $0x2] sm:$0xff]
      %v437 = vld [vmem:[#allocation2 + $0xa] sm:$0xff]
      %v438 = vld [vmem:[#allocation2 + $0x12] sm:$0xff]
      %v439 = vld [vmem:[#allocation2 + $0x1a] sm:$0xff]
      %v440 = vld [vmem:[#allocation2 + $0x22] sm:$0xff]
      %v441 = vld [vmem:[#allocation2 + $0x2a] sm:$0xff]
      %v442 = vld [vmem:[#allocation2 + $0x32] sm:$0xff]
      %v443 = vld [vmem:[#allocation2 + $0x3a] sm:$0xff]
      %v444 = vld [vmem:[#allocation2 + $0x42] sm:$0xff]
      %v445 = vld [vmem:[#allocation2 + $0x4a] sm:$0xff]
      %v446 = vld [vmem:[#allocation2 + $0x52] sm:$0xff]
      %v447 = vld [vmem:[#allocation2 + $0x5a] sm:$0x1]
      %v448 = vpack.c.bf16 %v437, %v436
      %v449 = vpack.c.bf16 %v439, %v438
      %v450 = vpack.c.bf16 %v441, %v440
      %v451 = vpack.c.bf16 %v443, %v442
      %v452 = vpack.c.bf16 %v445, %v444
      %v453 = vpack.c.bf16 %v447, %v446
      %s454 = scalar_lea.vmem %s1, 128
      %v455 = vld [vmem:[%s454] sm:$0xf]
      %v456 = vld [vmem:[%s454 + $0x4] sm:$0xf]
      %v457 = vld [vmem:[%s454 + $0x8] sm:$0xf]
      %v458 = vld [vmem:[%s454 + $0xc] sm:$0xf]
      %v459 = vld [vmem:[%s454 + $0x10] sm:$0xf]
      %v460 = vld [vmem:[%s454 + $0x14] sm:$0xf]
      %v461 = vld [vmem:[%s454 + $0x18] sm:$0xf]
      %v462 = vld [vmem:[%s454 + $0x1c] sm:$0xf]
      %v463 = vld [vmem:[%s454 + $0x20] sm:$0xf]
      %v464 = vld [vmem:[%s454 + $0x24] sm:$0xf]
      %v465 = vld [vmem:[%s454 + $0x28] sm:$0xf]
      %v466 = vld [vmem:[%s454 + $0x2c] sm:$0xf]
      %v467 = vld [vmem:[%s454 + $0x30] sm:$0xf]
      %v468 = vld [vmem:[%s454 + $0x34] sm:$0xf]
      %v469 = vld [vmem:[%s454 + $0x38] sm:$0xf]
      %v470 = vld [vmem:[%s454 + $0x3c] sm:$0xf]
      %v487 = vunpack.c.l.b16 %v455
      %v488 = vunpack.c.l.b16 %v456
      %v489 = vunpack.c.l.b16 %v457
      %v490 = vunpack.c.l.b16 %v458
      %v491 = vunpack.c.l.b16 %v459
      %v492 = vunpack.c.l.b16 %v460
      %v493 = vunpack.c.l.b16 %v461
      %v494 = vunpack.c.l.b16 %v462
      %v495 = vunpack.c.l.b16 %v463
      %v496 = vunpack.c.l.b16 %v464
      %v497 = vunpack.c.l.b16 %v465
      %v498 = vunpack.c.l.b16 %v466
      %v499 = vunpack.c.l.b16 %v467
      %v500 = vunpack.c.l.b16 %v468
      %v501 = vunpack.c.l.b16 %v469
      %v502 = vunpack.c.l.b16 %v470
      %v503 = vpack.c.b16 %v488, %v487
      %v504 = vpack.c.b16 %v490, %v489
      %v505 = vpack.c.b16 %v492, %v491
      %v506 = vpack.c.b16 %v494, %v493
      %v507 = vpack.c.b16 %v496, %v495
      %v508 = vpack.c.b16 %v498, %v497
      %v509 = vpack.c.b16 %v500, %v499
      %v510 = vpack.c.b16 %v502, %v501
      %519 = vmatpush.bf16.msra.mxu0 %v510
      %520 = vmatpush.bf16.msra.mxu0 %v509
      %521 = vmatpush.bf16.msra.mxu0 %v508
      %522 = vmatpush.bf16.msra.mxu0 %v507
      %523 = vmatpush.bf16.msra.mxu0 %v506
      %524 = vmatpush.bf16.msra.mxu0 %v505
      %525 = vmatpush.bf16.msra.mxu0 %v504
      %526 = vmatpush.bf16.msra.mxu0 %v503
      %527 = vmatmul.bf16.gmra.mxu0 %v448
      %v528 = vpop.f32.mrf.mxu0
      %v529 = vadd.f32 0.0, %v528
      %v530 = vpop.f32.mrf.mxu0
      %v531 = vadd.f32 0.0, %v530
      %532 = vmatmul.bf16.gmra.mxu0 %v449
      %v533 = vpop.f32.mrf.mxu0
      %v534 = vadd.f32 0.0, %v533
      %v535 = vpop.f32.mrf.mxu0
      %v536 = vadd.f32 0.0, %v535
      %537 = vmatmul.bf16.gmra.mxu0 %v450
      %v538 = vpop.f32.mrf.mxu0
      %v539 = vadd.f32 0.0, %v538
      %v540 = vpop.f32.mrf.mxu0
      %v541 = vadd.f32 0.0, %v540
      %542 = vmatmul.bf16.gmra.mxu0 %v451
      %v543 = vpop.f32.mrf.mxu0
      %v544 = vadd.f32 0.0, %v543
      %v545 = vpop.f32.mrf.mxu0
      %v546 = vadd.f32 0.0, %v545
      %547 = vmatmul.bf16.gmra.mxu0 %v452
      %v548 = vpop.f32.mrf.mxu0
      %v549 = vadd.f32 0.0, %v548
      %v550 = vpop.f32.mrf.mxu0
      %v551 = vadd.f32 0.0, %v550
      %552 = vmatmul.bf16.gmra.mxu0 %v453
      %v553 = vpop.f32.mrf.mxu0
      %v554 = vadd.f32 0.0, %v553
      %v555 = vpop.f32.mrf.mxu0
      %v556 = vadd.f32 0.0, %v555
      %557 = vdwg.mxu0
      %v558 = vadd.f32 %v407, %v529
      %v559 = vadd.f32 %v409, %v531
      %v560 = vadd.f32 %v412, %v534
      %v561 = vadd.f32 %v414, %v536
      %v562 = vadd.f32 %v417, %v539
      %v563 = vadd.f32 %v419, %v541
      %v564 = vadd.f32 %v422, %v544
      %v565 = vadd.f32 %v424, %v546
      %v566 = vadd.f32 %v427, %v549
      %v567 = vadd.f32 %v429, %v551
      %v568 = vadd.f32 %v432, %v554
      %v569 = vadd.f32 %v434, %v556
      %v570 = vld [vmem:[#allocation2 + $0x3] sm:$0xff]
      %v571 = vld [vmem:[#allocation2 + $0xb] sm:$0xff]
      %v572 = vld [vmem:[#allocation2 + $0x13] sm:$0xff]
      %v573 = vld [vmem:[#allocation2 + $0x1b] sm:$0xff]
      %v574 = vld [vmem:[#allocation2 + $0x23] sm:$0xff]
      %v575 = vld [vmem:[#allocation2 + $0x2b] sm:$0xff]
      %v576 = vld [vmem:[#allocation2 + $0x33] sm:$0xff]
      %v577 = vld [vmem:[#allocation2 + $0x3b] sm:$0xff]
      %v578 = vld [vmem:[#allocation2 + $0x43] sm:$0xff]
      %v579 = vld [vmem:[#allocation2 + $0x4b] sm:$0xff]
      %v580 = vld [vmem:[#allocation2 + $0x53] sm:$0xff]
      %v581 = vld [vmem:[#allocation2 + $0x5b] sm:$0x1]
      %v582 = vpack.c.bf16 %v571, %v570
      %v583 = vpack.c.bf16 %v573, %v572
      %v584 = vpack.c.bf16 %v575, %v574
      %v585 = vpack.c.bf16 %v577, %v576
      %v586 = vpack.c.bf16 %v579, %v578
      %v587 = vpack.c.bf16 %v581, %v580
      %s588 = scalar_lea.vmem %s1, 192
      %v589 = vld [vmem:[%s588] sm:$0xf]
      %v590 = vld [vmem:[%s588 + $0x4] sm:$0xf]
      %v591 = vld [vmem:[%s588 + $0x8] sm:$0xf]
      %v592 = vld [vmem:[%s588 + $0xc] sm:$0xf]
      %v593 = vld [vmem:[%s588 + $0x10] sm:$0xf]
      %v594 = vld [vmem:[%s588 + $0x14] sm:$0xf]
      %v595 = vld [vmem:[%s588 + $0x18] sm:$0xf]
      %v596 = vld [vmem:[%s588 + $0x1c] sm:$0xf]
      %v597 = vld [vmem:[%s588 + $0x20] sm:$0xf]
      %v598 = vld [vmem:[%s588 + $0x24] sm:$0xf]
      %v599 = vld [vmem:[%s588 + $0x28] sm:$0xf]
      %v600 = vld [vmem:[%s588 + $0x2c] sm:$0xf]
      %v601 = vld [vmem:[%s588 + $0x30] sm:$0xf]
      %v602 = vld [vmem:[%s588 + $0x34] sm:$0xf]
      %v603 = vld [vmem:[%s588 + $0x38] sm:$0xf]
      %v604 = vld [vmem:[%s588 + $0x3c] sm:$0xf]
      %v621 = vunpack.c.l.b16 %v589
      %v622 = vunpack.c.l.b16 %v590
      %v623 = vunpack.c.l.b16 %v591
      %v624 = vunpack.c.l.b16 %v592
      %v625 = vunpack.c.l.b16 %v593
      %v626 = vunpack.c.l.b16 %v594
      %v627 = vunpack.c.l.b16 %v595
      %v628 = vunpack.c.l.b16 %v596
      %v629 = vunpack.c.l.b16 %v597
      %v630 = vunpack.c.l.b16 %v598
      %v631 = vunpack.c.l.b16 %v599
      %v632 = vunpack.c.l.b16 %v600
      %v633 = vunpack.c.l.b16 %v601
      %v634 = vunpack.c.l.b16 %v602
      %v635 = vunpack.c.l.b16 %v603
      %v636 = vunpack.c.l.b16 %v604
      %v637 = vpack.c.b16 %v622, %v621
      %v638 = vpack.c.b16 %v624, %v623
      %v639 = vpack.c.b16 %v626, %v625
      %v640 = vpack.c.b16 %v628, %v627
      %v641 = vpack.c.b16 %v630, %v629
      %v642 = vpack.c.b16 %v632, %v631
      %v643 = vpack.c.b16 %v634, %v633
      %v644 = vpack.c.b16 %v636, %v635
      %653 = vmatpush.bf16.msra.mxu0 %v644
      %654 = vmatpush.bf16.msra.mxu0 %v643
      %655 = vmatpush.bf16.msra.mxu0 %v642
      %656 = vmatpush.bf16.msra.mxu0 %v641
      %657 = vmatpush.bf16.msra.mxu0 %v640
      %658 = vmatpush.bf16.msra.mxu0 %v639
      %659 = vmatpush.bf16.msra.mxu0 %v638
      %660 = vmatpush.bf16.msra.mxu0 %v637
      %661 = vmatmul.bf16.gmra.mxu0 %v582
      %v662 = vpop.f32.mrf.mxu0
      %v663 = vadd.f32 0.0, %v662
      %v664 = vpop.f32.mrf.mxu0
      %v665 = vadd.f32 0.0, %v664
      %666 = vmatmul.bf16.gmra.mxu0 %v583
      %v667 = vpop.f32.mrf.mxu0
      %v668 = vadd.f32 0.0, %v667
      %v669 = vpop.f32.mrf.mxu0
      %v670 = vadd.f32 0.0, %v669
      %671 = vmatmul.bf16.gmra.mxu0 %v584
      %v672 = vpop.f32.mrf.mxu0
      %v673 = vadd.f32 0.0, %v672
      %v674 = vpop.f32.mrf.mxu0
      %v675 = vadd.f32 0.0, %v674
      %676 = vmatmul.bf16.gmra.mxu0 %v585
      %v677 = vpop.f32.mrf.mxu0
      %v678 = vadd.f32 0.0, %v677
      %v679 = vpop.f32.mrf.mxu0
      %v680 = vadd.f32 0.0, %v679
      %681 = vmatmul.bf16.gmra.mxu0 %v586
      %v682 = vpop.f32.mrf.mxu0
      %v683 = vadd.f32 0.0, %v682
      %v684 = vpop.f32.mrf.mxu0
      %v685 = vadd.f32 0.0, %v684
      %686 = vmatmul.bf16.gmra.mxu0 %v587
      %v687 = vpop.f32.mrf.mxu0
      %v688 = vadd.f32 0.0, %v687
      %v689 = vpop.f32.mrf.mxu0
      %v690 = vadd.f32 0.0, %v689
      %691 = vdwg.mxu0
      %v692 = vadd.f32 %v558, %v663
      %v693 = vadd.f32 %v559, %v665
      %v694 = vadd.f32 %v560, %v668
      %v695 = vadd.f32 %v561, %v670
      %v696 = vadd.f32 %v562, %v673
      %v697 = vadd.f32 %v563, %v675
      %v698 = vadd.f32 %v564, %v678
      %v699 = vadd.f32 %v565, %v680
      %v700 = vadd.f32 %v566, %v683
      %v701 = vadd.f32 %v567, %v685
      %v702 = vadd.f32 %v568, %v688
      %v703 = vadd.f32 %v569, %v690
      %v704 = vld [vmem:[%s2] sm:$0x1]
      %v705 = vperm.slane %v704, 0
      %v706 = vmul.f32 %v692, %v705
      %v707 = vmul.f32 %v693, %v705
      %v708 = vmul.f32 %v694, %v705
      %v709 = vmul.f32 %v695, %v705
      %v710 = vmul.f32 %v696, %v705
      %v711 = vmul.f32 %v697, %v705
      %v712 = vmul.f32 %v698, %v705
      %v713 = vmul.f32 %v699, %v705
      %v714 = vmul.f32 %v700, %v705
      %v715 = vmul.f32 %v701, %v705
      %v716 = vmul.f32 %v702, %v705
      %v717 = vmul.f32 %v703, %v705
      %v718 = vld [vmem:[%s2 + $0x1] sm:$0x1]
      %v719 = vperm.slane %v718, 0
      %v720 = vadd.f32 %v706, %v719
      %v721 = vadd.f32 %v707, %v719
      %v722 = vadd.f32 %v708, %v719
      %v723 = vadd.f32 %v709, %v719
      %v724 = vadd.f32 %v710, %v719
      %v725 = vadd.f32 %v711, %v719
      %v726 = vadd.f32 %v712, %v719
      %v727 = vadd.f32 %v713, %v719
      %v728 = vadd.f32 %v714, %v719
      %v729 = vadd.f32 %v715, %v719
      %v730 = vadd.f32 %v716, %v719
      %v731 = vadd.f32 %v717, %v719
      %v732 = vmax.f32 %v720, 0.0
      %v733 = vmax.f32 %v721, 0.0
      %v734 = vmax.f32 %v722, 0.0
      %v735 = vmax.f32 %v723, 0.0
      %v736 = vmax.f32 %v724, 0.0
      %v737 = vmax.f32 %v725, 0.0
      %v738 = vmax.f32 %v726, 0.0
      %v739 = vmax.f32 %v727, 0.0
      %v740 = vmax.f32 %v728, 0.0
      %v741 = vmax.f32 %v729, 0.0
      %v742 = vmax.f32 %v730, 0.0
      %v743 = vmax.f32 %v731, 0.0
      %744 = vst [vmem:[#allocation3] sm:$0xff] 0.0
      %745 = vst [vmem:[#allocation3 + $0x8] sm:$0xff] 0.0
      %746 = vst [vmem:[#allocation3 + $0x10] sm:$0xff] 0.0
      %747 = vst [vmem:[#allocation3 + $0x18] sm:$0xff] 0.0
      %748 = vst [vmem:[#allocation3 + $0x20] sm:$0xff] 0.0
      %749 = vst [vmem:[#allocation3 + $0x28] sm:$0xff] 0.0
      %750 = vst [vmem:[#allocation3 + $0x30] sm:$0xff] 0.0
      %751 = vst [vmem:[#allocation3 + $0x38] sm:$0xff] 0.0
      %752 = vst [vmem:[#allocation3 + $0x40] sm:$0xff] 0.0
      %753 = vst [vmem:[#allocation3 + $0x48] sm:$0xff] 0.0
      %754 = vst [vmem:[#allocation3 + $0x50] sm:$0xff] 0.0
      %755 = vst [vmem:[#allocation3 + $0x58] sm:$0xff] 0.0
      %756 = vst [vmem:[#allocation3 + $0x1] sm:$0xff] %v732
      %757 = vst [vmem:[#allocation3 + $0x9] sm:$0xff] %v733
      %758 = vst [vmem:[#allocation3 + $0x11] sm:$0xff] %v734
      %759 = vst [vmem:[#allocation3 + $0x19] sm:$0xff] %v735
      %760 = vst [vmem:[#allocation3 + $0x21] sm:$0xff] %v736
      %761 = vst [vmem:[#allocation3 + $0x29] sm:$0xff] %v737
      %762 = vst [vmem:[#allocation3 + $0x31] sm:$0xff] %v738
      %763 = vst [vmem:[#allocation3 + $0x39] sm:$0xff] %v739
      %764 = vst [vmem:[#allocation3 + $0x41] sm:$0xff] %v740
      %765 = vst [vmem:[#allocation3 + $0x49] sm:$0xff] %v741
      %766 = vst [vmem:[#allocation3 + $0x51] sm:$0xff] %v742
      %767 = vst [vmem:[#allocation3 + $0x59] sm:$0x1] %v743
      %v768 = vld [vmem:[#allocation3] ss:$2 sm:$0xff]
      %s769 = scalar_lea.vmem [#allocation3], 16
      %v770 = vld [vmem:[%s769] ss:$2 sm:$0xff]
      %s771 = scalar_lea.vmem [#allocation3], 32
      %v772 = vld [vmem:[%s771] ss:$2 sm:$0xff]
      %s773 = scalar_lea.vmem [#allocation3], 48
      %v774 = vld [vmem:[%s773] ss:$2 sm:$0xff]
      %s775 = scalar_lea.vmem [#allocation3], 64
      %v776 = vld [vmem:[%s775] ss:$2 sm:$0xff]
      %s777 = scalar_lea.vmem [#allocation3], 80
      %v778 = vld [vmem:[%s777] ss:$2 sm:$0x1f]
      %v779 = vpack.c.bf16 %v770, %v768
      %v780 = vpack.c.bf16 %v774, %v772
      %v781 = vpack.c.bf16 %v778, %v776
      %s782 = scalar_lea.vmem %s1, 256
      %v783 = vld [vmem:[%s782] sm:$0xf]
      %v784 = vld [vmem:[%s782 + $0x4] sm:$0xf]
      %v785 = vld [vmem:[%s782 + $0x8] sm:$0xf]
      %v786 = vld [vmem:[%s782 + $0xc] sm:$0xf]
      %v787 = vld [vmem:[%s782 + $0x10] sm:$0xf]
      %v788 = vld [vmem:[%s782 + $0x14] sm:$0xf]
      %v789 = vld [vmem:[%s782 + $0x18] sm:$0xf]
      %v790 = vld [vmem:[%s782 + $0x1c] sm:$0xf]
      %v791 = vld [vmem:[%s782 + $0x20] sm:$0xf]
      %v792 = vld [vmem:[%s782 + $0x24] sm:$0xf]
      %v793 = vld [vmem:[%s782 + $0x28] sm:$0xf]
      %v794 = vld [vmem:[%s782 + $0x2c] sm:$0xf]
      %v795 = vld [vmem:[%s782 + $0x30] sm:$0xf]
      %v796 = vld [vmem:[%s782 + $0x34] sm:$0xf]
      %v797 = vld [vmem:[%s782 + $0x38] sm:$0xf]
      %v798 = vld [vmem:[%s782 + $0x3c] sm:$0xf]
      %s799 = scalar_lea.vmem [#allocation3], 1
      %v800 = vld [vmem:[%s799] ss:$2 sm:$0xff]
      %s801 = scalar_lea.vmem [#allocation3], 17
      %v802 = vld [vmem:[%s801] ss:$2 sm:$0xff]
      %s803 = scalar_lea.vmem [#allocation3], 33
      %v804 = vld [vmem:[%s803] ss:$2 sm:$0xff]
      %s805 = scalar_lea.vmem [#allocation3], 49
      %v806 = vld [vmem:[%s805] ss:$2 sm:$0xff]
      %s807 = scalar_lea.vmem [#allocation3], 65
      %v808 = vld [vmem:[%s807] ss:$2 sm:$0xff]
      %s809 = scalar_lea.vmem [#allocation3], 81
      %v810 = vld [vmem:[%s809] ss:$2 sm:$0x1f]
      %v811 = vpack.c.bf16 %v802, %v800
      %v812 = vpack.c.bf16 %v806, %v804
      %v813 = vpack.c.bf16 %v810, %v808
      %s814 = scalar_lea.vmem %s1, 320
      %v815 = vld [vmem:[%s814] sm:$0xf]
      %v816 = vld [vmem:[%s814 + $0x4] sm:$0xf]
      %v817 = vld [vmem:[%s814 + $0x8] sm:$0xf]
      %v818 = vld [vmem:[%s814 + $0xc] sm:$0xf]
      %v819 = vld [vmem:[%s814 + $0x10] sm:$0xf]
      %v820 = vld [vmem:[%s814 + $0x14] sm:$0xf]
      %v821 = vld [vmem:[%s814 + $0x18] sm:$0xf]
      %v822 = vld [vmem:[%s814 + $0x1c] sm:$0xf]
      %v823 = vld [vmem:[%s814 + $0x20] sm:$0xf]
      %v824 = vld [vmem:[%s814 + $0x24] sm:$0xf]
      %v825 = vld [vmem:[%s814 + $0x28] sm:$0xf]
      %v826 = vld [vmem:[%s814 + $0x2c] sm:$0xf]
      %v827 = vld [vmem:[%s814 + $0x30] sm:$0xf]
      %v828 = vld [vmem:[%s814 + $0x34] sm:$0xf]
      %v829 = vld [vmem:[%s814 + $0x38] sm:$0xf]
      %v830 = vld [vmem:[%s814 + $0x3c] sm:$0xf]
      %v847 = vunpack.c.l.b16 %v815
      %v848 = vunpack.c.l.b16 %v816
      %v849 = vunpack.c.l.b16 %v817
      %v850 = vunpack.c.l.b16 %v818
      %v851 = vunpack.c.l.b16 %v819
      %v852 = vunpack.c.l.b16 %v820
      %v853 = vunpack.c.l.b16 %v821
      %v854 = vunpack.c.l.b16 %v822
      %v855 = vunpack.c.l.b16 %v823
      %v856 = vunpack.c.l.b16 %v824
      %v857 = vunpack.c.l.b16 %v825
      %v858 = vunpack.c.l.b16 %v826
      %v859 = vunpack.c.l.b16 %v827
      %v860 = vunpack.c.l.b16 %v828
      %v861 = vunpack.c.l.b16 %v829
      %v862 = vunpack.c.l.b16 %v830
      %v863 = vpack.c.b16 %v848, %v847
      %v864 = vpack.c.b16 %v850, %v849
      %v865 = vpack.c.b16 %v852, %v851
      %v866 = vpack.c.b16 %v854, %v853
      %v867 = vpack.c.b16 %v856, %v855
      %v868 = vpack.c.b16 %v858, %v857
      %v869 = vpack.c.b16 %v860, %v859
      %v870 = vpack.c.b16 %v862, %v861
      %879 = vmatpush.bf16.msra.mxu0 %v870
      %880 = vmatpush.bf16.msra.mxu0 %v869
      %881 = vmatpush.bf16.msra.mxu0 %v868
      %882 = vmatpush.bf16.msra.mxu0 %v867
      %883 = vmatpush.bf16.msra.mxu0 %v866
      %884 = vmatpush.bf16.msra.mxu0 %v865
      %885 = vmatpush.bf16.msra.mxu0 %v864
      %886 = vmatpush.bf16.msra.mxu0 %v863
      %887 = vmatmul.bf16.gmra.mxu0 %v811
      %v888 = vpop.f32.mrf.mxu0
      %v889 = vadd.f32 0.0, %v888
      %v890 = vpop.f32.mrf.mxu0
      %v891 = vadd.f32 0.0, %v890
      %892 = vmatmul.bf16.gmra.mxu0 %v812
      %v893 = vpop.f32.mrf.mxu0
      %v894 = vadd.f32 0.0, %v893
      %v895 = vpop.f32.mrf.mxu0
      %v896 = vadd.f32 0.0, %v895
      %897 = vmatmul.bf16.gmra.mxu0 %v813
      %v898 = vpop.f32.mrf.mxu0
      %v899 = vadd.f32 0.0, %v898
      %v900 = vpop.f32.mrf.mxu0
      %v901 = vadd.f32 0.0, %v900
      %902 = vdwg.mxu0
      %v919 = vunpack.c.l.b16 %v783
      %v920 = vunpack.c.l.b16 %v784
      %v921 = vunpack.c.l.b16 %v785
      %v922 = vunpack.c.l.b16 %v786
      %v923 = vunpack.c.l.b16 %v787
      %v924 = vunpack.c.l.b16 %v788
      %v925 = vunpack.c.l.b16 %v789
      %v926 = vunpack.c.l.b16 %v790
      %v927 = vunpack.c.l.b16 %v791
      %v928 = vunpack.c.l.b16 %v792
      %v929 = vunpack.c.l.b16 %v793
      %v930 = vunpack.c.l.b16 %v794
      %v931 = vunpack.c.l.b16 %v795
      %v932 = vunpack.c.l.b16 %v796
      %v933 = vunpack.c.l.b16 %v797
      %v934 = vunpack.c.l.b16 %v798
      %v935 = vpack.c.b16 %v920, %v919
      %v936 = vpack.c.b16 %v922, %v921
      %v937 = vpack.c.b16 %v924, %v923
      %v938 = vpack.c.b16 %v926, %v925
      %v939 = vpack.c.b16 %v928, %v927
      %v940 = vpack.c.b16 %v930, %v929
      %v941 = vpack.c.b16 %v932, %v931
      %v942 = vpack.c.b16 %v934, %v933
      %951 = vmatpush.bf16.msra.mxu0 %v942
      %952 = vmatpush.bf16.msra.mxu0 %v941
      %953 = vmatpush.bf16.msra.mxu0 %v940
      %954 = vmatpush.bf16.msra.mxu0 %v939
      %955 = vmatpush.bf16.msra.mxu0 %v938
      %956 = vmatpush.bf16.msra.mxu0 %v937
      %957 = vmatpush.bf16.msra.mxu0 %v936
      %958 = vmatpush.bf16.msra.mxu0 %v935
      %959 = vmatmul.bf16.gmra.mxu0 %v779
      %v960 = vpop.f32.mrf.mxu0
      %v961 = vadd.f32 %v889, %v960
      %v962 = vpop.f32.mrf.mxu0
      %v963 = vadd.f32 %v891, %v962
      %964 = vmatmul.bf16.gmra.mxu0 %v780
      %v965 = vpop.f32.mrf.mxu0
      %v966 = vadd.f32 %v894, %v965
      %v967 = vpop.f32.mrf.mxu0
      %v968 = vadd.f32 %v896, %v967
      %969 = vmatmul.bf16.gmra.mxu0 %v781
      %v970 = vpop.f32.mrf.mxu0
      %v971 = vadd.f32 %v899, %v970
      %v972 = vpop.f32.mrf.mxu0
      %v973 = vadd.f32 %v901, %v972
      %974 = vdwg.mxu0
      %s975 = scalar_lea.vmem [#allocation3], 2
      %v976 = vld [vmem:[%s975] ss:$2 sm:$0xff]
      %s977 = scalar_lea.vmem [#allocation3], 18
      %v978 = vld [vmem:[%s977] ss:$2 sm:$0xff]
      %s979 = scalar_lea.vmem [#allocation3], 34
      %v980 = vld [vmem:[%s979] ss:$2 sm:$0xff]
      %s981 = scalar_lea.vmem [#allocation3], 50
      %v982 = vld [vmem:[%s981] ss:$2 sm:$0xff]
      %s983 = scalar_lea.vmem [#allocation3], 66
      %v984 = vld [vmem:[%s983] ss:$2 sm:$0xff]
      %s985 = scalar_lea.vmem [#allocation3], 82
      %v986 = vld [vmem:[%s985] ss:$2 sm:$0x1f]
      %v987 = vpack.c.bf16 %v978, %v976
      %v988 = vpack.c.bf16 %v982, %v980
      %v989 = vpack.c.bf16 %v986, %v984
      %s990 = scalar_lea.vmem %s1, 384
      %v991 = vld [vmem:[%s990] sm:$0xf]
      %v992 = vld [vmem:[%s990 + $0x4] sm:$0xf]
      %v993 = vld [vmem:[%s990 + $0x8] sm:$0xf]
      %v994 = vld [vmem:[%s990 + $0xc] sm:$0xf]
      %v995 = vld [vmem:[%s990 + $0x10] sm:$0xf]
      %v996 = vld [vmem:[%s990 + $0x14] sm:$0xf]
      %v997 = vld [vmem:[%s990 + $0x18] sm:$0xf]
      %v998 = vld [vmem:[%s990 + $0x1c] sm:$0xf]
      %v999 = vld [vmem:[%s990 + $0x20] sm:$0xf]
      %v1000 = vld [vmem:[%s990 + $0x24] sm:$0xf]
      %v1001 = vld [vmem:[%s990 + $0x28] sm:$0xf]
      %v1002 = vld [vmem:[%s990 + $0x2c] sm:$0xf]
      %v1003 = vld [vmem:[%s990 + $0x30] sm:$0xf]
      %v1004 = vld [vmem:[%s990 + $0x34] sm:$0xf]
      %v1005 = vld [vmem:[%s990 + $0x38] sm:$0xf]
      %v1006 = vld [vmem:[%s990 + $0x3c] sm:$0xf]
      %v1023 = vunpack.c.l.b16 %v991
      %v1024 = vunpack.c.l.b16 %v992
      %v1025 = vunpack.c.l.b16 %v993
      %v1026 = vunpack.c.l.b16 %v994
      %v1027 = vunpack.c.l.b16 %v995
      %v1028 = vunpack.c.l.b16 %v996
      %v1029 = vunpack.c.l.b16 %v997
      %v1030 = vunpack.c.l.b16 %v998
      %v1031 = vunpack.c.l.b16 %v999
      %v1032 = vunpack.c.l.b16 %v1000
      %v1033 = vunpack.c.l.b16 %v1001
      %v1034 = vunpack.c.l.b16 %v1002
      %v1035 = vunpack.c.l.b16 %v1003
      %v1036 = vunpack.c.l.b16 %v1004
      %v1037 = vunpack.c.l.b16 %v1005
      %v1038 = vunpack.c.l.b16 %v1006
      %v1039 = vpack.c.b16 %v1024, %v1023
      %v1040 = vpack.c.b16 %v1026, %v1025
      %v1041 = vpack.c.b16 %v1028, %v1027
      %v1042 = vpack.c.b16 %v1030, %v1029
      %v1043 = vpack.c.b16 %v1032, %v1031
      %v1044 = vpack.c.b16 %v1034, %v1033
      %v1045 = vpack.c.b16 %v1036, %v1035
      %v1046 = vpack.c.b16 %v1038, %v1037
      %1055 = vmatpush.bf16.msra.mxu0 %v1046
      %1056 = vmatpush.bf16.msra.mxu0 %v1045
      %1057 = vmatpush.bf16.msra.mxu0 %v1044
      %1058 = vmatpush.bf16.msra.mxu0 %v1043
      %1059 = vmatpush.bf16.msra.mxu0 %v1042
      %1060 = vmatpush.bf16.msra.mxu0 %v1041
      %1061 = vmatpush.bf16.msra.mxu0 %v1040
      %1062 = vmatpush.bf16.msra.mxu0 %v1039
      %1063 = vmatmul.bf16.gmra.mxu0 %v987
      %v1064 = vpop.f32.mrf.mxu0
      %v1065 = vadd.f32 0.0, %v1064
      %v1066 = vpop.f32.mrf.mxu0
      %v1067 = vadd.f32 0.0, %v1066
      %1068 = vmatmul.bf16.gmra.mxu0 %v988
      %v1069 = vpop.f32.mrf.mxu0
      %v1070 = vadd.f32 0.0, %v1069
      %v1071 = vpop.f32.mrf.mxu0
      %v1072 = vadd.f32 0.0, %v1071
      %1073 = vmatmul.bf16.gmra.mxu0 %v989
      %v1074 = vpop.f32.mrf.mxu0
      %v1075 = vadd.f32 0.0, %v1074
      %v1076 = vpop.f32.mrf.mxu0
      %v1077 = vadd.f32 0.0, %v1076
      %1078 = vdwg.mxu0
      %v1079 = vadd.f32 %v961, %v1065
      %v1080 = vadd.f32 %v963, %v1067
      %v1081 = vadd.f32 %v966, %v1070
      %v1082 = vadd.f32 %v968, %v1072
      %v1083 = vadd.f32 %v971, %v1075
      %v1084 = vadd.f32 %v973, %v1077
      %v1085 = vld [vmem:[%s2 + $0x2] sm:$0x1]
      %v1086 = vperm.slane %v1085, 0
      %v1087 = vmul.f32 %v1079, %v1086
      %v1088 = vmul.f32 %v1080, %v1086
      %v1089 = vmul.f32 %v1081, %v1086
      %v1090 = vmul.f32 %v1082, %v1086
      %v1091 = vmul.f32 %v1083, %v1086
      %v1092 = vmul.f32 %v1084, %v1086
      %v1093 = vld [vmem:[%s2 + $0x3] sm:$0x1]
      %v1094 = vperm.slane %v1093, 0
      %v1095 = vadd.f32 %v1087, %v1094
      %v1096 = vadd.f32 %v1088, %v1094
      %v1097 = vadd.f32 %v1089, %v1094
      %v1098 = vadd.f32 %v1090, %v1094
      %v1099 = vadd.f32 %v1091, %v1094
      %v1100 = vadd.f32 %v1092, %v1094
      %v1101 = vmax.f32 %v1095, 0.0
      %v1102 = vmax.f32 %v1096, 0.0
      %v1103 = vmax.f32 %v1097, 0.0
      %v1104 = vmax.f32 %v1098, 0.0
      %v1105 = vmax.f32 %v1099, 0.0
      %v1106 = vmax.f32 %v1100, 0.0
      %s1107 = scalar_lea.vmem %s1, 640
      %v1108 = vld [vmem:[%s1107] sm:$0xf]
      %v1109 = vld [vmem:[%s1107 + $0x4] sm:$0xf]
      %v1110 = vld [vmem:[%s1107 + $0x8] sm:$0xf]
      %v1111 = vld [vmem:[%s1107 + $0xc] sm:$0xf]
      %v1112 = vld [vmem:[%s1107 + $0x10] sm:$0xf]
      %v1113 = vld [vmem:[%s1107 + $0x14] sm:$0xf]
      %v1114 = vld [vmem:[%s1107 + $0x18] sm:$0xf]
      %v1115 = vld [vmem:[%s1107 + $0x1c] sm:$0xf]
      %v1116 = vld [vmem:[%s1107 + $0x20] sm:$0xf]
      %v1117 = vld [vmem:[%s1107 + $0x24] sm:$0xf]
      %v1118 = vld [vmem:[%s1107 + $0x28] sm:$0xf]
      %v1119 = vld [vmem:[%s1107 + $0x2c] sm:$0xf]
      %v1120 = vld [vmem:[%s1107 + $0x30] sm:$0xf]
      %v1121 = vld [vmem:[%s1107 + $0x34] sm:$0xf]
      %v1122 = vld [vmem:[%s1107 + $0x38] sm:$0xf]
      %v1123 = vld [vmem:[%s1107 + $0x3c] sm:$0xf]
      %v1124 = vld [vmem:[%s2 + $0x6] sm:$0x1]
      %v1125 = vperm.slane %v1124, 0
      %v1142 = vunpack.c.l.b16 %v1108
      %v1143 = vunpack.c.l.b16 %v1109
      %v1144 = vunpack.c.l.b16 %v1110
      %v1145 = vunpack.c.l.b16 %v1111
      %v1146 = vunpack.c.l.b16 %v1112
      %v1147 = vunpack.c.l.b16 %v1113
      %v1148 = vunpack.c.l.b16 %v1114
      %v1149 = vunpack.c.l.b16 %v1115
      %v1150 = vunpack.c.l.b16 %v1116
      %v1151 = vunpack.c.l.b16 %v1117
      %v1152 = vunpack.c.l.b16 %v1118
      %v1153 = vunpack.c.l.b16 %v1119
      %v1154 = vunpack.c.l.b16 %v1120
      %v1155 = vunpack.c.l.b16 %v1121
      %v1156 = vunpack.c.l.b16 %v1122
      %v1157 = vunpack.c.l.b16 %v1123
      %v1158 = vpack.c.b16 %v1143, %v1142
      %v1159 = vpack.c.b16 %v1145, %v1144
      %v1160 = vpack.c.b16 %v1147, %v1146
      %v1161 = vpack.c.b16 %v1149, %v1148
      %v1162 = vpack.c.b16 %v1151, %v1150
      %v1163 = vpack.c.b16 %v1153, %v1152
      %v1164 = vpack.c.b16 %v1155, %v1154
      %v1165 = vpack.c.b16 %v1157, %v1156
      %1174 = vmatpush.bf16.msra.mxu0 %v1165
      %1175 = vmatpush.bf16.msra.mxu0 %v1164
      %1176 = vmatpush.bf16.msra.mxu0 %v1163
      %1177 = vmatpush.bf16.msra.mxu0 %v1162
      %1178 = vmatpush.bf16.msra.mxu0 %v1161
      %1179 = vmatpush.bf16.msra.mxu0 %v1160
      %1180 = vmatpush.bf16.msra.mxu0 %v1159
      %1181 = vmatpush.bf16.msra.mxu0 %v1158
      %1182 = vmatmul.bf16.gmra.mxu0 %v811
      %v1183 = vpop.f32.mrf.mxu0
      %v1184 = vadd.f32 %v1125, %v1183
      %v1185 = vpop.f32.mrf.mxu0
      %v1186 = vadd.f32 %v1125, %v1185
      %1187 = vmatmul.bf16.gmra.mxu0 %v812
      %v1188 = vpop.f32.mrf.mxu0
      %v1189 = vadd.f32 %v1125, %v1188
      %v1190 = vpop.f32.mrf.mxu0
      %v1191 = vadd.f32 %v1125, %v1190
      %1192 = vmatmul.bf16.gmra.mxu0 %v813
      %v1193 = vpop.f32.mrf.mxu0
      %v1194 = vadd.f32 %v1125, %v1193
      %v1195 = vpop.f32.mrf.mxu0
      %v1196 = vadd.f32 %v1125, %v1195
      %1197 = vdwg.mxu0
      %1198 = vst [vmem:[#allocation2] sm:$0xff] 0.0
      %1199 = vst [vmem:[#allocation2 + $0x8] sm:$0xff] 0.0
      %1200 = vst [vmem:[#allocation2 + $0x10] sm:$0xff] 0.0
      %1201 = vst [vmem:[#allocation2 + $0x18] sm:$0xff] 0.0
      %1202 = vst [vmem:[#allocation2 + $0x20] sm:$0xff] 0.0
      %1203 = vst [vmem:[#allocation2 + $0x28] sm:$0xff] 0.0
      %1204 = vst [vmem:[#allocation2 + $0x30] sm:$0xff] 0.0
      %1205 = vst [vmem:[#allocation2 + $0x38] sm:$0xff] 0.0
      %1206 = vst [vmem:[#allocation2 + $0x40] sm:$0xff] 0.0
      %1207 = vst [vmem:[#allocation2 + $0x48] sm:$0xff] 0.0
      %1208 = vst [vmem:[#allocation2 + $0x50] sm:$0xff] 0.0
      %1209 = vst [vmem:[#allocation2 + $0x58] sm:$0xff] 0.0
      %1210 = vst [vmem:[#allocation2 + $0x1] sm:$0xff] %v1101
      %1211 = vst [vmem:[#allocation2 + $0x9] sm:$0xff] %v1102
      %1212 = vst [vmem:[#allocation2 + $0x11] sm:$0xff] %v1103
      %1213 = vst [vmem:[#allocation2 + $0x19] sm:$0xff] %v1104
      %1214 = vst [vmem:[#allocation2 + $0x21] sm:$0xff] %v1105
      %1215 = vst [vmem:[#allocation2 + $0x29] sm:$0x1f] %v1106
      %v1216 = vld [vmem:[#allocation2] sm:$0xff]
      %v1217 = vld [vmem:[#allocation2 + $0x8] sm:$0xff]
      %v1218 = vld [vmem:[#allocation2 + $0x10] sm:$0xff]
      %v1219 = vld [vmem:[#allocation2 + $0x18] sm:$0xff]
      %v1220 = vld [vmem:[#allocation2 + $0x20] sm:$0xff]
      %v1221 = vld [vmem:[#allocation2 + $0x28] sm:$0x1f]
      %v1222 = vpack.c.bf16 %v1217, %v1216
      %v1223 = vpack.c.bf16 %v1219, %v1218
      %v1224 = vpack.c.bf16 %v1221, %v1220
      %s1225 = scalar_lea.vmem %s1, 448
      %v1226 = vld [vmem:[%s1225] sm:$0xf]
      %v1227 = vld [vmem:[%s1225 + $0x4] sm:$0xf]
      %v1228 = vld [vmem:[%s1225 + $0x8] sm:$0xf]
      %v1229 = vld [vmem:[%s1225 + $0xc] sm:$0xf]
      %v1230 = vld [vmem:[%s1225 + $0x10] sm:$0xf]
      %v1231 = vld [vmem:[%s1225 + $0x14] sm:$0xf]
      %v1232 = vld [vmem:[%s1225 + $0x18] sm:$0xf]
      %v1233 = vld [vmem:[%s1225 + $0x1c] sm:$0xf]
      %v1234 = vld [vmem:[%s1225 + $0x20] sm:$0xf]
      %v1235 = vld [vmem:[%s1225 + $0x24] sm:$0xf]
      %v1236 = vld [vmem:[%s1225 + $0x28] sm:$0xf]
      %v1237 = vld [vmem:[%s1225 + $0x2c] sm:$0xf]
      %v1238 = vld [vmem:[%s1225 + $0x30] sm:$0xf]
      %v1239 = vld [vmem:[%s1225 + $0x34] sm:$0xf]
      %v1240 = vld [vmem:[%s1225 + $0x38] sm:$0xf]
      %v1241 = vld [vmem:[%s1225 + $0x3c] sm:$0xf]
      %v1242 = vld [vmem:[#allocation2 + $0x1] sm:$0xff]
      %v1243 = vld [vmem:[#allocation2 + $0x9] sm:$0xff]
      %v1244 = vld [vmem:[#allocation2 + $0x11] sm:$0xff]
      %v1245 = vld [vmem:[#allocation2 + $0x19] sm:$0xff]
      %v1246 = vld [vmem:[#allocation2 + $0x21] sm:$0xff]
      %v1247 = vld [vmem:[#allocation2 + $0x29] sm:$0x1f]
      %v1248 = vpack.c.bf16 %v1243, %v1242
      %v1249 = vpack.c.bf16 %v1245, %v1244
      %v1250 = vpack.c.bf16 %v1247, %v1246
      %s1251 = scalar_lea.vmem %s1, 512
      %v1252 = vld [vmem:[%s1251] sm:$0xf]
      %v1253 = vld [vmem:[%s1251 + $0x4] sm:$0xf]
      %v1254 = vld [vmem:[%s1251 + $0x8] sm:$0xf]
      %v1255 = vld [vmem:[%s1251 + $0xc] sm:$0xf]
      %v1256 = vld [vmem:[%s1251 + $0x10] sm:$0xf]
      %v1257 = vld [vmem:[%s1251 + $0x14] sm:$0xf]
      %v1258 = vld [vmem:[%s1251 + $0x18] sm:$0xf]
      %v1259 = vld [vmem:[%s1251 + $0x1c] sm:$0xf]
      %v1260 = vld [vmem:[%s1251 + $0x20] sm:$0xf]
      %v1261 = vld [vmem:[%s1251 + $0x24] sm:$0xf]
      %v1262 = vld [vmem:[%s1251 + $0x28] sm:$0xf]
      %v1263 = vld [vmem:[%s1251 + $0x2c] sm:$0xf]
      %v1264 = vld [vmem:[%s1251 + $0x30] sm:$0xf]
      %v1265 = vld [vmem:[%s1251 + $0x34] sm:$0xf]
      %v1266 = vld [vmem:[%s1251 + $0x38] sm:$0xf]
      %v1267 = vld [vmem:[%s1251 + $0x3c] sm:$0xf]
      %v1284 = vunpack.c.l.b16 %v1252
      %v1285 = vunpack.c.l.b16 %v1253
      %v1286 = vunpack.c.l.b16 %v1254
      %v1287 = vunpack.c.l.b16 %v1255
      %v1288 = vunpack.c.l.b16 %v1256
      %v1289 = vunpack.c.l.b16 %v1257
      %v1290 = vunpack.c.l.b16 %v1258
      %v1291 = vunpack.c.l.b16 %v1259
      %v1292 = vunpack.c.l.b16 %v1260
      %v1293 = vunpack.c.l.b16 %v1261
      %v1294 = vunpack.c.l.b16 %v1262
      %v1295 = vunpack.c.l.b16 %v1263
      %v1296 = vunpack.c.l.b16 %v1264
      %v1297 = vunpack.c.l.b16 %v1265
      %v1298 = vunpack.c.l.b16 %v1266
      %v1299 = vunpack.c.l.b16 %v1267
      %v1300 = vpack.c.b16 %v1285, %v1284
      %v1301 = vpack.c.b16 %v1287, %v1286
      %v1302 = vpack.c.b16 %v1289, %v1288
      %v1303 = vpack.c.b16 %v1291, %v1290
      %v1304 = vpack.c.b16 %v1293, %v1292
      %v1305 = vpack.c.b16 %v1295, %v1294
      %v1306 = vpack.c.b16 %v1297, %v1296
      %v1307 = vpack.c.b16 %v1299, %v1298
      %1316 = vmatpush.bf16.msra.mxu0 %v1307
      %1317 = vmatpush.bf16.msra.mxu0 %v1306
      %1318 = vmatpush.bf16.msra.mxu0 %v1305
      %1319 = vmatpush.bf16.msra.mxu0 %v1304
      %1320 = vmatpush.bf16.msra.mxu0 %v1303
      %1321 = vmatpush.bf16.msra.mxu0 %v1302
      %1322 = vmatpush.bf16.msra.mxu0 %v1301
      %1323 = vmatpush.bf16.msra.mxu0 %v1300
      %1324 = vmatmul.bf16.gmra.mxu0 %v1248
      %v1325 = vpop.f32.mrf.mxu0
      %v1326 = vadd.f32 0.0, %v1325
      %v1327 = vpop.f32.mrf.mxu0
      %v1328 = vadd.f32 0.0, %v1327
      %1329 = vmatmul.bf16.gmra.mxu0 %v1249
      %v1330 = vpop.f32.mrf.mxu0
      %v1331 = vadd.f32 0.0, %v1330
      %v1332 = vpop.f32.mrf.mxu0
      %v1333 = vadd.f32 0.0, %v1332
      %1334 = vmatmul.bf16.gmra.mxu0 %v1250
      %v1335 = vpop.f32.mrf.mxu0
      %v1336 = vadd.f32 0.0, %v1335
      %v1337 = vpop.f32.mrf.mxu0
      %v1338 = vadd.f32 0.0, %v1337
      %1339 = vdwg.mxu0
      %v1356 = vunpack.c.l.b16 %v1226
      %v1357 = vunpack.c.l.b16 %v1227
      %v1358 = vunpack.c.l.b16 %v1228
      %v1359 = vunpack.c.l.b16 %v1229
      %v1360 = vunpack.c.l.b16 %v1230
      %v1361 = vunpack.c.l.b16 %v1231
      %v1362 = vunpack.c.l.b16 %v1232
      %v1363 = vunpack.c.l.b16 %v1233
      %v1364 = vunpack.c.l.b16 %v1234
      %v1365 = vunpack.c.l.b16 %v1235
      %v1366 = vunpack.c.l.b16 %v1236
      %v1367 = vunpack.c.l.b16 %v1237
      %v1368 = vunpack.c.l.b16 %v1238
      %v1369 = vunpack.c.l.b16 %v1239
      %v1370 = vunpack.c.l.b16 %v1240
      %v1371 = vunpack.c.l.b16 %v1241
      %v1372 = vpack.c.b16 %v1357, %v1356
      %v1373 = vpack.c.b16 %v1359, %v1358
      %v1374 = vpack.c.b16 %v1361, %v1360
      %v1375 = vpack.c.b16 %v1363, %v1362
      %v1376 = vpack.c.b16 %v1365, %v1364
      %v1377 = vpack.c.b16 %v1367, %v1366
      %v1378 = vpack.c.b16 %v1369, %v1368
      %v1379 = vpack.c.b16 %v1371, %v1370
      %1388 = vmatpush.bf16.msra.mxu0 %v1379
      %1389 = vmatpush.bf16.msra.mxu0 %v1378
      %1390 = vmatpush.bf16.msra.mxu0 %v1377
      %1391 = vmatpush.bf16.msra.mxu0 %v1376
      %1392 = vmatpush.bf16.msra.mxu0 %v1375
      %1393 = vmatpush.bf16.msra.mxu0 %v1374
      %1394 = vmatpush.bf16.msra.mxu0 %v1373
      %1395 = vmatpush.bf16.msra.mxu0 %v1372
      %1396 = vmatmul.bf16.gmra.mxu0 %v1222
      %v1397 = vpop.f32.mrf.mxu0
      %v1398 = vadd.f32 %v1326, %v1397
      %v1399 = vpop.f32.mrf.mxu0
      %v1400 = vadd.f32 %v1328, %v1399
      %1401 = vmatmul.bf16.gmra.mxu0 %v1223
      %v1402 = vpop.f32.mrf.mxu0
      %v1403 = vadd.f32 %v1331, %v1402
      %v1404 = vpop.f32.mrf.mxu0
      %v1405 = vadd.f32 %v1333, %v1404
      %1406 = vmatmul.bf16.gmra.mxu0 %v1224
      %v1407 = vpop.f32.mrf.mxu0
      %v1408 = vadd.f32 %v1336, %v1407
      %v1409 = vpop.f32.mrf.mxu0
      %v1410 = vadd.f32 %v1338, %v1409
      %1411 = vdwg.mxu0
      %v1412 = vld [vmem:[#allocation2 + $0x2] sm:$0xff]
      %v1413 = vld [vmem:[#allocation2 + $0xa] sm:$0xff]
      %v1414 = vld [vmem:[#allocation2 + $0x12] sm:$0xff]
      %v1415 = vld [vmem:[#allocation2 + $0x1a] sm:$0xff]
      %v1416 = vld [vmem:[#allocation2 + $0x22] sm:$0xff]
      %v1417 = vld [vmem:[#allocation2 + $0x2a] sm:$0x1f]
      %v1418 = vpack.c.bf16 %v1413, %v1412
      %v1419 = vpack.c.bf16 %v1415, %v1414
      %v1420 = vpack.c.bf16 %v1417, %v1416
      %s1421 = scalar_lea.vmem %s1, 576
      %v1422 = vld [vmem:[%s1421] sm:$0xf]
      %v1423 = vld [vmem:[%s1421 + $0x4] sm:$0xf]
      %v1424 = vld [vmem:[%s1421 + $0x8] sm:$0xf]
      %v1425 = vld [vmem:[%s1421 + $0xc] sm:$0xf]
      %v1426 = vld [vmem:[%s1421 + $0x10] sm:$0xf]
      %v1427 = vld [vmem:[%s1421 + $0x14] sm:$0xf]
      %v1428 = vld [vmem:[%s1421 + $0x18] sm:$0xf]
      %v1429 = vld [vmem:[%s1421 + $0x1c] sm:$0xf]
      %v1430 = vld [vmem:[%s1421 + $0x20] sm:$0xf]
      %v1431 = vld [vmem:[%s1421 + $0x24] sm:$0xf]
      %v1432 = vld [vmem:[%s1421 + $0x28] sm:$0xf]
      %v1433 = vld [vmem:[%s1421 + $0x2c] sm:$0xf]
      %v1434 = vld [vmem:[%s1421 + $0x30] sm:$0xf]
      %v1435 = vld [vmem:[%s1421 + $0x34] sm:$0xf]
      %v1436 = vld [vmem:[%s1421 + $0x38] sm:$0xf]
      %v1437 = vld [vmem:[%s1421 + $0x3c] sm:$0xf]
      %v1454 = vunpack.c.l.b16 %v1422
      %v1455 = vunpack.c.l.b16 %v1423
      %v1456 = vunpack.c.l.b16 %v1424
      %v1457 = vunpack.c.l.b16 %v1425
      %v1458 = vunpack.c.l.b16 %v1426
      %v1459 = vunpack.c.l.b16 %v1427
      %v1460 = vunpack.c.l.b16 %v1428
      %v1461 = vunpack.c.l.b16 %v1429
      %v1462 = vunpack.c.l.b16 %v1430
      %v1463 = vunpack.c.l.b16 %v1431
      %v1464 = vunpack.c.l.b16 %v1432
      %v1465 = vunpack.c.l.b16 %v1433
      %v1466 = vunpack.c.l.b16 %v1434
      %v1467 = vunpack.c.l.b16 %v1435
      %v1468 = vunpack.c.l.b16 %v1436
      %v1469 = vunpack.c.l.b16 %v1437
      %v1470 = vpack.c.b16 %v1455, %v1454
      %v1471 = vpack.c.b16 %v1457, %v1456
      %v1472 = vpack.c.b16 %v1459, %v1458
      %v1473 = vpack.c.b16 %v1461, %v1460
      %v1474 = vpack.c.b16 %v1463, %v1462
      %v1475 = vpack.c.b16 %v1465, %v1464
      %v1476 = vpack.c.b16 %v1467, %v1466
      %v1477 = vpack.c.b16 %v1469, %v1468
      %1486 = vmatpush.bf16.msra.mxu0 %v1477
      %1487 = vmatpush.bf16.msra.mxu0 %v1476
      %1488 = vmatpush.bf16.msra.mxu0 %v1475
      %1489 = vmatpush.bf16.msra.mxu0 %v1474
      %1490 = vmatpush.bf16.msra.mxu0 %v1473
      %1491 = vmatpush.bf16.msra.mxu0 %v1472
      %1492 = vmatpush.bf16.msra.mxu0 %v1471
      %1493 = vmatpush.bf16.msra.mxu0 %v1470
      %1494 = vmatmul.bf16.gmra.mxu0 %v1418
      %v1495 = vpop.f32.mrf.mxu0
      %v1496 = vadd.f32 0.0, %v1495
      %v1497 = vpop.f32.mrf.mxu0
      %v1498 = vadd.f32 0.0, %v1497
      %1499 = vmatmul.bf16.gmra.mxu0 %v1419
      %v1500 = vpop.f32.mrf.mxu0
      %v1501 = vadd.f32 0.0, %v1500
      %v1502 = vpop.f32.mrf.mxu0
      %v1503 = vadd.f32 0.0, %v1502
      %1504 = vmatmul.bf16.gmra.mxu0 %v1420
      %v1505 = vpop.f32.mrf.mxu0
      %v1506 = vadd.f32 0.0, %v1505
      %v1507 = vpop.f32.mrf.mxu0
      %v1508 = vadd.f32 0.0, %v1507
      %1509 = vdwg.mxu0
      %v1510 = vadd.f32 %v1398, %v1496
      %v1511 = vadd.f32 %v1400, %v1498
      %v1512 = vadd.f32 %v1403, %v1501
      %v1513 = vadd.f32 %v1405, %v1503
      %v1514 = vadd.f32 %v1408, %v1506
      %v1515 = vadd.f32 %v1410, %v1508
      %v1516 = vadd.f32 %v1510, %v1184
      %v1517 = vadd.f32 %v1511, %v1186
      %v1518 = vadd.f32 %v1512, %v1189
      %v1519 = vadd.f32 %v1513, %v1191
      %v1520 = vadd.f32 %v1514, %v1194
      %v1521 = vadd.f32 %v1515, %v1196
      %v1522 = vld [vmem:[%s2 + $0x4] sm:$0x1]
      %v1523 = vperm.slane %v1522, 0
      %v1524 = vmul.f32 %v1516, %v1523
      %v1525 = vmul.f32 %v1517, %v1523
      %v1526 = vmul.f32 %v1518, %v1523
      %v1527 = vmul.f32 %v1519, %v1523
      %v1528 = vmul.f32 %v1520, %v1523
      %v1529 = vmul.f32 %v1521, %v1523
      %v1530 = vld [vmem:[%s2 + $0x5] sm:$0x1]
      %v1531 = vperm.slane %v1530, 0
      %v1532 = vadd.f32 %v1524, %v1531
      %v1533 = vadd.f32 %v1525, %v1531
      %v1534 = vadd.f32 %v1526, %v1531
      %v1535 = vadd.f32 %v1527, %v1531
      %v1536 = vadd.f32 %v1528, %v1531
      %v1537 = vadd.f32 %v1529, %v1531
      %v1538 = vmax.f32 %v1532, 0.0
      %v1539 = vmax.f32 %v1533, 0.0
      %v1540 = vmax.f32 %v1534, 0.0
      %v1541 = vmax.f32 %v1535, 0.0
      %v1542 = vmax.f32 %v1536, 0.0
      %v1543 = vmax.f32 %v1537, 0.0
      %1544 = vst [vmem:[#allocation3] sm:$0xff] 0.0
      %1545 = vst [vmem:[#allocation3 + $0x8] sm:$0xff] 0.0
      %1546 = vst [vmem:[#allocation3 + $0x10] sm:$0xff] 0.0
      %1547 = vst [vmem:[#allocation3 + $0x18] sm:$0xff] 0.0
      %1548 = vst [vmem:[#allocation3 + $0x20] sm:$0xff] 0.0
      %1549 = vst [vmem:[#allocation3 + $0x28] sm:$0xff] 0.0
      %1550 = vst [vmem:[#allocation3 + $0x30] sm:$0xff] 0.0
      %1551 = vst [vmem:[#allocation3 + $0x38] sm:$0xff] 0.0
      %1552 = vst [vmem:[#allocation3 + $0x40] sm:$0xff] 0.0
      %1553 = vst [vmem:[#allocation3 + $0x48] sm:$0xff] 0.0
      %1554 = vst [vmem:[#allocation3 + $0x50] sm:$0xff] 0.0
      %1555 = vst [vmem:[#allocation3 + $0x58] sm:$0xff] 0.0
      %1556 = vst [vmem:[#allocation3 + $0x1] sm:$0xff] %v1538
      %1557 = vst [vmem:[#allocation3 + $0x9] sm:$0xff] %v1539
      %1558 = vst [vmem:[#allocation3 + $0x11] sm:$0xff] %v1540
      %1559 = vst [vmem:[#allocation3 + $0x19] sm:$0xff] %v1541
      %1560 = vst [vmem:[#allocation3 + $0x21] sm:$0xff] %v1542
      %1561 = vst [vmem:[#allocation3 + $0x29] sm:$0x1f] %v1543
      %v1562 = vld [vmem:[#allocation3] ss:$2 sm:$0xff]
      %v1563 = vld [vmem:[%s769] ss:$2 sm:$0xff]
      %v1564 = vld [vmem:[%s771] ss:$2 sm:$0x7f]
      %v1565 = vpack.c.bf16 %v1563, %v1562
      %v1566 = vpack.c.bf16 %v1564, %v1564
      %s1567 = scalar_lea.vmem %s1, 704
      %v1568 = vld [vmem:[%s1567] sm:$0xf]
      %v1569 = vld [vmem:[%s1567 + $0x4] sm:$0xf]
      %v1570 = vld [vmem:[%s1567 + $0x8] sm:$0xf]
      %v1571 = vld [vmem:[%s1567 + $0xc] sm:$0xf]
      %v1572 = vld [vmem:[%s1567 + $0x10] sm:$0xf]
      %v1573 = vld [vmem:[%s1567 + $0x14] sm:$0xf]
      %v1574 = vld [vmem:[%s1567 + $0x18] sm:$0xf]
      %v1575 = vld [vmem:[%s1567 + $0x1c] sm:$0xf]
      %v1576 = vld [vmem:[%s1567 + $0x20] sm:$0xf]
      %v1577 = vld [vmem:[%s1567 + $0x24] sm:$0xf]
      %v1578 = vld [vmem:[%s1567 + $0x28] sm:$0xf]
      %v1579 = vld [vmem:[%s1567 + $0x2c] sm:$0xf]
      %v1580 = vld [vmem:[%s1567 + $0x30] sm:$0xf]
      %v1581 = vld [vmem:[%s1567 + $0x34] sm:$0xf]
      %v1582 = vld [vmem:[%s1567 + $0x38] sm:$0xf]
      %v1583 = vld [vmem:[%s1567 + $0x3c] sm:$0xf]
      %v1584 = vld [vmem:[%s799] ss:$2 sm:$0xff]
      %v1585 = vld [vmem:[%s801] ss:$2 sm:$0xff]
      %v1586 = vld [vmem:[%s803] ss:$2 sm:$0x7f]
      %v1587 = vpack.c.bf16 %v1585, %v1584
      %v1588 = vpack.c.bf16 %v1586, %v1586
      %s1589 = scalar_lea.vmem %s1, 768
      %v1590 = vld [vmem:[%s1589] sm:$0xf]
      %v1591 = vld [vmem:[%s1589 + $0x4] sm:$0xf]
      %v1592 = vld [vmem:[%s1589 + $0x8] sm:$0xf]
      %v1593 = vld [vmem:[%s1589 + $0xc] sm:$0xf]
      %v1594 = vld [vmem:[%s1589 + $0x10] sm:$0xf]
      %v1595 = vld [vmem:[%s1589 + $0x14] sm:$0xf]
      %v1596 = vld [vmem:[%s1589 + $0x18] sm:$0xf]
      %v1597 = vld [vmem:[%s1589 + $0x1c] sm:$0xf]
      %v1598 = vld [vmem:[%s1589 + $0x20] sm:$0xf]
      %v1599 = vld [vmem:[%s1589 + $0x24] sm:$0xf]
      %v1600 = vld [vmem:[%s1589 + $0x28] sm:$0xf]
      %v1601 = vld [vmem:[%s1589 + $0x2c] sm:$0xf]
      %v1602 = vld [vmem:[%s1589 + $0x30] sm:$0xf]
      %v1603 = vld [vmem:[%s1589 + $0x34] sm:$0xf]
      %v1604 = vld [vmem:[%s1589 + $0x38] sm:$0xf]
      %v1605 = vld [vmem:[%s1589 + $0x3c] sm:$0xf]
      %v1622 = vunpack.c.l.b16 %v1590
      %v1623 = vunpack.c.l.b16 %v1591
      %v1624 = vunpack.c.l.b16 %v1592
      %v1625 = vunpack.c.l.b16 %v1593
      %v1626 = vunpack.c.l.b16 %v1594
      %v1627 = vunpack.c.l.b16 %v1595
      %v1628 = vunpack.c.l.b16 %v1596
      %v1629 = vunpack.c.l.b16 %v1597
      %v1630 = vunpack.c.l.b16 %v1598
      %v1631 = vunpack.c.l.b16 %v1599
      %v1632 = vunpack.c.l.b16 %v1600
      %v1633 = vunpack.c.l.b16 %v1601
      %v1634 = vunpack.c.l.b16 %v1602
      %v1635 = vunpack.c.l.b16 %v1603
      %v1636 = vunpack.c.l.b16 %v1604
      %v1637 = vunpack.c.l.b16 %v1605
      %v1638 = vpack.c.b16 %v1623, %v1622
      %v1639 = vpack.c.b16 %v1625, %v1624
      %v1640 = vpack.c.b16 %v1627, %v1626
      %v1641 = vpack.c.b16 %v1629, %v1628
      %v1642 = vpack.c.b16 %v1631, %v1630
      %v1643 = vpack.c.b16 %v1633, %v1632
      %v1644 = vpack.c.b16 %v1635, %v1634
      %v1645 = vpack.c.b16 %v1637, %v1636
      %1654 = vmatpush.bf16.msra.mxu0 %v1645
      %1655 = vmatpush.bf16.msra.mxu0 %v1644
      %1656 = vmatpush.bf16.msra.mxu0 %v1643
      %1657 = vmatpush.bf16.msra.mxu0 %v1642
      %1658 = vmatpush.bf16.msra.mxu0 %v1641
      %1659 = vmatpush.bf16.msra.mxu0 %v1640
      %1660 = vmatpush.bf16.msra.mxu0 %v1639
      %1661 = vmatpush.bf16.msra.mxu0 %v1638
      %1662 = vmatmul.bf16.gmra.mxu0 %v1587
      %v1663 = vpop.f32.mrf.mxu0
      %v1664 = vadd.f32 0.0, %v1663
      %v1665 = vpop.f32.mrf.mxu0
      %v1666 = vadd.f32 0.0, %v1665
      %1667 = vmatmul.bf16.gmra.mxu0 %v1588
      %v1668 = vpop.f32.mrf.mxu0
      %v1669 = vadd.f32 0.0, %v1668
      %v1670 = vpop.f32.mrf.mxu0
      %1671 = vdwg.mxu0
      %v1688 = vunpack.c.l.b16 %v1568
      %v1689 = vunpack.c.l.b16 %v1569
      %v1690 = vunpack.c.l.b16 %v1570
      %v1691 = vunpack.c.l.b16 %v1571
      %v1692 = vunpack.c.l.b16 %v1572
      %v1693 = vunpack.c.l.b16 %v1573
      %v1694 = vunpack.c.l.b16 %v1574
      %v1695 = vunpack.c.l.b16 %v1575
      %v1696 = vunpack.c.l.b16 %v1576
      %v1697 = vunpack.c.l.b16 %v1577
      %v1698 = vunpack.c.l.b16 %v1578
      %v1699 = vunpack.c.l.b16 %v1579
      %v1700 = vunpack.c.l.b16 %v1580
      %v1701 = vunpack.c.l.b16 %v1581
      %v1702 = vunpack.c.l.b16 %v1582
      %v1703 = vunpack.c.l.b16 %v1583
      %v1704 = vpack.c.b16 %v1689, %v1688
      %v1705 = vpack.c.b16 %v1691, %v1690
      %v1706 = vpack.c.b16 %v1693, %v1692
      %v1707 = vpack.c.b16 %v1695, %v1694
      %v1708 = vpack.c.b16 %v1697, %v1696
      %v1709 = vpack.c.b16 %v1699, %v1698
      %v1710 = vpack.c.b16 %v1701, %v1700
      %v1711 = vpack.c.b16 %v1703, %v1702
      %1720 = vmatpush.bf16.msra.mxu0 %v1711
      %1721 = vmatpush.bf16.msra.mxu0 %v1710
      %1722 = vmatpush.bf16.msra.mxu0 %v1709
      %1723 = vmatpush.bf16.msra.mxu0 %v1708
      %1724 = vmatpush.bf16.msra.mxu0 %v1707
      %1725 = vmatpush.bf16.msra.mxu0 %v1706
      %1726 = vmatpush.bf16.msra.mxu0 %v1705
      %1727 = vmatpush.bf16.msra.mxu0 %v1704
      %1728 = vmatmul.bf16.gmra.mxu0 %v1565
      %v1729 = vpop.f32.mrf.mxu0
      %v1730 = vadd.f32 %v1664, %v1729
      %v1731 = vpop.f32.mrf.mxu0
      %v1732 = vadd.f32 %v1666, %v1731
      %1733 = vmatmul.bf16.gmra.mxu0 %v1566
      %v1734 = vpop.f32.mrf.mxu0
      %v1735 = vadd.f32 %v1669, %v1734
      %v1736 = vpop.f32.mrf.mxu0
      %1737 = vdwg.mxu0
      %v1738 = vld [vmem:[%s975] ss:$2 sm:$0xff]
      %v1739 = vld [vmem:[%s977] ss:$2 sm:$0xff]
      %v1740 = vld [vmem:[%s979] ss:$2 sm:$0x7f]
      %v1741 = vpack.c.bf16 %v1739, %v1738
      %v1742 = vpack.c.bf16 %v1740, %v1740
      %s1743 = scalar_lea.vmem %s1, 832
      %v1744 = vld [vmem:[%s1743] sm:$0xf]
      %v1745 = vld [vmem:[%s1743 + $0x4] sm:$0xf]
      %v1746 = vld [vmem:[%s1743 + $0x8] sm:$0xf]
      %v1747 = vld [vmem:[%s1743 + $0xc] sm:$0xf]
      %v1748 = vld [vmem:[%s1743 + $0x10] sm:$0xf]
      %v1749 = vld [vmem:[%s1743 + $0x14] sm:$0xf]
      %v1750 = vld [vmem:[%s1743 + $0x18] sm:$0xf]
      %v1751 = vld [vmem:[%s1743 + $0x1c] sm:$0xf]
      %v1752 = vld [vmem:[%s1743 + $0x20] sm:$0xf]
      %v1753 = vld [vmem:[%s1743 + $0x24] sm:$0xf]
      %v1754 = vld [vmem:[%s1743 + $0x28] sm:$0xf]
      %v1755 = vld [vmem:[%s1743 + $0x2c] sm:$0xf]
      %v1756 = vld [vmem:[%s1743 + $0x30] sm:$0xf]
      %v1757 = vld [vmem:[%s1743 + $0x34] sm:$0xf]
      %v1758 = vld [vmem:[%s1743 + $0x38] sm:$0xf]
      %v1759 = vld [vmem:[%s1743 + $0x3c] sm:$0xf]
      %v1776 = vunpack.c.l.b16 %v1744
      %v1777 = vunpack.c.l.b16 %v1745
      %v1778 = vunpack.c.l.b16 %v1746
      %v1779 = vunpack.c.l.b16 %v1747
      %v1780 = vunpack.c.l.b16 %v1748
      %v1781 = vunpack.c.l.b16 %v1749
      %v1782 = vunpack.c.l.b16 %v1750
      %v1783 = vunpack.c.l.b16 %v1751
      %v1784 = vunpack.c.l.b16 %v1752
      %v1785 = vunpack.c.l.b16 %v1753
      %v1786 = vunpack.c.l.b16 %v1754
      %v1787 = vunpack.c.l.b16 %v1755
      %v1788 = vunpack.c.l.b16 %v1756
      %v1789 = vunpack.c.l.b16 %v1757
      %v1790 = vunpack.c.l.b16 %v1758
      %v1791 = vunpack.c.l.b16 %v1759
      %v1792 = vpack.c.b16 %v1777, %v1776
      %v1793 = vpack.c.b16 %v1779, %v1778
      %v1794 = vpack.c.b16 %v1781, %v1780
      %v1795 = vpack.c.b16 %v1783, %v1782
      %v1796 = vpack.c.b16 %v1785, %v1784
      %v1797 = vpack.c.b16 %v1787, %v1786
      %v1798 = vpack.c.b16 %v1789, %v1788
      %v1799 = vpack.c.b16 %v1791, %v1790
      %1808 = vmatpush.bf16.msra.mxu0 %v1799
      %1809 = vmatpush.bf16.msra.mxu0 %v1798
      %1810 = vmatpush.bf16.msra.mxu0 %v1797
      %1811 = vmatpush.bf16.msra.mxu0 %v1796
      %1812 = vmatpush.bf16.msra.mxu0 %v1795
      %1813 = vmatpush.bf16.msra.mxu0 %v1794
      %1814 = vmatpush.bf16.msra.mxu0 %v1793
      %1815 = vmatpush.bf16.msra.mxu0 %v1792
      %1816 = vmatmul.bf16.gmra.mxu0 %v1741
      %v1817 = vpop.f32.mrf.mxu0
      %v1818 = vadd.f32 0.0, %v1817
      %v1819 = vpop.f32.mrf.mxu0
      %v1820 = vadd.f32 0.0, %v1819
      %1821 = vmatmul.bf16.gmra.mxu0 %v1742
      %v1822 = vpop.f32.mrf.mxu0
      %v1823 = vadd.f32 0.0, %v1822
      %v1824 = vpop.f32.mrf.mxu0
      %1825 = vdwg.mxu0
      %v1826 = vadd.f32 %v1730, %v1818
      %v1827 = vadd.f32 %v1732, %v1820
      %v1828 = vadd.f32 %v1735, %v1823
      %v1829 = vld [vmem:[%s2 + $0x7] sm:$0x1]
      %v1830 = vperm.slane %v1829, 0
      %v1831 = vmul.f32 %v1826, %v1830
      %v1832 = vmul.f32 %v1827, %v1830
      %v1833 = vmul.f32 %v1828, %v1830
      %v1834 = vld [vmem:[%s2 + $0x8] sm:$0x1]
      %v1835 = vperm.slane %v1834, 0
      %v1836 = vadd.f32 %v1831, %v1835
      %v1837 = vadd.f32 %v1832, %v1835
      %v1838 = vadd.f32 %v1833, %v1835
      %v1839 = vmax.f32 %v1836, 0.0
      %v1840 = vmax.f32 %v1837, 0.0
      %v1841 = vmax.f32 %v1838, 0.0
      %s1842 = scalar_lea.vmem %s1, 1088
      %v1843 = vld [vmem:[%s1842] sm:$0xf]
      %v1844 = vld [vmem:[%s1842 + $0x4] sm:$0xf]
      %v1845 = vld [vmem:[%s1842 + $0x8] sm:$0xf]
      %v1846 = vld [vmem:[%s1842 + $0xc] sm:$0xf]
      %v1847 = vld [vmem:[%s1842 + $0x10] sm:$0xf]
      %v1848 = vld [vmem:[%s1842 + $0x14] sm:$0xf]
      %v1849 = vld [vmem:[%s1842 + $0x18] sm:$0xf]
      %v1850 = vld [vmem:[%s1842 + $0x1c] sm:$0xf]
      %v1851 = vld [vmem:[%s1842 + $0x20] sm:$0xf]
      %v1852 = vld [vmem:[%s1842 + $0x24] sm:$0xf]
      %v1853 = vld [vmem:[%s1842 + $0x28] sm:$0xf]
      %v1854 = vld [vmem:[%s1842 + $0x2c] sm:$0xf]
      %v1855 = vld [vmem:[%s1842 + $0x30] sm:$0xf]
      %v1856 = vld [vmem:[%s1842 + $0x34] sm:$0xf]
      %v1857 = vld [vmem:[%s1842 + $0x38] sm:$0xf]
      %v1858 = vld [vmem:[%s1842 + $0x3c] sm:$0xf]
      %v1859 = vld [vmem:[%s2 + $0xb] sm:$0x1]
      %v1860 = vperm.slane %v1859, 0
      %v1877 = vunpack.c.l.b16 %v1843
      %v1878 = vunpack.c.l.b16 %v1844
      %v1879 = vunpack.c.l.b16 %v1845
      %v1880 = vunpack.c.l.b16 %v1846
      %v1881 = vunpack.c.l.b16 %v1847
      %v1882 = vunpack.c.l.b16 %v1848
      %v1883 = vunpack.c.l.b16 %v1849
      %v1884 = vunpack.c.l.b16 %v1850
      %v1885 = vunpack.c.l.b16 %v1851
      %v1886 = vunpack.c.l.b16 %v1852
      %v1887 = vunpack.c.l.b16 %v1853
      %v1888 = vunpack.c.l.b16 %v1854
      %v1889 = vunpack.c.l.b16 %v1855
      %v1890 = vunpack.c.l.b16 %v1856
      %v1891 = vunpack.c.l.b16 %v1857
      %v1892 = vunpack.c.l.b16 %v1858
      %v1893 = vpack.c.b16 %v1878, %v1877
      %v1894 = vpack.c.b16 %v1880, %v1879
      %v1895 = vpack.c.b16 %v1882, %v1881
      %v1896 = vpack.c.b16 %v1884, %v1883
      %v1897 = vpack.c.b16 %v1886, %v1885
      %v1898 = vpack.c.b16 %v1888, %v1887
      %v1899 = vpack.c.b16 %v1890, %v1889
      %v1900 = vpack.c.b16 %v1892, %v1891
      %1909 = vmatpush.bf16.msra.mxu0 %v1900
      %1910 = vmatpush.bf16.msra.mxu0 %v1899
      %1911 = vmatpush.bf16.msra.mxu0 %v1898
      %1912 = vmatpush.bf16.msra.mxu0 %v1897
      %1913 = vmatpush.bf16.msra.mxu0 %v1896
      %1914 = vmatpush.bf16.msra.mxu0 %v1895
      %1915 = vmatpush.bf16.msra.mxu0 %v1894
      %1916 = vmatpush.bf16.msra.mxu0 %v1893
      %1917 = vmatmul.bf16.gmra.mxu0 %v1587
      %v1918 = vpop.f32.mrf.mxu0
      %v1919 = vadd.f32 %v1860, %v1918
      %v1920 = vpop.f32.mrf.mxu0
      %v1921 = vadd.f32 %v1860, %v1920
      %1922 = vmatmul.bf16.gmra.mxu0 %v1588
      %v1923 = vpop.f32.mrf.mxu0
      %v1924 = vadd.f32 %v1860, %v1923
      %v1925 = vpop.f32.mrf.mxu0
      %1926 = vdwg.mxu0
      %1927 = vst [vmem:[#allocation2] sm:$0xff] 0.0
      %1928 = vst [vmem:[#allocation2 + $0x8] sm:$0xff] 0.0
      %1929 = vst [vmem:[#allocation2 + $0x10] sm:$0xff] 0.0
      %1930 = vst [vmem:[#allocation2 + $0x18] sm:$0xff] 0.0
      %1931 = vst [vmem:[#allocation2 + $0x20] sm:$0xff] 0.0
      %1932 = vst [vmem:[#allocation2 + $0x28] sm:$0xff] 0.0
      %1933 = vst [vmem:[#allocation2 + $0x30] sm:$0xff] 0.0
      %1934 = vst [vmem:[#allocation2 + $0x38] sm:$0xff] 0.0
      %1935 = vst [vmem:[#allocation2 + $0x40] sm:$0xff] 0.0
      %1936 = vst [vmem:[#allocation2 + $0x48] sm:$0xff] 0.0
      %1937 = vst [vmem:[#allocation2 + $0x50] sm:$0xff] 0.0
      %1938 = vst [vmem:[#allocation2 + $0x58] sm:$0xff] 0.0
      %1939 = vst [vmem:[#allocation2 + $0x1] sm:$0xff] %v1839
      %1940 = vst [vmem:[#allocation2 + $0x9] sm:$0xff] %v1840
      %1941 = vst [vmem:[#allocation2 + $0x11] sm:$0x7f] %v1841
      %v1942 = vld [vmem:[#allocation2] sm:$0xff]
      %v1943 = vld [vmem:[#allocation2 + $0x8] sm:$0xff]
      %v1944 = vld [vmem:[#allocation2 + $0x10] sm:$0x7f]
      %v1945 = vpack.c.bf16 %v1943, %v1942
      %v1946 = vpack.c.bf16 %v1944, %v1944
      %s1947 = scalar_lea.vmem %s1, 896
      %v1948 = vld [vmem:[%s1947] sm:$0xf]
      %v1949 = vld [vmem:[%s1947 + $0x4] sm:$0xf]
      %v1950 = vld [vmem:[%s1947 + $0x8] sm:$0xf]
      %v1951 = vld [vmem:[%s1947 + $0xc] sm:$0xf]
      %v1952 = vld [vmem:[%s1947 + $0x10] sm:$0xf]
      %v1953 = vld [vmem:[%s1947 + $0x14] sm:$0xf]
      %v1954 = vld [vmem:[%s1947 + $0x18] sm:$0xf]
      %v1955 = vld [vmem:[%s1947 + $0x1c] sm:$0xf]
      %v1956 = vld [vmem:[%s1947 + $0x20] sm:$0xf]
      %v1957 = vld [vmem:[%s1947 + $0x24] sm:$0xf]
      %v1958 = vld [vmem:[%s1947 + $0x28] sm:$0xf]
      %v1959 = vld [vmem:[%s1947 + $0x2c] sm:$0xf]
      %v1960 = vld [vmem:[%s1947 + $0x30] sm:$0xf]
      %v1961 = vld [vmem:[%s1947 + $0x34] sm:$0xf]
      %v1962 = vld [vmem:[%s1947 + $0x38] sm:$0xf]
      %v1963 = vld [vmem:[%s1947 + $0x3c] sm:$0xf]
      %v1964 = vld [vmem:[#allocation2 + $0x1] sm:$0xff]
      %v1965 = vld [vmem:[#allocation2 + $0x9] sm:$0xff]
      %v1966 = vld [vmem:[#allocation2 + $0x11] sm:$0x7f]
      %v1967 = vpack.c.bf16 %v1965, %v1964
      %v1968 = vpack.c.bf16 %v1966, %v1966
      %s1969 = scalar_lea.vmem %s1, 960
      %v1970 = vld [vmem:[%s1969] sm:$0xf]
      %v1971 = vld [vmem:[%s1969 + $0x4] sm:$0xf]
      %v1972 = vld [vmem:[%s1969 + $0x8] sm:$0xf]
      %v1973 = vld [vmem:[%s1969 + $0xc] sm:$0xf]
      %v1974 = vld [vmem:[%s1969 + $0x10] sm:$0xf]
      %v1975 = vld [vmem:[%s1969 + $0x14] sm:$0xf]
      %v1976 = vld [vmem:[%s1969 + $0x18] sm:$0xf]
      %v1977 = vld [vmem:[%s1969 + $0x1c] sm:$0xf]
      %v1978 = vld [vmem:[%s1969 + $0x20] sm:$0xf]
      %v1979 = vld [vmem:[%s1969 + $0x24] sm:$0xf]
      %v1980 = vld [vmem:[%s1969 + $0x28] sm:$0xf]
      %v1981 = vld [vmem:[%s1969 + $0x2c] sm:$0xf]
      %v1982 = vld [vmem:[%s1969 + $0x30] sm:$0xf]
      %v1983 = vld [vmem:[%s1969 + $0x34] sm:$0xf]
      %v1984 = vld [vmem:[%s1969 + $0x38] sm:$0xf]
      %v1985 = vld [vmem:[%s1969 + $0x3c] sm:$0xf]
      %v2002 = vunpack.c.l.b16 %v1970
      %v2003 = vunpack.c.l.b16 %v1971
      %v2004 = vunpack.c.l.b16 %v1972
      %v2005 = vunpack.c.l.b16 %v1973
      %v2006 = vunpack.c.l.b16 %v1974
      %v2007 = vunpack.c.l.b16 %v1975
      %v2008 = vunpack.c.l.b16 %v1976
      %v2009 = vunpack.c.l.b16 %v1977
      %v2010 = vunpack.c.l.b16 %v1978
      %v2011 = vunpack.c.l.b16 %v1979
      %v2012 = vunpack.c.l.b16 %v1980
      %v2013 = vunpack.c.l.b16 %v1981
      %v2014 = vunpack.c.l.b16 %v1982
      %v2015 = vunpack.c.l.b16 %v1983
      %v2016 = vunpack.c.l.b16 %v1984
      %v2017 = vunpack.c.l.b16 %v1985
      %v2018 = vpack.c.b16 %v2003, %v2002
      %v2019 = vpack.c.b16 %v2005, %v2004
      %v2020 = vpack.c.b16 %v2007, %v2006
      %v2021 = vpack.c.b16 %v2009, %v2008
      %v2022 = vpack.c.b16 %v2011, %v2010
      %v2023 = vpack.c.b16 %v2013, %v2012
      %v2024 = vpack.c.b16 %v2015, %v2014
      %v2025 = vpack.c.b16 %v2017, %v2016
      %2034 = vmatpush.bf16.msra.mxu0 %v2025
      %2035 = vmatpush.bf16.msra.mxu0 %v2024
      %2036 = vmatpush.bf16.msra.mxu0 %v2023
      %2037 = vmatpush.bf16.msra.mxu0 %v2022
      %2038 = vmatpush.bf16.msra.mxu0 %v2021
      %2039 = vmatpush.bf16.msra.mxu0 %v2020
      %2040 = vmatpush.bf16.msra.mxu0 %v2019
      %2041 = vmatpush.bf16.msra.mxu0 %v2018
      %2042 = vmatmul.bf16.gmra.mxu0 %v1967
      %v2043 = vpop.f32.mrf.mxu0
      %v2044 = vadd.f32 0.0, %v2043
      %v2045 = vpop.f32.mrf.mxu0
      %v2046 = vadd.f32 0.0, %v2045
      %2047 = vmatmul.bf16.gmra.mxu0 %v1968
      %v2048 = vpop.f32.mrf.mxu0
      %v2049 = vadd.f32 0.0, %v2048
      %v2050 = vpop.f32.mrf.mxu0
      %2051 = vdwg.mxu0
      %v2068 = vunpack.c.l.b16 %v1948
      %v2069 = vunpack.c.l.b16 %v1949
      %v2070 = vunpack.c.l.b16 %v1950
      %v2071 = vunpack.c.l.b16 %v1951
      %v2072 = vunpack.c.l.b16 %v1952
      %v2073 = vunpack.c.l.b16 %v1953
      %v2074 = vunpack.c.l.b16 %v1954
      %v2075 = vunpack.c.l.b16 %v1955
      %v2076 = vunpack.c.l.b16 %v1956
      %v2077 = vunpack.c.l.b16 %v1957
      %v2078 = vunpack.c.l.b16 %v1958
      %v2079 = vunpack.c.l.b16 %v1959
      %v2080 = vunpack.c.l.b16 %v1960
      %v2081 = vunpack.c.l.b16 %v1961
      %v2082 = vunpack.c.l.b16 %v1962
      %v2083 = vunpack.c.l.b16 %v1963
      %v2084 = vpack.c.b16 %v2069, %v2068
      %v2085 = vpack.c.b16 %v2071, %v2070
      %v2086 = vpack.c.b16 %v2073, %v2072
      %v2087 = vpack.c.b16 %v2075, %v2074
      %v2088 = vpack.c.b16 %v2077, %v2076
      %v2089 = vpack.c.b16 %v2079, %v2078
      %v2090 = vpack.c.b16 %v2081, %v2080
      %v2091 = vpack.c.b16 %v2083, %v2082
      %2100 = vmatpush.bf16.msra.mxu0 %v2091
      %2101 = vmatpush.bf16.msra.mxu0 %v2090
      %2102 = vmatpush.bf16.msra.mxu0 %v2089
      %2103 = vmatpush.bf16.msra.mxu0 %v2088
      %2104 = vmatpush.bf16.msra.mxu0 %v2087
      %2105 = vmatpush.bf16.msra.mxu0 %v2086
      %2106 = vmatpush.bf16.msra.mxu0 %v2085
      %2107 = vmatpush.bf16.msra.mxu0 %v2084
      %2108 = vmatmul.bf16.gmra.mxu0 %v1945
      %v2109 = vpop.f32.mrf.mxu0
      %v2110 = vadd.f32 %v2044, %v2109
      %v2111 = vpop.f32.mrf.mxu0
      %v2112 = vadd.f32 %v2046, %v2111
      %2113 = vmatmul.bf16.gmra.mxu0 %v1946
      %v2114 = vpop.f32.mrf.mxu0
      %v2115 = vadd.f32 %v2049, %v2114
      %v2116 = vpop.f32.mrf.mxu0
      %2117 = vdwg.mxu0
      %v2118 = vld [vmem:[#allocation2 + $0x2] sm:$0xff]
      %v2119 = vld [vmem:[#allocation2 + $0xa] sm:$0xff]
      %v2120 = vld [vmem:[#allocation2 + $0x12] sm:$0x7f]
      %v2121 = vpack.c.bf16 %v2119, %v2118
      %v2122 = vpack.c.bf16 %v2120, %v2120
      %s2123 = scalar_lea.vmem %s1, 1024
      %v2124 = vld [vmem:[%s2123] sm:$0xf]
      %v2125 = vld [vmem:[%s2123 + $0x4] sm:$0xf]
      %v2126 = vld [vmem:[%s2123 + $0x8] sm:$0xf]
      %v2127 = vld [vmem:[%s2123 + $0xc] sm:$0xf]
      %v2128 = vld [vmem:[%s2123 + $0x10] sm:$0xf]
      %v2129 = vld [vmem:[%s2123 + $0x14] sm:$0xf]
      %v2130 = vld [vmem:[%s2123 + $0x18] sm:$0xf]
      %v2131 = vld [vmem:[%s2123 + $0x1c] sm:$0xf]
      %v2132 = vld [vmem:[%s2123 + $0x20] sm:$0xf]
      %v2133 = vld [vmem:[%s2123 + $0x24] sm:$0xf]
      %v2134 = vld [vmem:[%s2123 + $0x28] sm:$0xf]
      %v2135 = vld [vmem:[%s2123 + $0x2c] sm:$0xf]
      %v2136 = vld [vmem:[%s2123 + $0x30] sm:$0xf]
      %v2137 = vld [vmem:[%s2123 + $0x34] sm:$0xf]
      %v2138 = vld [vmem:[%s2123 + $0x38] sm:$0xf]
      %v2139 = vld [vmem:[%s2123 + $0x3c] sm:$0xf]
      %v2156 = vunpack.c.l.b16 %v2124
      %v2157 = vunpack.c.l.b16 %v2125
      %v2158 = vunpack.c.l.b16 %v2126
      %v2159 = vunpack.c.l.b16 %v2127
      %v2160 = vunpack.c.l.b16 %v2128
      %v2161 = vunpack.c.l.b16 %v2129
      %v2162 = vunpack.c.l.b16 %v2130
      %v2163 = vunpack.c.l.b16 %v2131
      %v2164 = vunpack.c.l.b16 %v2132
      %v2165 = vunpack.c.l.b16 %v2133
      %v2166 = vunpack.c.l.b16 %v2134
      %v2167 = vunpack.c.l.b16 %v2135
      %v2168 = vunpack.c.l.b16 %v2136
      %v2169 = vunpack.c.l.b16 %v2137
      %v2170 = vunpack.c.l.b16 %v2138
      %v2171 = vunpack.c.l.b16 %v2139
      %v2172 = vpack.c.b16 %v2157, %v2156
      %v2173 = vpack.c.b16 %v2159, %v2158
      %v2174 = vpack.c.b16 %v2161, %v2160
      %v2175 = vpack.c.b16 %v2163, %v2162
      %v2176 = vpack.c.b16 %v2165, %v2164
      %v2177 = vpack.c.b16 %v2167, %v2166
      %v2178 = vpack.c.b16 %v2169, %v2168
      %v2179 = vpack.c.b16 %v2171, %v2170
      %2188 = vmatpush.bf16.msra.mxu0 %v2179
      %2189 = vmatpush.bf16.msra.mxu0 %v2178
      %2190 = vmatpush.bf16.msra.mxu0 %v2177
      %2191 = vmatpush.bf16.msra.mxu0 %v2176
      %2192 = vmatpush.bf16.msra.mxu0 %v2175
      %2193 = vmatpush.bf16.msra.mxu0 %v2174
      %2194 = vmatpush.bf16.msra.mxu0 %v2173
      %2195 = vmatpush.bf16.msra.mxu0 %v2172
      %2196 = vmatmul.bf16.gmra.mxu0 %v2121
      %v2197 = vpop.f32.mrf.mxu0
      %v2198 = vadd.f32 0.0, %v2197
      %v2199 = vpop.f32.mrf.mxu0
      %v2200 = vadd.f32 0.0, %v2199
      %2201 = vmatmul.bf16.gmra.mxu0 %v2122
      %v2202 = vpop.f32.mrf.mxu0
      %v2203 = vadd.f32 0.0, %v2202
      %v2204 = vpop.f32.mrf.mxu0
      %2205 = vdwg.mxu0
      %v2206 = vadd.f32 %v2110, %v2198
      %v2207 = vadd.f32 %v2112, %v2200
      %v2208 = vadd.f32 %v2115, %v2203
      %v2209 = vadd.f32 %v2206, %v1919
      %v2210 = vadd.f32 %v2207, %v1921
      %v2211 = vadd.f32 %v2208, %v1924
      %v2212 = vld [vmem:[%s2 + $0x9] sm:$0x1]
      %v2213 = vperm.slane %v2212, 0
      %v2214 = vmul.f32 %v2209, %v2213
      %v2215 = vmul.f32 %v2210, %v2213
      %v2216 = vmul.f32 %v2211, %v2213
      %v2217 = vld [vmem:[%s2 + $0xa] sm:$0x1]
      %v2218 = vperm.slane %v2217, 0
      %v2219 = vadd.f32 %v2214, %v2218
      %v2220 = vadd.f32 %v2215, %v2218
      %v2221 = vadd.f32 %v2216, %v2218
      %v2222 = vmax.f32 %v2219, 0.0
      %v2223 = vmax.f32 %v2220, 0.0
      %v2224 = vmax.f32 %v2221, 0.0
      %2225 = vst [vmem:[#allocation3] sm:$0xff] 0.0
      %2226 = vst [vmem:[#allocation3 + $0x8] sm:$0xff] 0.0
      %2227 = vst [vmem:[#allocation3 + $0x10] sm:$0xff] 0.0
      %2228 = vst [vmem:[#allocation3 + $0x18] sm:$0xff] 0.0
      %2229 = vst [vmem:[#allocation3 + $0x20] sm:$0xff] 0.0
      %2230 = vst [vmem:[#allocation3 + $0x28] sm:$0xff] 0.0
      %2231 = vst [vmem:[#allocation3 + $0x30] sm:$0xff] 0.0
      %2232 = vst [vmem:[#allocation3 + $0x38] sm:$0xff] 0.0
      %2233 = vst [vmem:[#allocation3 + $0x40] sm:$0xff] 0.0
      %2234 = vst [vmem:[#allocation3 + $0x48] sm:$0xff] 0.0
      %2235 = vst [vmem:[#allocation3 + $0x50] sm:$0xff] 0.0
      %2236 = vst [vmem:[#allocation3 + $0x58] sm:$0xff] 0.0
      %2237 = vst [vmem:[#allocation3 + $0x1] sm:$0xff] %v2222
      %2238 = vst [vmem:[#allocation3 + $0x9] sm:$0xff] %v2223
      %2239 = vst [vmem:[#allocation3 + $0x11] sm:$0x7f] %v2224
      %v2240 = vld [vmem:[#allocation3] ss:$2 sm:$0xff]
      %v2241 = vld [vmem:[%s769] ss:$2 sm:$0xf]
      %v2242 = vpack.c.bf16 %v2241, %v2240
      %s2243 = scalar_lea.vmem %s1, 1152
      %v2244 = vld [vmem:[%s2243] sm:$0xf]
      %v2245 = vld [vmem:[%s2243 + $0x4] sm:$0xf]
      %v2246 = vld [vmem:[%s2243 + $0x8] sm:$0xf]
      %v2247 = vld [vmem:[%s2243 + $0xc] sm:$0xf]
      %v2248 = vld [vmem:[%s2243 + $0x10] sm:$0xf]
      %v2249 = vld [vmem:[%s2243 + $0x14] sm:$0xf]
      %v2250 = vld [vmem:[%s2243 + $0x18] sm:$0xf]
      %v2251 = vld [vmem:[%s2243 + $0x1c] sm:$0xf]
      %v2252 = vld [vmem:[%s2243 + $0x20] sm:$0xf]
      %v2253 = vld [vmem:[%s2243 + $0x24] sm:$0xf]
      %v2254 = vld [vmem:[%s2243 + $0x28] sm:$0xf]
      %v2255 = vld [vmem:[%s2243 + $0x2c] sm:$0xf]
      %v2256 = vld [vmem:[%s2243 + $0x30] sm:$0xf]
      %v2257 = vld [vmem:[%s2243 + $0x34] sm:$0xf]
      %v2258 = vld [vmem:[%s2243 + $0x38] sm:$0xf]
      %v2259 = vld [vmem:[%s2243 + $0x3c] sm:$0xf]
      %v2260 = vld [vmem:[%s799] ss:$2 sm:$0xff]
      %v2261 = vld [vmem:[%s801] ss:$2 sm:$0xf]
      %v2262 = vpack.c.bf16 %v2261, %v2260
      %s2263 = scalar_lea.vmem %s1, 1216
      %v2264 = vld [vmem:[%s2263] sm:$0xf]
      %v2265 = vld [vmem:[%s2263 + $0x4] sm:$0xf]
      %v2266 = vld [vmem:[%s2263 + $0x8] sm:$0xf]
      %v2267 = vld [vmem:[%s2263 + $0xc] sm:$0xf]
      %v2268 = vld [vmem:[%s2263 + $0x10] sm:$0xf]
      %v2269 = vld [vmem:[%s2263 + $0x14] sm:$0xf]
      %v2270 = vld [vmem:[%s2263 + $0x18] sm:$0xf]
      %v2271 = vld [vmem:[%s2263 + $0x1c] sm:$0xf]
      %v2272 = vld [vmem:[%s2263 + $0x20] sm:$0xf]
      %v2273 = vld [vmem:[%s2263 + $0x24] sm:$0xf]
      %v2274 = vld [vmem:[%s2263 + $0x28] sm:$0xf]
      %v2275 = vld [vmem:[%s2263 + $0x2c] sm:$0xf]
      %v2276 = vld [vmem:[%s2263 + $0x30] sm:$0xf]
      %v2277 = vld [vmem:[%s2263 + $0x34] sm:$0xf]
      %v2278 = vld [vmem:[%s2263 + $0x38] sm:$0xf]
      %v2279 = vld [vmem:[%s2263 + $0x3c] sm:$0xf]
      %v2296 = vunpack.c.l.b16 %v2264
      %v2297 = vunpack.c.l.b16 %v2265
      %v2298 = vunpack.c.l.b16 %v2266
      %v2299 = vunpack.c.l.b16 %v2267
      %v2300 = vunpack.c.l.b16 %v2268
      %v2301 = vunpack.c.l.b16 %v2269
      %v2302 = vunpack.c.l.b16 %v2270
      %v2303 = vunpack.c.l.b16 %v2271
      %v2304 = vunpack.c.l.b16 %v2272
      %v2305 = vunpack.c.l.b16 %v2273
      %v2306 = vunpack.c.l.b16 %v2274
      %v2307 = vunpack.c.l.b16 %v2275
      %v2308 = vunpack.c.l.b16 %v2276
      %v2309 = vunpack.c.l.b16 %v2277
      %v2310 = vunpack.c.l.b16 %v2278
      %v2311 = vunpack.c.l.b16 %v2279
      %v2312 = vpack.c.b16 %v2297, %v2296
      %v2313 = vpack.c.b16 %v2299, %v2298
      %v2314 = vpack.c.b16 %v2301, %v2300
      %v2315 = vpack.c.b16 %v2303, %v2302
      %v2316 = vpack.c.b16 %v2305, %v2304
      %v2317 = vpack.c.b16 %v2307, %v2306
      %v2318 = vpack.c.b16 %v2309, %v2308
      %v2319 = vpack.c.b16 %v2311, %v2310
      %2328 = vmatpush.bf16.msra.mxu0 %v2319
      %2329 = vmatpush.bf16.msra.mxu0 %v2318
      %2330 = vmatpush.bf16.msra.mxu0 %v2317
      %2331 = vmatpush.bf16.msra.mxu0 %v2316
      %2332 = vmatpush.bf16.msra.mxu0 %v2315
      %2333 = vmatpush.bf16.msra.mxu0 %v2314
      %2334 = vmatpush.bf16.msra.mxu0 %v2313
      %2335 = vmatpush.bf16.msra.mxu0 %v2312
      %2336 = vmatmul.bf16.gmra.mxu0 %v2262
      %v2337 = vpop.f32.mrf.mxu0
      %v2338 = vadd.f32 0.0, %v2337
      %v2339 = vpop.f32.mrf.mxu0
      %v2340 = vadd.f32 0.0, %v2339
      %2341 = vdwg.mxu0
      %v2358 = vunpack.c.l.b16 %v2244
      %v2359 = vunpack.c.l.b16 %v2245
      %v2360 = vunpack.c.l.b16 %v2246
      %v2361 = vunpack.c.l.b16 %v2247
      %v2362 = vunpack.c.l.b16 %v2248
      %v2363 = vunpack.c.l.b16 %v2249
      %v2364 = vunpack.c.l.b16 %v2250
      %v2365 = vunpack.c.l.b16 %v2251
      %v2366 = vunpack.c.l.b16 %v2252
      %v2367 = vunpack.c.l.b16 %v2253
      %v2368 = vunpack.c.l.b16 %v2254
      %v2369 = vunpack.c.l.b16 %v2255
      %v2370 = vunpack.c.l.b16 %v2256
      %v2371 = vunpack.c.l.b16 %v2257
      %v2372 = vunpack.c.l.b16 %v2258
      %v2373 = vunpack.c.l.b16 %v2259
      %v2374 = vpack.c.b16 %v2359, %v2358
      %v2375 = vpack.c.b16 %v2361, %v2360
      %v2376 = vpack.c.b16 %v2363, %v2362
      %v2377 = vpack.c.b16 %v2365, %v2364
      %v2378 = vpack.c.b16 %v2367, %v2366
      %v2379 = vpack.c.b16 %v2369, %v2368
      %v2380 = vpack.c.b16 %v2371, %v2370
      %v2381 = vpack.c.b16 %v2373, %v2372
      %2390 = vmatpush.bf16.msra.mxu0 %v2381
      %2391 = vmatpush.bf16.msra.mxu0 %v2380
      %2392 = vmatpush.bf16.msra.mxu0 %v2379
      %2393 = vmatpush.bf16.msra.mxu0 %v2378
      %2394 = vmatpush.bf16.msra.mxu0 %v2377
      %2395 = vmatpush.bf16.msra.mxu0 %v2376
      %2396 = vmatpush.bf16.msra.mxu0 %v2375
      %2397 = vmatpush.bf16.msra.mxu0 %v2374
      %2398 = vmatmul.bf16.gmra.mxu0 %v2242
      %v2399 = vpop.f32.mrf.mxu0
      %v2400 = vadd.f32 %v2338, %v2399
      %v2401 = vpop.f32.mrf.mxu0
      %v2402 = vadd.f32 %v2340, %v2401
      %2403 = vdwg.mxu0
      %v2404 = vld [vmem:[%s975] ss:$2 sm:$0xff]
      %v2405 = vld [vmem:[%s977] ss:$2 sm:$0xf]
      %v2406 = vpack.c.bf16 %v2405, %v2404
      %s2407 = scalar_lea.vmem %s1, 1280
      %v2408 = vld [vmem:[%s2407] sm:$0xf]
      %v2409 = vld [vmem:[%s2407 + $0x4] sm:$0xf]
      %v2410 = vld [vmem:[%s2407 + $0x8] sm:$0xf]
      %v2411 = vld [vmem:[%s2407 + $0xc] sm:$0xf]
      %v2412 = vld [vmem:[%s2407 + $0x10] sm:$0xf]
      %v2413 = vld [vmem:[%s2407 + $0x14] sm:$0xf]
      %v2414 = vld [vmem:[%s2407 + $0x18] sm:$0xf]
      %v2415 = vld [vmem:[%s2407 + $0x1c] sm:$0xf]
      %v2416 = vld [vmem:[%s2407 + $0x20] sm:$0xf]
      %v2417 = vld [vmem:[%s2407 + $0x24] sm:$0xf]
      %v2418 = vld [vmem:[%s2407 + $0x28] sm:$0xf]
      %v2419 = vld [vmem:[%s2407 + $0x2c] sm:$0xf]
      %v2420 = vld [vmem:[%s2407 + $0x30] sm:$0xf]
      %v2421 = vld [vmem:[%s2407 + $0x34] sm:$0xf]
      %v2422 = vld [vmem:[%s2407 + $0x38] sm:$0xf]
      %v2423 = vld [vmem:[%s2407 + $0x3c] sm:$0xf]
      %v2440 = vunpack.c.l.b16 %v2408
      %v2441 = vunpack.c.l.b16 %v2409
      %v2442 = vunpack.c.l.b16 %v2410
      %v2443 = vunpack.c.l.b16 %v2411
      %v2444 = vunpack.c.l.b16 %v2412
      %v2445 = vunpack.c.l.b16 %v2413
      %v2446 = vunpack.c.l.b16 %v2414
      %v2447 = vunpack.c.l.b16 %v2415
      %v2448 = vunpack.c.l.b16 %v2416
      %v2449 = vunpack.c.l.b16 %v2417
      %v2450 = vunpack.c.l.b16 %v2418
      %v2451 = vunpack.c.l.b16 %v2419
      %v2452 = vunpack.c.l.b16 %v2420
      %v2453 = vunpack.c.l.b16 %v2421
      %v2454 = vunpack.c.l.b16 %v2422
      %v2455 = vunpack.c.l.b16 %v2423
      %v2456 = vpack.c.b16 %v2441, %v2440
      %v2457 = vpack.c.b16 %v2443, %v2442
      %v2458 = vpack.c.b16 %v2445, %v2444
      %v2459 = vpack.c.b16 %v2447, %v2446
      %v2460 = vpack.c.b16 %v2449, %v2448
      %v2461 = vpack.c.b16 %v2451, %v2450
      %v2462 = vpack.c.b16 %v2453, %v2452
      %v2463 = vpack.c.b16 %v2455, %v2454
      %2472 = vmatpush.bf16.msra.mxu0 %v2463
      %2473 = vmatpush.bf16.msra.mxu0 %v2462
      %2474 = vmatpush.bf16.msra.mxu0 %v2461
      %2475 = vmatpush.bf16.msra.mxu0 %v2460
      %2476 = vmatpush.bf16.msra.mxu0 %v2459
      %2477 = vmatpush.bf16.msra.mxu0 %v2458
      %2478 = vmatpush.bf16.msra.mxu0 %v2457
      %2479 = vmatpush.bf16.msra.mxu0 %v2456
      %2480 = vmatmul.bf16.gmra.mxu0 %v2406
      %v2481 = vpop.f32.mrf.mxu0
      %v2482 = vadd.f32 0.0, %v2481
      %v2483 = vpop.f32.mrf.mxu0
      %v2484 = vadd.f32 0.0, %v2483
      %2485 = vdwg.mxu0
      %v2486 = vadd.f32 %v2400, %v2482
      %v2487 = vadd.f32 %v2402, %v2484
      %v2488 = vld [vmem:[%s2 + $0xc] sm:$0x1]
      %v2489 = vperm.slane %v2488, 0
      %v2490 = vmul.f32 %v2486, %v2489
      %v2491 = vmul.f32 %v2487, %v2489
      %v2492 = vld [vmem:[%s2 + $0xd] sm:$0x1]
      %v2493 = vperm.slane %v2492, 0
      %v2494 = vadd.f32 %v2490, %v2493
      %v2495 = vadd.f32 %v2491, %v2493
      %v2496 = vmax.f32 %v2494, 0.0
      %v2497 = vmax.f32 %v2495, 0.0
      %s2498 = scalar_lea.vmem %s1, 1536
      %v2499 = vld [vmem:[%s2498] sm:$0xf]
      %v2500 = vld [vmem:[%s2498 + $0x4] sm:$0xf]
      %v2501 = vld [vmem:[%s2498 + $0x8] sm:$0xf]
      %v2502 = vld [vmem:[%s2498 + $0xc] sm:$0xf]
      %v2503 = vld [vmem:[%s2498 + $0x10] sm:$0xf]
      %v2504 = vld [vmem:[%s2498 + $0x14] sm:$0xf]
      %v2505 = vld [vmem:[%s2498 + $0x18] sm:$0xf]
      %v2506 = vld [vmem:[%s2498 + $0x1c] sm:$0xf]
      %v2507 = vld [vmem:[%s2498 + $0x20] sm:$0xf]
      %v2508 = vld [vmem:[%s2498 + $0x24] sm:$0xf]
      %v2509 = vld [vmem:[%s2498 + $0x28] sm:$0xf]
      %v2510 = vld [vmem:[%s2498 + $0x2c] sm:$0xf]
      %v2511 = vld [vmem:[%s2498 + $0x30] sm:$0xf]
      %v2512 = vld [vmem:[%s2498 + $0x34] sm:$0xf]
      %v2513 = vld [vmem:[%s2498 + $0x38] sm:$0xf]
      %v2514 = vld [vmem:[%s2498 + $0x3c] sm:$0xf]
      %v2515 = vld [vmem:[%s2 + $0x10] sm:$0x1]
      %v2516 = vperm.slane %v2515, 0
      %v2533 = vunpack.c.l.b16 %v2499
      %v2534 = vunpack.c.l.b16 %v2500
      %v2535 = vunpack.c.l.b16 %v2501
      %v2536 = vunpack.c.l.b16 %v2502
      %v2537 = vunpack.c.l.b16 %v2503
      %v2538 = vunpack.c.l.b16 %v2504
      %v2539 = vunpack.c.l.b16 %v2505
      %v2540 = vunpack.c.l.b16 %v2506
      %v2541 = vunpack.c.l.b16 %v2507
      %v2542 = vunpack.c.l.b16 %v2508
      %v2543 = vunpack.c.l.b16 %v2509
      %v2544 = vunpack.c.l.b16 %v2510
      %v2545 = vunpack.c.l.b16 %v2511
      %v2546 = vunpack.c.l.b16 %v2512
      %v2547 = vunpack.c.l.b16 %v2513
      %v2548 = vunpack.c.l.b16 %v2514
      %v2549 = vpack.c.b16 %v2534, %v2533
      %v2550 = vpack.c.b16 %v2536, %v2535
      %v2551 = vpack.c.b16 %v2538, %v2537
      %v2552 = vpack.c.b16 %v2540, %v2539
      %v2553 = vpack.c.b16 %v2542, %v2541
      %v2554 = vpack.c.b16 %v2544, %v2543
      %v2555 = vpack.c.b16 %v2546, %v2545
      %v2556 = vpack.c.b16 %v2548, %v2547
      %2565 = vmatpush.bf16.msra.mxu0 %v2556
      %2566 = vmatpush.bf16.msra.mxu0 %v2555
      %2567 = vmatpush.bf16.msra.mxu0 %v2554
      %2568 = vmatpush.bf16.msra.mxu0 %v2553
      %2569 = vmatpush.bf16.msra.mxu0 %v2552
      %2570 = vmatpush.bf16.msra.mxu0 %v2551
      %2571 = vmatpush.bf16.msra.mxu0 %v2550
      %2572 = vmatpush.bf16.msra.mxu0 %v2549
      %2573 = vmatmul.bf16.gmra.mxu0 %v2262
      %v2574 = vpop.f32.mrf.mxu0
      %v2575 = vadd.f32 %v2516, %v2574
      %v2576 = vpop.f32.mrf.mxu0
      %v2577 = vadd.f32 %v2516, %v2576
      %2578 = vdwg.mxu0
      %2579 = vst [vmem:[#allocation2] sm:$0xff] 0.0
      %2580 = vst [vmem:[#allocation2 + $0x8] sm:$0xff] 0.0
      %2581 = vst [vmem:[#allocation2 + $0x10] sm:$0xff] 0.0
      %2582 = vst [vmem:[#allocation2 + $0x18] sm:$0xff] 0.0
      %2583 = vst [vmem:[#allocation2 + $0x20] sm:$0xff] 0.0
      %2584 = vst [vmem:[#allocation2 + $0x28] sm:$0xff] 0.0
      %2585 = vst [vmem:[#allocation2 + $0x30] sm:$0xff] 0.0
      %2586 = vst [vmem:[#allocation2 + $0x38] sm:$0xff] 0.0
      %2587 = vst [vmem:[#allocation2 + $0x40] sm:$0xff] 0.0
      %2588 = vst [vmem:[#allocation2 + $0x48] sm:$0xff] 0.0
      %2589 = vst [vmem:[#allocation2 + $0x50] sm:$0xff] 0.0
      %2590 = vst [vmem:[#allocation2 + $0x58] sm:$0xff] 0.0
      %2591 = vst [vmem:[#allocation2 + $0x1] sm:$0xff] %v2496
      %2592 = vst [vmem:[#allocation2 + $0x9] sm:$0xf] %v2497
      %v2593 = vld [vmem:[#allocation2] sm:$0xff]
      %v2594 = vld [vmem:[#allocation2 + $0x8] sm:$0xf]
      %v2595 = vpack.c.bf16 %v2594, %v2593
      %s2596 = scalar_lea.vmem %s1, 1344
      %v2597 = vld [vmem:[%s2596] sm:$0xf]
      %v2598 = vld [vmem:[%s2596 + $0x4] sm:$0xf]
      %v2599 = vld [vmem:[%s2596 + $0x8] sm:$0xf]
      %v2600 = vld [vmem:[%s2596 + $0xc] sm:$0xf]
      %v2601 = vld [vmem:[%s2596 + $0x10] sm:$0xf]
      %v2602 = vld [vmem:[%s2596 + $0x14] sm:$0xf]
      %v2603 = vld [vmem:[%s2596 + $0x18] sm:$0xf]
      %v2604 = vld [vmem:[%s2596 + $0x1c] sm:$0xf]
      %v2605 = vld [vmem:[%s2596 + $0x20] sm:$0xf]
      %v2606 = vld [vmem:[%s2596 + $0x24] sm:$0xf]
      %v2607 = vld [vmem:[%s2596 + $0x28] sm:$0xf]
      %v2608 = vld [vmem:[%s2596 + $0x2c] sm:$0xf]
      %v2609 = vld [vmem:[%s2596 + $0x30] sm:$0xf]
      %v2610 = vld [vmem:[%s2596 + $0x34] sm:$0xf]
      %v2611 = vld [vmem:[%s2596 + $0x38] sm:$0xf]
      %v2612 = vld [vmem:[%s2596 + $0x3c] sm:$0xf]
      %v2613 = vld [vmem:[#allocation2 + $0x1] sm:$0xff]
      %v2614 = vld [vmem:[#allocation2 + $0x9] sm:$0xf]
      %v2615 = vpack.c.bf16 %v2614, %v2613
      %s2616 = scalar_lea.vmem %s1, 1408
      %v2617 = vld [vmem:[%s2616] sm:$0xf]
      %v2618 = vld [vmem:[%s2616 + $0x4] sm:$0xf]
      %v2619 = vld [vmem:[%s2616 + $0x8] sm:$0xf]
      %v2620 = vld [vmem:[%s2616 + $0xc] sm:$0xf]
      %v2621 = vld [vmem:[%s2616 + $0x10] sm:$0xf]
      %v2622 = vld [vmem:[%s2616 + $0x14] sm:$0xf]
      %v2623 = vld [vmem:[%s2616 + $0x18] sm:$0xf]
      %v2624 = vld [vmem:[%s2616 + $0x1c] sm:$0xf]
      %v2625 = vld [vmem:[%s2616 + $0x20] sm:$0xf]
      %v2626 = vld [vmem:[%s2616 + $0x24] sm:$0xf]
      %v2627 = vld [vmem:[%s2616 + $0x28] sm:$0xf]
      %v2628 = vld [vmem:[%s2616 + $0x2c] sm:$0xf]
      %v2629 = vld [vmem:[%s2616 + $0x30] sm:$0xf]
      %v2630 = vld [vmem:[%s2616 + $0x34] sm:$0xf]
      %v2631 = vld [vmem:[%s2616 + $0x38] sm:$0xf]
      %v2632 = vld [vmem:[%s2616 + $0x3c] sm:$0xf]
      %v2649 = vunpack.c.l.b16 %v2617
      %v2650 = vunpack.c.l.b16 %v2618
      %v2651 = vunpack.c.l.b16 %v2619
      %v2652 = vunpack.c.l.b16 %v2620
      %v2653 = vunpack.c.l.b16 %v2621
      %v2654 = vunpack.c.l.b16 %v2622
      %v2655 = vunpack.c.l.b16 %v2623
      %v2656 = vunpack.c.l.b16 %v2624
      %v2657 = vunpack.c.l.b16 %v2625
      %v2658 = vunpack.c.l.b16 %v2626
      %v2659 = vunpack.c.l.b16 %v2627
      %v2660 = vunpack.c.l.b16 %v2628
      %v2661 = vunpack.c.l.b16 %v2629
      %v2662 = vunpack.c.l.b16 %v2630
      %v2663 = vunpack.c.l.b16 %v2631
      %v2664 = vunpack.c.l.b16 %v2632
      %v2665 = vpack.c.b16 %v2650, %v2649
      %v2666 = vpack.c.b16 %v2652, %v2651
      %v2667 = vpack.c.b16 %v2654, %v2653
      %v2668 = vpack.c.b16 %v2656, %v2655
      %v2669 = vpack.c.b16 %v2658, %v2657
      %v2670 = vpack.c.b16 %v2660, %v2659
      %v2671 = vpack.c.b16 %v2662, %v2661
      %v2672 = vpack.c.b16 %v2664, %v2663
      %2681 = vmatpush.bf16.msra.mxu0 %v2672
      %2682 = vmatpush.bf16.msra.mxu0 %v2671
      %2683 = vmatpush.bf16.msra.mxu0 %v2670
      %2684 = vmatpush.bf16.msra.mxu0 %v2669
      %2685 = vmatpush.bf16.msra.mxu0 %v2668
      %2686 = vmatpush.bf16.msra.mxu0 %v2667
      %2687 = vmatpush.bf16.msra.mxu0 %v2666
      %2688 = vmatpush.bf16.msra.mxu0 %v2665
      %2689 = vmatmul.bf16.gmra.mxu0 %v2615
      %v2690 = vpop.f32.mrf.mxu0
      %v2691 = vadd.f32 0.0, %v2690
      %v2692 = vpop.f32.mrf.mxu0
      %v2693 = vadd.f32 0.0, %v2692
      %2694 = vdwg.mxu0
      %v2711 = vunpack.c.l.b16 %v2597
      %v2712 = vunpack.c.l.b16 %v2598
      %v2713 = vunpack.c.l.b16 %v2599
      %v2714 = vunpack.c.l.b16 %v2600
      %v2715 = vunpack.c.l.b16 %v2601
      %v2716 = vunpack.c.l.b16 %v2602
      %v2717 = vunpack.c.l.b16 %v2603
      %v2718 = vunpack.c.l.b16 %v2604
      %v2719 = vunpack.c.l.b16 %v2605
      %v2720 = vunpack.c.l.b16 %v2606
      %v2721 = vunpack.c.l.b16 %v2607
      %v2722 = vunpack.c.l.b16 %v2608
      %v2723 = vunpack.c.l.b16 %v2609
      %v2724 = vunpack.c.l.b16 %v2610
      %v2725 = vunpack.c.l.b16 %v2611
      %v2726 = vunpack.c.l.b16 %v2612
      %v2727 = vpack.c.b16 %v2712, %v2711
      %v2728 = vpack.c.b16 %v2714, %v2713
      %v2729 = vpack.c.b16 %v2716, %v2715
      %v2730 = vpack.c.b16 %v2718, %v2717
      %v2731 = vpack.c.b16 %v2720, %v2719
      %v2732 = vpack.c.b16 %v2722, %v2721
      %v2733 = vpack.c.b16 %v2724, %v2723
      %v2734 = vpack.c.b16 %v2726, %v2725
      %2743 = vmatpush.bf16.msra.mxu0 %v2734
      %2744 = vmatpush.bf16.msra.mxu0 %v2733
      %2745 = vmatpush.bf16.msra.mxu0 %v2732
      %2746 = vmatpush.bf16.msra.mxu0 %v2731
      %2747 = vmatpush.bf16.msra.mxu0 %v2730
      %2748 = vmatpush.bf16.msra.mxu0 %v2729
      %2749 = vmatpush.bf16.msra.mxu0 %v2728
      %2750 = vmatpush.bf16.msra.mxu0 %v2727
      %2751 = vmatmul.bf16.gmra.mxu0 %v2595
      %v2752 = vpop.f32.mrf.mxu0
      %v2753 = vadd.f32 %v2691, %v2752
      %v2754 = vpop.f32.mrf.mxu0
      %v2755 = vadd.f32 %v2693, %v2754
      %2756 = vdwg.mxu0
      %v2757 = vld [vmem:[#allocation2 + $0x2] sm:$0xff]
      %v2758 = vld [vmem:[#allocation2 + $0xa] sm:$0xf]
      %v2759 = vpack.c.bf16 %v2758, %v2757
      %s2760 = scalar_lea.vmem %s1, 1472
      %v2761 = vld [vmem:[%s2760] sm:$0xf]
      %v2762 = vld [vmem:[%s2760 + $0x4] sm:$0xf]
      %v2763 = vld [vmem:[%s2760 + $0x8] sm:$0xf]
      %v2764 = vld [vmem:[%s2760 + $0xc] sm:$0xf]
      %v2765 = vld [vmem:[%s2760 + $0x10] sm:$0xf]
      %v2766 = vld [vmem:[%s2760 + $0x14] sm:$0xf]
      %v2767 = vld [vmem:[%s2760 + $0x18] sm:$0xf]
      %v2768 = vld [vmem:[%s2760 + $0x1c] sm:$0xf]
      %v2769 = vld [vmem:[%s2760 + $0x20] sm:$0xf]
      %v2770 = vld [vmem:[%s2760 + $0x24] sm:$0xf]
      %v2771 = vld [vmem:[%s2760 + $0x28] sm:$0xf]
      %v2772 = vld [vmem:[%s2760 + $0x2c] sm:$0xf]
      %v2773 = vld [vmem:[%s2760 + $0x30] sm:$0xf]
      %v2774 = vld [vmem:[%s2760 + $0x34] sm:$0xf]
      %v2775 = vld [vmem:[%s2760 + $0x38] sm:$0xf]
      %v2776 = vld [vmem:[%s2760 + $0x3c] sm:$0xf]
      %v2793 = vunpack.c.l.b16 %v2761
      %v2794 = vunpack.c.l.b16 %v2762
      %v2795 = vunpack.c.l.b16 %v2763
      %v2796 = vunpack.c.l.b16 %v2764
      %v2797 = vunpack.c.l.b16 %v2765
      %v2798 = vunpack.c.l.b16 %v2766
      %v2799 = vunpack.c.l.b16 %v2767
      %v2800 = vunpack.c.l.b16 %v2768
      %v2801 = vunpack.c.l.b16 %v2769
      %v2802 = vunpack.c.l.b16 %v2770
      %v2803 = vunpack.c.l.b16 %v2771
      %v2804 = vunpack.c.l.b16 %v2772
      %v2805 = vunpack.c.l.b16 %v2773
      %v2806 = vunpack.c.l.b16 %v2774
      %v2807 = vunpack.c.l.b16 %v2775
      %v2808 = vunpack.c.l.b16 %v2776
      %v2809 = vpack.c.b16 %v2794, %v2793
      %v2810 = vpack.c.b16 %v2796, %v2795
      %v2811 = vpack.c.b16 %v2798, %v2797
      %v2812 = vpack.c.b16 %v2800, %v2799
      %v2813 = vpack.c.b16 %v2802, %v2801
      %v2814 = vpack.c.b16 %v2804, %v2803
      %v2815 = vpack.c.b16 %v2806, %v2805
      %v2816 = vpack.c.b16 %v2808, %v2807
      %2825 = vmatpush.bf16.msra.mxu0 %v2816
      %2826 = vmatpush.bf16.msra.mxu0 %v2815
      %2827 = vmatpush.bf16.msra.mxu0 %v2814
      %2828 = vmatpush.bf16.msra.mxu0 %v2813
      %2829 = vmatpush.bf16.msra.mxu0 %v2812
      %2830 = vmatpush.bf16.msra.mxu0 %v2811
      %2831 = vmatpush.bf16.msra.mxu0 %v2810
      %2832 = vmatpush.bf16.msra.mxu0 %v2809
      %2833 = vmatmul.bf16.gmra.mxu0 %v2759
      %v2834 = vpop.f32.mrf.mxu0
      %v2835 = vadd.f32 0.0, %v2834
      %v2836 = vpop.f32.mrf.mxu0
      %v2837 = vadd.f32 0.0, %v2836
      %2838 = vdwg.mxu0
      %v2839 = vadd.f32 %v2753, %v2835
      %v2840 = vadd.f32 %v2755, %v2837
      %v2841 = vadd.f32 %v2839, %v2575
      %v2842 = vadd.f32 %v2840, %v2577
      %v2843 = vld [vmem:[%s2 + $0xe] sm:$0x1]
      %v2844 = vperm.slane %v2843, 0
      %v2845 = vmul.f32 %v2841, %v2844
      %v2846 = vmul.f32 %v2842, %v2844
      %v2847 = vld [vmem:[%s2 + $0xf] sm:$0x1]
      %v2848 = vperm.slane %v2847, 0
      %v2849 = vadd.f32 %v2845, %v2848
      %v2850 = vadd.f32 %v2846, %v2848
      %v2851 = vmax.f32 %v2849, 0.0
      %v2852 = vmax.f32 %v2850, 0.0
      %2853 = vst [vmem:[#allocation3] sm:$0xff] 0.0
      %2854 = vst [vmem:[#allocation3 + $0x8] sm:$0xff] 0.0
      %2855 = vst [vmem:[#allocation3 + $0x10] sm:$0xff] 0.0
      %2856 = vst [vmem:[#allocation3 + $0x18] sm:$0xff] 0.0
      %2857 = vst [vmem:[#allocation3 + $0x20] sm:$0xff] 0.0
      %2858 = vst [vmem:[#allocation3 + $0x28] sm:$0xff] 0.0
      %2859 = vst [vmem:[#allocation3 + $0x30] sm:$0xff] 0.0
      %2860 = vst [vmem:[#allocation3 + $0x38] sm:$0xff] 0.0
      %2861 = vst [vmem:[#allocation3 + $0x40] sm:$0xff] 0.0
      %2862 = vst [vmem:[#allocation3 + $0x48] sm:$0xff] 0.0
      %2863 = vst [vmem:[#allocation3 + $0x50] sm:$0xff] 0.0
      %2864 = vst [vmem:[#allocation3 + $0x58] sm:$0xff] 0.0
      %2865 = vst [vmem:[#allocation3 + $0x1] sm:$0xff] %v2851
      %2866 = vst [vmem:[#allocation3 + $0x9] sm:$0xf] %v2852
      %v2867 = vld [vmem:[#allocation3 + $0x1] sm:$0x1]
      %v2868 = vpack.c.bf16 %v2867, %v2867
      %s2869 = scalar_lea.vmem %s1, 1600
      %v2870 = vld [vmem:[%s2869] sm:$0xf]
      %v2871 = vld [vmem:[%s2869 + $0x4] sm:$0xf]
      %v2872 = vld [vmem:[%s2869 + $0x8] sm:$0xf]
      %v2873 = vld [vmem:[%s2869 + $0xc] sm:$0xf]
      %v2874 = vld [vmem:[%s2869 + $0x10] sm:$0xf]
      %v2875 = vld [vmem:[%s2869 + $0x14] sm:$0xf]
      %v2876 = vld [vmem:[%s2869 + $0x18] sm:$0xf]
      %v2877 = vld [vmem:[%s2869 + $0x1c] sm:$0xf]
      %v2878 = vld [vmem:[%s2869 + $0x20] sm:$0xf]
      %v2879 = vld [vmem:[%s2869 + $0x24] sm:$0xf]
      %v2880 = vld [vmem:[%s2869 + $0x28] sm:$0xf]
      %v2881 = vld [vmem:[%s2869 + $0x2c] sm:$0xf]
      %v2882 = vld [vmem:[%s2869 + $0x30] sm:$0xf]
      %v2883 = vld [vmem:[%s2869 + $0x34] sm:$0xf]
      %v2884 = vld [vmem:[%s2869 + $0x38] sm:$0xf]
      %v2885 = vld [vmem:[%s2869 + $0x3c] sm:$0xf]
      %v2886 = vld [vmem:[#allocation3 + $0x2] sm:$0x1]
      %v2887 = vpack.c.bf16 %v2886, %v2886
      %s2888 = scalar_lea.vmem %s1, 1664
      %v2889 = vld [vmem:[%s2888] sm:$0xf]
      %v2890 = vld [vmem:[%s2888 + $0x4] sm:$0xf]
      %v2891 = vld [vmem:[%s2888 + $0x8] sm:$0xf]
      %v2892 = vld [vmem:[%s2888 + $0xc] sm:$0xf]
      %v2893 = vld [vmem:[%s2888 + $0x10] sm:$0xf]
      %v2894 = vld [vmem:[%s2888 + $0x14] sm:$0xf]
      %v2895 = vld [vmem:[%s2888 + $0x18] sm:$0xf]
      %v2896 = vld [vmem:[%s2888 + $0x1c] sm:$0xf]
      %v2897 = vld [vmem:[%s2888 + $0x20] sm:$0xf]
      %v2898 = vld [vmem:[%s2888 + $0x24] sm:$0xf]
      %v2899 = vld [vmem:[%s2888 + $0x28] sm:$0xf]
      %v2900 = vld [vmem:[%s2888 + $0x2c] sm:$0xf]
      %v2901 = vld [vmem:[%s2888 + $0x30] sm:$0xf]
      %v2902 = vld [vmem:[%s2888 + $0x34] sm:$0xf]
      %v2903 = vld [vmem:[%s2888 + $0x38] sm:$0xf]
      %v2904 = vld [vmem:[%s2888 + $0x3c] sm:$0xf]
      %v2921 = vunpack.c.l.b16 %v2889
      %v2922 = vunpack.c.l.b16 %v2890
      %v2923 = vunpack.c.l.b16 %v2891
      %v2924 = vunpack.c.l.b16 %v2892
      %v2925 = vunpack.c.l.b16 %v2893
      %v2926 = vunpack.c.l.b16 %v2894
      %v2927 = vunpack.c.l.b16 %v2895
      %v2928 = vunpack.c.l.b16 %v2896
      %v2929 = vunpack.c.l.b16 %v2897
      %v2930 = vunpack.c.l.b16 %v2898
      %v2931 = vunpack.c.l.b16 %v2899
      %v2932 = vunpack.c.l.b16 %v2900
      %v2933 = vunpack.c.l.b16 %v2901
      %v2934 = vunpack.c.l.b16 %v2902
      %v2935 = vunpack.c.l.b16 %v2903
      %v2936 = vunpack.c.l.b16 %v2904
      %v2937 = vpack.c.b16 %v2922, %v2921
      %v2938 = vpack.c.b16 %v2924, %v2923
      %v2939 = vpack.c.b16 %v2926, %v2925
      %v2940 = vpack.c.b16 %v2928, %v2927
      %v2941 = vpack.c.b16 %v2930, %v2929
      %v2942 = vpack.c.b16 %v2932, %v2931
      %v2943 = vpack.c.b16 %v2934, %v2933
      %v2944 = vpack.c.b16 %v2936, %v2935
      %2953 = vmatpush.bf16.msra.mxu0 %v2944
      %2954 = vmatpush.bf16.msra.mxu0 %v2943
      %2955 = vmatpush.bf16.msra.mxu0 %v2942
      %2956 = vmatpush.bf16.msra.mxu0 %v2941
      %2957 = vmatpush.bf16.msra.mxu0 %v2940
      %2958 = vmatpush.bf16.msra.mxu0 %v2939
      %2959 = vmatpush.bf16.msra.mxu0 %v2938
      %2960 = vmatpush.bf16.msra.mxu0 %v2937
      %2961 = vmatmul.bf16.gmra.mxu0 %v2887
      %v2962 = vpop.f32.mrf.mxu0
      %v2963 = vadd.f32 0.0, %v2962
      %v2964 = vpop.f32.mrf.mxu0
      %2965 = vdwg.mxu0
      %v2982 = vunpack.c.l.b16 %v2870
      %v2983 = vunpack.c.l.b16 %v2871
      %v2984 = vunpack.c.l.b16 %v2872
      %v2985 = vunpack.c.l.b16 %v2873
      %v2986 = vunpack.c.l.b16 %v2874
      %v2987 = vunpack.c.l.b16 %v2875
      %v2988 = vunpack.c.l.b16 %v2876
      %v2989 = vunpack.c.l.b16 %v2877
      %v2990 = vunpack.c.l.b16 %v2878
      %v2991 = vunpack.c.l.b16 %v2879
      %v2992 = vunpack.c.l.b16 %v2880
      %v2993 = vunpack.c.l.b16 %v2881
      %v2994 = vunpack.c.l.b16 %v2882
      %v2995 = vunpack.c.l.b16 %v2883
      %v2996 = vunpack.c.l.b16 %v2884
      %v2997 = vunpack.c.l.b16 %v2885
      %v2998 = vpack.c.b16 %v2983, %v2982
      %v2999 = vpack.c.b16 %v2985, %v2984
      %v3000 = vpack.c.b16 %v2987, %v2986
      %v3001 = vpack.c.b16 %v2989, %v2988
      %v3002 = vpack.c.b16 %v2991, %v2990
      %v3003 = vpack.c.b16 %v2993, %v2992
      %v3004 = vpack.c.b16 %v2995, %v2994
      %v3005 = vpack.c.b16 %v2997, %v2996
      %3014 = vmatpush.bf16.msra.mxu0 %v3005
      %3015 = vmatpush.bf16.msra.mxu0 %v3004
      %3016 = vmatpush.bf16.msra.mxu0 %v3003
      %3017 = vmatpush.bf16.msra.mxu0 %v3002
      %3018 = vmatpush.bf16.msra.mxu0 %v3001
      %3019 = vmatpush.bf16.msra.mxu0 %v3000
      %3020 = vmatpush.bf16.msra.mxu0 %v2999
      %3021 = vmatpush.bf16.msra.mxu0 %v2998
      %3022 = vmatmul.bf16.gmra.mxu0 %v2868
      %v3023 = vpop.f32.mrf.mxu0
      %v3024 = vadd.f32 %v2963, %v3023
      %v3025 = vpop.f32.mrf.mxu0
      %3026 = vdwg.mxu0
      %v3027 = vld [vmem:[#allocation3 + $0x3] sm:$0x1]
      %v3028 = vpack.c.bf16 %v3027, %v3027
      %s3029 = scalar_lea.vmem %s1, 1728
      %v3030 = vld [vmem:[%s3029] sm:$0xf]
      %v3031 = vld [vmem:[%s3029 + $0x4] sm:$0xf]
      %v3032 = vld [vmem:[%s3029 + $0x8] sm:$0xf]
      %v3033 = vld [vmem:[%s3029 + $0xc] sm:$0xf]
      %v3034 = vld [vmem:[%s3029 + $0x10] sm:$0xf]
      %v3035 = vld [vmem:[%s3029 + $0x14] sm:$0xf]
      %v3036 = vld [vmem:[%s3029 + $0x18] sm:$0xf]
      %v3037 = vld [vmem:[%s3029 + $0x1c] sm:$0xf]
      %v3038 = vld [vmem:[%s3029 + $0x20] sm:$0xf]
      %v3039 = vld [vmem:[%s3029 + $0x24] sm:$0xf]
      %v3040 = vld [vmem:[%s3029 + $0x28] sm:$0xf]
      %v3041 = vld [vmem:[%s3029 + $0x2c] sm:$0xf]
      %v3042 = vld [vmem:[%s3029 + $0x30] sm:$0xf]
      %v3043 = vld [vmem:[%s3029 + $0x34] sm:$0xf]
      %v3044 = vld [vmem:[%s3029 + $0x38] sm:$0xf]
      %v3045 = vld [vmem:[%s3029 + $0x3c] sm:$0xf]
      %v3062 = vunpack.c.l.b16 %v3030
      %v3063 = vunpack.c.l.b16 %v3031
      %v3064 = vunpack.c.l.b16 %v3032
      %v3065 = vunpack.c.l.b16 %v3033
      %v3066 = vunpack.c.l.b16 %v3034
      %v3067 = vunpack.c.l.b16 %v3035
      %v3068 = vunpack.c.l.b16 %v3036
      %v3069 = vunpack.c.l.b16 %v3037
      %v3070 = vunpack.c.l.b16 %v3038
      %v3071 = vunpack.c.l.b16 %v3039
      %v3072 = vunpack.c.l.b16 %v3040
      %v3073 = vunpack.c.l.b16 %v3041
      %v3074 = vunpack.c.l.b16 %v3042
      %v3075 = vunpack.c.l.b16 %v3043
      %v3076 = vunpack.c.l.b16 %v3044
      %v3077 = vunpack.c.l.b16 %v3045
      %v3078 = vpack.c.b16 %v3063, %v3062
      %v3079 = vpack.c.b16 %v3065, %v3064
      %v3080 = vpack.c.b16 %v3067, %v3066
      %v3081 = vpack.c.b16 %v3069, %v3068
      %v3082 = vpack.c.b16 %v3071, %v3070
      %v3083 = vpack.c.b16 %v3073, %v3072
      %v3084 = vpack.c.b16 %v3075, %v3074
      %v3085 = vpack.c.b16 %v3077, %v3076
      %3094 = vmatpush.bf16.msra.mxu0 %v3085
      %3095 = vmatpush.bf16.msra.mxu0 %v3084
      %3096 = vmatpush.bf16.msra.mxu0 %v3083
      %3097 = vmatpush.bf16.msra.mxu0 %v3082
      %3098 = vmatpush.bf16.msra.mxu0 %v3081
      %3099 = vmatpush.bf16.msra.mxu0 %v3080
      %3100 = vmatpush.bf16.msra.mxu0 %v3079
      %3101 = vmatpush.bf16.msra.mxu0 %v3078
      %3102 = vmatmul.bf16.gmra.mxu0 %v3028
      %v3103 = vpop.f32.mrf.mxu0
      %v3104 = vadd.f32 0.0, %v3103
      %v3105 = vpop.f32.mrf.mxu0
      %3106 = vdwg.mxu0
      %v3107 = vadd.f32 %v3024, %v3104
      %v3108 = vld [vmem:[#allocation3 + $0x4] sm:$0x1]
      %v3109 = vpack.c.bf16 %v3108, %v3108
      %s3110 = scalar_lea.vmem %s1, 1792
      %v3111 = vld [vmem:[%s3110] sm:$0xf]
      %v3112 = vld [vmem:[%s3110 + $0x4] sm:$0xf]
      %v3113 = vld [vmem:[%s3110 + $0x8] sm:$0xf]
      %v3114 = vld [vmem:[%s3110 + $0xc] sm:$0xf]
      %v3115 = vld [vmem:[%s3110 + $0x10] sm:$0xf]
      %v3116 = vld [vmem:[%s3110 + $0x14] sm:$0xf]
      %v3117 = vld [vmem:[%s3110 + $0x18] sm:$0xf]
      %v3118 = vld [vmem:[%s3110 + $0x1c] sm:$0xf]
      %v3119 = vld [vmem:[%s3110 + $0x20] sm:$0xf]
      %v3120 = vld [vmem:[%s3110 + $0x24] sm:$0xf]
      %v3121 = vld [vmem:[%s3110 + $0x28] sm:$0xf]
      %v3122 = vld [vmem:[%s3110 + $0x2c] sm:$0xf]
      %v3123 = vld [vmem:[%s3110 + $0x30] sm:$0xf]
      %v3124 = vld [vmem:[%s3110 + $0x34] sm:$0xf]
      %v3125 = vld [vmem:[%s3110 + $0x38] sm:$0xf]
      %v3126 = vld [vmem:[%s3110 + $0x3c] sm:$0xf]
      %v3143 = vunpack.c.l.b16 %v3111
      %v3144 = vunpack.c.l.b16 %v3112
      %v3145 = vunpack.c.l.b16 %v3113
      %v3146 = vunpack.c.l.b16 %v3114
      %v3147 = vunpack.c.l.b16 %v3115
      %v3148 = vunpack.c.l.b16 %v3116
      %v3149 = vunpack.c.l.b16 %v3117
      %v3150 = vunpack.c.l.b16 %v3118
      %v3151 = vunpack.c.l.b16 %v3119
      %v3152 = vunpack.c.l.b16 %v3120
      %v3153 = vunpack.c.l.b16 %v3121
      %v3154 = vunpack.c.l.b16 %v3122
      %v3155 = vunpack.c.l.b16 %v3123
      %v3156 = vunpack.c.l.b16 %v3124
      %v3157 = vunpack.c.l.b16 %v3125
      %v3158 = vunpack.c.l.b16 %v3126
      %v3159 = vpack.c.b16 %v3144, %v3143
      %v3160 = vpack.c.b16 %v3146, %v3145
      %v3161 = vpack.c.b16 %v3148, %v3147
      %v3162 = vpack.c.b16 %v3150, %v3149
      %v3163 = vpack.c.b16 %v3152, %v3151
      %v3164 = vpack.c.b16 %v3154, %v3153
      %v3165 = vpack.c.b16 %v3156, %v3155
      %v3166 = vpack.c.b16 %v3158, %v3157
      %3175 = vmatpush.bf16.msra.mxu0 %v3166
      %3176 = vmatpush.bf16.msra.mxu0 %v3165
      %3177 = vmatpush.bf16.msra.mxu0 %v3164
      %3178 = vmatpush.bf16.msra.mxu0 %v3163
      %3179 = vmatpush.bf16.msra.mxu0 %v3162
      %3180 = vmatpush.bf16.msra.mxu0 %v3161
      %3181 = vmatpush.bf16.msra.mxu0 %v3160
      %3182 = vmatpush.bf16.msra.mxu0 %v3159
      %3183 = vmatmul.bf16.gmra.mxu0 %v3109
      %v3184 = vpop.f32.mrf.mxu0
      %v3185 = vadd.f32 0.0, %v3184
      %v3186 = vpop.f32.mrf.mxu0
      %3187 = vdwg.mxu0
      %v3188 = vadd.f32 %v3107, %v3185
      %v3189 = vld [vmem:[#allocation3 + $0x5] sm:$0x1]
      %v3190 = vpack.c.bf16 %v3189, %v3189
      %s3191 = scalar_lea.vmem %s1, 1856
      %v3192 = vld [vmem:[%s3191] sm:$0xf]
      %v3193 = vld [vmem:[%s3191 + $0x4] sm:$0xf]
      %v3194 = vld [vmem:[%s3191 + $0x8] sm:$0xf]
      %v3195 = vld [vmem:[%s3191 + $0xc] sm:$0xf]
      %v3196 = vld [vmem:[%s3191 + $0x10] sm:$0xf]
      %v3197 = vld [vmem:[%s3191 + $0x14] sm:$0xf]
      %v3198 = vld [vmem:[%s3191 + $0x18] sm:$0xf]
      %v3199 = vld [vmem:[%s3191 + $0x1c] sm:$0xf]
      %v3200 = vld [vmem:[%s3191 + $0x20] sm:$0xf]
      %v3201 = vld [vmem:[%s3191 + $0x24] sm:$0xf]
      %v3202 = vld [vmem:[%s3191 + $0x28] sm:$0xf]
      %v3203 = vld [vmem:[%s3191 + $0x2c] sm:$0xf]
      %v3204 = vld [vmem:[%s3191 + $0x30] sm:$0xf]
      %v3205 = vld [vmem:[%s3191 + $0x34] sm:$0xf]
      %v3206 = vld [vmem:[%s3191 + $0x38] sm:$0xf]
      %v3207 = vld [vmem:[%s3191 + $0x3c] sm:$0xf]
      %v3224 = vunpack.c.l.b16 %v3192
      %v3225 = vunpack.c.l.b16 %v3193
      %v3226 = vunpack.c.l.b16 %v3194
      %v3227 = vunpack.c.l.b16 %v3195
      %v3228 = vunpack.c.l.b16 %v3196
      %v3229 = vunpack.c.l.b16 %v3197
      %v3230 = vunpack.c.l.b16 %v3198
      %v3231 = vunpack.c.l.b16 %v3199
      %v3232 = vunpack.c.l.b16 %v3200
      %v3233 = vunpack.c.l.b16 %v3201
      %v3234 = vunpack.c.l.b16 %v3202
      %v3235 = vunpack.c.l.b16 %v3203
      %v3236 = vunpack.c.l.b16 %v3204
      %v3237 = vunpack.c.l.b16 %v3205
      %v3238 = vunpack.c.l.b16 %v3206
      %v3239 = vunpack.c.l.b16 %v3207
      %v3240 = vpack.c.b16 %v3225, %v3224
      %v3241 = vpack.c.b16 %v3227, %v3226
      %v3242 = vpack.c.b16 %v3229, %v3228
      %v3243 = vpack.c.b16 %v3231, %v3230
      %v3244 = vpack.c.b16 %v3233, %v3232
      %v3245 = vpack.c.b16 %v3235, %v3234
      %v3246 = vpack.c.b16 %v3237, %v3236
      %v3247 = vpack.c.b16 %v3239, %v3238
      %3256 = vmatpush.bf16.msra.mxu0 %v3247
      %3257 = vmatpush.bf16.msra.mxu0 %v3246
      %3258 = vmatpush.bf16.msra.mxu0 %v3245
      %3259 = vmatpush.bf16.msra.mxu0 %v3244
      %3260 = vmatpush.bf16.msra.mxu0 %v3243
      %3261 = vmatpush.bf16.msra.mxu0 %v3242
      %3262 = vmatpush.bf16.msra.mxu0 %v3241
      %3263 = vmatpush.bf16.msra.mxu0 %v3240
      %3264 = vmatmul.bf16.gmra.mxu0 %v3190
      %v3265 = vpop.f32.mrf.mxu0
      %v3266 = vadd.f32 0.0, %v3265
      %v3267 = vpop.f32.mrf.mxu0
      %3268 = vdwg.mxu0
      %v3269 = vadd.f32 %v3188, %v3266
      %v3270 = vld [vmem:[#allocation3 + $0x6] sm:$0x1]
      %v3271 = vpack.c.bf16 %v3270, %v3270
      %s3272 = scalar_lea.vmem %s1, 1920
      %v3273 = vld [vmem:[%s3272] sm:$0xf]
      %v3274 = vld [vmem:[%s3272 + $0x4] sm:$0xf]
      %v3275 = vld [vmem:[%s3272 + $0x8] sm:$0xf]
      %v3276 = vld [vmem:[%s3272 + $0xc] sm:$0xf]
      %v3277 = vld [vmem:[%s3272 + $0x10] sm:$0xf]
      %v3278 = vld [vmem:[%s3272 + $0x14] sm:$0xf]
      %v3279 = vld [vmem:[%s3272 + $0x18] sm:$0xf]
      %v3280 = vld [vmem:[%s3272 + $0x1c] sm:$0xf]
      %v3281 = vld [vmem:[%s3272 + $0x20] sm:$0xf]
      %v3282 = vld [vmem:[%s3272 + $0x24] sm:$0xf]
      %v3283 = vld [vmem:[%s3272 + $0x28] sm:$0xf]
      %v3284 = vld [vmem:[%s3272 + $0x2c] sm:$0xf]
      %v3285 = vld [vmem:[%s3272 + $0x30] sm:$0xf]
      %v3286 = vld [vmem:[%s3272 + $0x34] sm:$0xf]
      %v3287 = vld [vmem:[%s3272 + $0x38] sm:$0xf]
      %v3288 = vld [vmem:[%s3272 + $0x3c] sm:$0xf]
      %v3305 = vunpack.c.l.b16 %v3273
      %v3306 = vunpack.c.l.b16 %v3274
      %v3307 = vunpack.c.l.b16 %v3275
      %v3308 = vunpack.c.l.b16 %v3276
      %v3309 = vunpack.c.l.b16 %v3277
      %v3310 = vunpack.c.l.b16 %v3278
      %v3311 = vunpack.c.l.b16 %v3279
      %v3312 = vunpack.c.l.b16 %v3280
      %v3313 = vunpack.c.l.b16 %v3281
      %v3314 = vunpack.c.l.b16 %v3282
      %v3315 = vunpack.c.l.b16 %v3283
      %v3316 = vunpack.c.l.b16 %v3284
      %v3317 = vunpack.c.l.b16 %v3285
      %v3318 = vunpack.c.l.b16 %v3286
      %v3319 = vunpack.c.l.b16 %v3287
      %v3320 = vunpack.c.l.b16 %v3288
      %v3321 = vpack.c.b16 %v3306, %v3305
      %v3322 = vpack.c.b16 %v3308, %v3307
      %v3323 = vpack.c.b16 %v3310, %v3309
      %v3324 = vpack.c.b16 %v3312, %v3311
      %v3325 = vpack.c.b16 %v3314, %v3313
      %v3326 = vpack.c.b16 %v3316, %v3315
      %v3327 = vpack.c.b16 %v3318, %v3317
      %v3328 = vpack.c.b16 %v3320, %v3319
      %3337 = vmatpush.bf16.msra.mxu0 %v3328
      %3338 = vmatpush.bf16.msra.mxu0 %v3327
      %3339 = vmatpush.bf16.msra.mxu0 %v3326
      %3340 = vmatpush.bf16.msra.mxu0 %v3325
      %3341 = vmatpush.bf16.msra.mxu0 %v3324
      %3342 = vmatpush.bf16.msra.mxu0 %v3323
      %3343 = vmatpush.bf16.msra.mxu0 %v3322
      %3344 = vmatpush.bf16.msra.mxu0 %v3321
      %3345 = vmatmul.bf16.gmra.mxu0 %v3271
      %v3346 = vpop.f32.mrf.mxu0
      %v3347 = vadd.f32 0.0, %v3346
      %v3348 = vpop.f32.mrf.mxu0
      %3349 = vdwg.mxu0
      %v3350 = vadd.f32 %v3269, %v3347
      %v3351 = vld [vmem:[#allocation3 + $0x7] sm:$0x1]
      %v3352 = vpack.c.bf16 %v3351, %v3351
      %s3353 = scalar_lea.vmem %s1, 1984
      %v3354 = vld [vmem:[%s3353] sm:$0xf]
      %v3355 = vld [vmem:[%s3353 + $0x4] sm:$0xf]
      %v3356 = vld [vmem:[%s3353 + $0x8] sm:$0xf]
      %v3357 = vld [vmem:[%s3353 + $0xc] sm:$0xf]
      %v3358 = vld [vmem:[%s3353 + $0x10] sm:$0xf]
      %v3359 = vld [vmem:[%s3353 + $0x14] sm:$0xf]
      %v3360 = vld [vmem:[%s3353 + $0x18] sm:$0xf]
      %v3361 = vld [vmem:[%s3353 + $0x1c] sm:$0xf]
      %v3362 = vld [vmem:[%s3353 + $0x20] sm:$0xf]
      %v3363 = vld [vmem:[%s3353 + $0x24] sm:$0xf]
      %v3364 = vld [vmem:[%s3353 + $0x28] sm:$0xf]
      %v3365 = vld [vmem:[%s3353 + $0x2c] sm:$0xf]
      %v3366 = vld [vmem:[%s3353 + $0x30] sm:$0xf]
      %v3367 = vld [vmem:[%s3353 + $0x34] sm:$0xf]
      %v3368 = vld [vmem:[%s3353 + $0x38] sm:$0xf]
      %v3369 = vld [vmem:[%s3353 + $0x3c] sm:$0xf]
      %v3386 = vunpack.c.l.b16 %v3354
      %v3387 = vunpack.c.l.b16 %v3355
      %v3388 = vunpack.c.l.b16 %v3356
      %v3389 = vunpack.c.l.b16 %v3357
      %v3390 = vunpack.c.l.b16 %v3358
      %v3391 = vunpack.c.l.b16 %v3359
      %v3392 = vunpack.c.l.b16 %v3360
      %v3393 = vunpack.c.l.b16 %v3361
      %v3394 = vunpack.c.l.b16 %v3362
      %v3395 = vunpack.c.l.b16 %v3363
      %v3396 = vunpack.c.l.b16 %v3364
      %v3397 = vunpack.c.l.b16 %v3365
      %v3398 = vunpack.c.l.b16 %v3366
      %v3399 = vunpack.c.l.b16 %v3367
      %v3400 = vunpack.c.l.b16 %v3368
      %v3401 = vunpack.c.l.b16 %v3369
      %v3402 = vpack.c.b16 %v3387, %v3386
      %v3403 = vpack.c.b16 %v3389, %v3388
      %v3404 = vpack.c.b16 %v3391, %v3390
      %v3405 = vpack.c.b16 %v3393, %v3392
      %v3406 = vpack.c.b16 %v3395, %v3394
      %v3407 = vpack.c.b16 %v3397, %v3396
      %v3408 = vpack.c.b16 %v3399, %v3398
      %v3409 = vpack.c.b16 %v3401, %v3400
      %3418 = vmatpush.bf16.msra.mxu0 %v3409
      %3419 = vmatpush.bf16.msra.mxu0 %v3408
      %3420 = vmatpush.bf16.msra.mxu0 %v3407
      %3421 = vmatpush.bf16.msra.mxu0 %v3406
      %3422 = vmatpush.bf16.msra.mxu0 %v3405
      %3423 = vmatpush.bf16.msra.mxu0 %v3404
      %3424 = vmatpush.bf16.msra.mxu0 %v3403
      %3425 = vmatpush.bf16.msra.mxu0 %v3402
      %3426 = vmatmul.bf16.gmra.mxu0 %v3352
      %v3427 = vpop.f32.mrf.mxu0
      %v3428 = vadd.f32 0.0, %v3427
      %v3429 = vpop.f32.mrf.mxu0
      %3430 = vdwg.mxu0
      %v3431 = vadd.f32 %v3350, %v3428
      %v3432 = vld [vmem:[#allocation3 + $0x8] sm:$0x1]
      %v3433 = vpack.c.bf16 %v3432, %v3432
      %s3434 = scalar_lea.vmem %s1, 2048
      %v3435 = vld [vmem:[%s3434] sm:$0xf]
      %v3436 = vld [vmem:[%s3434 + $0x4] sm:$0xf]
      %v3437 = vld [vmem:[%s3434 + $0x8] sm:$0xf]
      %v3438 = vld [vmem:[%s3434 + $0xc] sm:$0xf]
      %v3439 = vld [vmem:[%s3434 + $0x10] sm:$0xf]
      %v3440 = vld [vmem:[%s3434 + $0x14] sm:$0xf]
      %v3441 = vld [vmem:[%s3434 + $0x18] sm:$0xf]
      %v3442 = vld [vmem:[%s3434 + $0x1c] sm:$0xf]
      %v3443 = vld [vmem:[%s3434 + $0x20] sm:$0xf]
      %v3444 = vld [vmem:[%s3434 + $0x24] sm:$0xf]
      %v3445 = vld [vmem:[%s3434 + $0x28] sm:$0xf]
      %v3446 = vld [vmem:[%s3434 + $0x2c] sm:$0xf]
      %v3447 = vld [vmem:[%s3434 + $0x30] sm:$0xf]
      %v3448 = vld [vmem:[%s3434 + $0x34] sm:$0xf]
      %v3449 = vld [vmem:[%s3434 + $0x38] sm:$0xf]
      %v3450 = vld [vmem:[%s3434 + $0x3c] sm:$0xf]
      %v3467 = vunpack.c.l.b16 %v3435
      %v3468 = vunpack.c.l.b16 %v3436
      %v3469 = vunpack.c.l.b16 %v3437
      %v3470 = vunpack.c.l.b16 %v3438
      %v3471 = vunpack.c.l.b16 %v3439
      %v3472 = vunpack.c.l.b16 %v3440
      %v3473 = vunpack.c.l.b16 %v3441
      %v3474 = vunpack.c.l.b16 %v3442
      %v3475 = vunpack.c.l.b16 %v3443
      %v3476 = vunpack.c.l.b16 %v3444
      %v3477 = vunpack.c.l.b16 %v3445
      %v3478 = vunpack.c.l.b16 %v3446
      %v3479 = vunpack.c.l.b16 %v3447
      %v3480 = vunpack.c.l.b16 %v3448
      %v3481 = vunpack.c.l.b16 %v3449
      %v3482 = vunpack.c.l.b16 %v3450
      %v3483 = vpack.c.b16 %v3468, %v3467
      %v3484 = vpack.c.b16 %v3470, %v3469
      %v3485 = vpack.c.b16 %v3472, %v3471
      %v3486 = vpack.c.b16 %v3474, %v3473
      %v3487 = vpack.c.b16 %v3476, %v3475
      %v3488 = vpack.c.b16 %v3478, %v3477
      %v3489 = vpack.c.b16 %v3480, %v3479
      %v3490 = vpack.c.b16 %v3482, %v3481
      %3499 = vmatpush.bf16.msra.mxu0 %v3490
      %3500 = vmatpush.bf16.msra.mxu0 %v3489
      %3501 = vmatpush.bf16.msra.mxu0 %v3488
      %3502 = vmatpush.bf16.msra.mxu0 %v3487
      %3503 = vmatpush.bf16.msra.mxu0 %v3486
      %3504 = vmatpush.bf16.msra.mxu0 %v3485
      %3505 = vmatpush.bf16.msra.mxu0 %v3484
      %3506 = vmatpush.bf16.msra.mxu0 %v3483
      %3507 = vmatmul.bf16.gmra.mxu0 %v3433
      %v3508 = vpop.f32.mrf.mxu0
      %v3509 = vadd.f32 0.0, %v3508
      %v3510 = vpop.f32.mrf.mxu0
      %3511 = vdwg.mxu0
      %v3512 = vadd.f32 %v3431, %v3509
      %v3513 = vld [vmem:[#allocation3 + $0x9] sm:$0x1]
      %v3514 = vpack.c.bf16 %v3513, %v3513
      %s3515 = scalar_lea.vmem %s1, 2112
      %v3516 = vld [vmem:[%s3515] sm:$0xf]
      %v3517 = vld [vmem:[%s3515 + $0x4] sm:$0xf]
      %v3518 = vld [vmem:[%s3515 + $0x8] sm:$0xf]
      %v3519 = vld [vmem:[%s3515 + $0xc] sm:$0xf]
      %v3520 = vld [vmem:[%s3515 + $0x10] sm:$0xf]
      %v3521 = vld [vmem:[%s3515 + $0x14] sm:$0xf]
      %v3522 = vld [vmem:[%s3515 + $0x18] sm:$0xf]
      %v3523 = vld [vmem:[%s3515 + $0x1c] sm:$0xf]
      %v3524 = vld [vmem:[%s3515 + $0x20] sm:$0xf]
      %v3525 = vld [vmem:[%s3515 + $0x24] sm:$0xf]
      %v3526 = vld [vmem:[%s3515 + $0x28] sm:$0xf]
      %v3527 = vld [vmem:[%s3515 + $0x2c] sm:$0xf]
      %v3528 = vld [vmem:[%s3515 + $0x30] sm:$0xf]
      %v3529 = vld [vmem:[%s3515 + $0x34] sm:$0xf]
      %v3530 = vld [vmem:[%s3515 + $0x38] sm:$0xf]
      %v3531 = vld [vmem:[%s3515 + $0x3c] sm:$0xf]
      %v3548 = vunpack.c.l.b16 %v3516
      %v3549 = vunpack.c.l.b16 %v3517
      %v3550 = vunpack.c.l.b16 %v3518
      %v3551 = vunpack.c.l.b16 %v3519
      %v3552 = vunpack.c.l.b16 %v3520
      %v3553 = vunpack.c.l.b16 %v3521
      %v3554 = vunpack.c.l.b16 %v3522
      %v3555 = vunpack.c.l.b16 %v3523
      %v3556 = vunpack.c.l.b16 %v3524
      %v3557 = vunpack.c.l.b16 %v3525
      %v3558 = vunpack.c.l.b16 %v3526
      %v3559 = vunpack.c.l.b16 %v3527
      %v3560 = vunpack.c.l.b16 %v3528
      %v3561 = vunpack.c.l.b16 %v3529
      %v3562 = vunpack.c.l.b16 %v3530
      %v3563 = vunpack.c.l.b16 %v3531
      %v3564 = vpack.c.b16 %v3549, %v3548
      %v3565 = vpack.c.b16 %v3551, %v3550
      %v3566 = vpack.c.b16 %v3553, %v3552
      %v3567 = vpack.c.b16 %v3555, %v3554
      %v3568 = vpack.c.b16 %v3557, %v3556
      %v3569 = vpack.c.b16 %v3559, %v3558
      %v3570 = vpack.c.b16 %v3561, %v3560
      %v3571 = vpack.c.b16 %v3563, %v3562
      %3580 = vmatpush.bf16.msra.mxu0 %v3571
      %3581 = vmatpush.bf16.msra.mxu0 %v3570
      %3582 = vmatpush.bf16.msra.mxu0 %v3569
      %3583 = vmatpush.bf16.msra.mxu0 %v3568
      %3584 = vmatpush.bf16.msra.mxu0 %v3567
      %3585 = vmatpush.bf16.msra.mxu0 %v3566
      %3586 = vmatpush.bf16.msra.mxu0 %v3565
      %3587 = vmatpush.bf16.msra.mxu0 %v3564
      %3588 = vmatmul.bf16.gmra.mxu0 %v3514
      %v3589 = vpop.f32.mrf.mxu0
      %v3590 = vadd.f32 0.0, %v3589
      %v3591 = vpop.f32.mrf.mxu0
      %3592 = vdwg.mxu0
      %v3593 = vadd.f32 %v3512, %v3590
      %v3594 = vld [vmem:[#allocation3 + $0xa] sm:$0x1]
      %v3595 = vpack.c.bf16 %v3594, %v3594
      %s3596 = scalar_lea.vmem %s1, 2176
      %v3597 = vld [vmem:[%s3596] sm:$0xf]
      %v3598 = vld [vmem:[%s3596 + $0x4] sm:$0xf]
      %v3599 = vld [vmem:[%s3596 + $0x8] sm:$0xf]
      %v3600 = vld [vmem:[%s3596 + $0xc] sm:$0xf]
      %v3601 = vld [vmem:[%s3596 + $0x10] sm:$0xf]
      %v3602 = vld [vmem:[%s3596 + $0x14] sm:$0xf]
      %v3603 = vld [vmem:[%s3596 + $0x18] sm:$0xf]
      %v3604 = vld [vmem:[%s3596 + $0x1c] sm:$0xf]
      %v3605 = vld [vmem:[%s3596 + $0x20] sm:$0xf]
      %v3606 = vld [vmem:[%s3596 + $0x24] sm:$0xf]
      %v3607 = vld [vmem:[%s3596 + $0x28] sm:$0xf]
      %v3608 = vld [vmem:[%s3596 + $0x2c] sm:$0xf]
      %v3609 = vld [vmem:[%s3596 + $0x30] sm:$0xf]
      %v3610 = vld [vmem:[%s3596 + $0x34] sm:$0xf]
      %v3611 = vld [vmem:[%s3596 + $0x38] sm:$0xf]
      %v3612 = vld [vmem:[%s3596 + $0x3c] sm:$0xf]
      %v3629 = vunpack.c.l.b16 %v3597
      %v3630 = vunpack.c.l.b16 %v3598
      %v3631 = vunpack.c.l.b16 %v3599
      %v3632 = vunpack.c.l.b16 %v3600
      %v3633 = vunpack.c.l.b16 %v3601
      %v3634 = vunpack.c.l.b16 %v3602
      %v3635 = vunpack.c.l.b16 %v3603
      %v3636 = vunpack.c.l.b16 %v3604
      %v3637 = vunpack.c.l.b16 %v3605
      %v3638 = vunpack.c.l.b16 %v3606
      %v3639 = vunpack.c.l.b16 %v3607
      %v3640 = vunpack.c.l.b16 %v3608
      %v3641 = vunpack.c.l.b16 %v3609
      %v3642 = vunpack.c.l.b16 %v3610
      %v3643 = vunpack.c.l.b16 %v3611
      %v3644 = vunpack.c.l.b16 %v3612
      %v3645 = vpack.c.b16 %v3630, %v3629
      %v3646 = vpack.c.b16 %v3632, %v3631
      %v3647 = vpack.c.b16 %v3634, %v3633
      %v3648 = vpack.c.b16 %v3636, %v3635
      %v3649 = vpack.c.b16 %v3638, %v3637
      %v3650 = vpack.c.b16 %v3640, %v3639
      %v3651 = vpack.c.b16 %v3642, %v3641
      %v3652 = vpack.c.b16 %v3644, %v3643
      %3661 = vmatpush.bf16.msra.mxu0 %v3652
      %3662 = vmatpush.bf16.msra.mxu0 %v3651
      %3663 = vmatpush.bf16.msra.mxu0 %v3650
      %3664 = vmatpush.bf16.msra.mxu0 %v3649
      %3665 = vmatpush.bf16.msra.mxu0 %v3648
      %3666 = vmatpush.bf16.msra.mxu0 %v3647
      %3667 = vmatpush.bf16.msra.mxu0 %v3646
      %3668 = vmatpush.bf16.msra.mxu0 %v3645
      %3669 = vmatmul.bf16.gmra.mxu0 %v3595
      %v3670 = vpop.f32.mrf.mxu0
      %v3671 = vadd.f32 0.0, %v3670
      %v3672 = vpop.f32.mrf.mxu0
      %3673 = vdwg.mxu0
      %v3674 = vadd.f32 %v3593, %v3671
      %v3675 = vld [vmem:[#allocation3 + $0xb] sm:$0x1]
      %v3676 = vpack.c.bf16 %v3675, %v3675
      %s3677 = scalar_lea.vmem %s1, 2240
      %v3678 = vld [vmem:[%s3677] sm:$0xf]
      %v3679 = vld [vmem:[%s3677 + $0x4] sm:$0xf]
      %v3680 = vld [vmem:[%s3677 + $0x8] sm:$0xf]
      %v3681 = vld [vmem:[%s3677 + $0xc] sm:$0xf]
      %v3682 = vld [vmem:[%s3677 + $0x10] sm:$0xf]
      %v3683 = vld [vmem:[%s3677 + $0x14] sm:$0xf]
      %v3684 = vld [vmem:[%s3677 + $0x18] sm:$0xf]
      %v3685 = vld [vmem:[%s3677 + $0x1c] sm:$0xf]
      %v3686 = vld [vmem:[%s3677 + $0x20] sm:$0xf]
      %v3687 = vld [vmem:[%s3677 + $0x24] sm:$0xf]
      %v3688 = vld [vmem:[%s3677 + $0x28] sm:$0xf]
      %v3689 = vld [vmem:[%s3677 + $0x2c] sm:$0xf]
      %v3690 = vld [vmem:[%s3677 + $0x30] sm:$0xf]
      %v3691 = vld [vmem:[%s3677 + $0x34] sm:$0xf]
      %v3692 = vld [vmem:[%s3677 + $0x38] sm:$0xf]
      %v3693 = vld [vmem:[%s3677 + $0x3c] sm:$0xf]
      %v3710 = vunpack.c.l.b16 %v3678
      %v3711 = vunpack.c.l.b16 %v3679
      %v3712 = vunpack.c.l.b16 %v3680
      %v3713 = vunpack.c.l.b16 %v3681
      %v3714 = vunpack.c.l.b16 %v3682
      %v3715 = vunpack.c.l.b16 %v3683
      %v3716 = vunpack.c.l.b16 %v3684
      %v3717 = vunpack.c.l.b16 %v3685
      %v3718 = vunpack.c.l.b16 %v3686
      %v3719 = vunpack.c.l.b16 %v3687
      %v3720 = vunpack.c.l.b16 %v3688
      %v3721 = vunpack.c.l.b16 %v3689
      %v3722 = vunpack.c.l.b16 %v3690
      %v3723 = vunpack.c.l.b16 %v3691
      %v3724 = vunpack.c.l.b16 %v3692
      %v3725 = vunpack.c.l.b16 %v3693
      %v3726 = vpack.c.b16 %v3711, %v3710
      %v3727 = vpack.c.b16 %v3713, %v3712
      %v3728 = vpack.c.b16 %v3715, %v3714
      %v3729 = vpack.c.b16 %v3717, %v3716
      %v3730 = vpack.c.b16 %v3719, %v3718
      %v3731 = vpack.c.b16 %v3721, %v3720
      %v3732 = vpack.c.b16 %v3723, %v3722
      %v3733 = vpack.c.b16 %v3725, %v3724
      %3742 = vmatpush.bf16.msra.mxu0 %v3733
      %3743 = vmatpush.bf16.msra.mxu0 %v3732
      %3744 = vmatpush.bf16.msra.mxu0 %v3731
      %3745 = vmatpush.bf16.msra.mxu0 %v3730
      %3746 = vmatpush.bf16.msra.mxu0 %v3729
      %3747 = vmatpush.bf16.msra.mxu0 %v3728
      %3748 = vmatpush.bf16.msra.mxu0 %v3727
      %3749 = vmatpush.bf16.msra.mxu0 %v3726
      %3750 = vmatmul.bf16.gmra.mxu0 %v3676
      %v3751 = vpop.f32.mrf.mxu0
      %v3752 = vadd.f32 0.0, %v3751
      %v3753 = vpop.f32.mrf.mxu0
      %3754 = vdwg.mxu0
      %v3755 = vadd.f32 %v3674, %v3752
      %v3756 = vld [vmem:[#allocation3 + $0xc] sm:$0x1]
      %v3757 = vpack.c.bf16 %v3756, %v3756
      %s3758 = scalar_lea.vmem %s1, 2304
      %v3759 = vld [vmem:[%s3758] sm:$0xf]
      %v3760 = vld [vmem:[%s3758 + $0x4] sm:$0xf]
      %v3761 = vld [vmem:[%s3758 + $0x8] sm:$0xf]
      %v3762 = vld [vmem:[%s3758 + $0xc] sm:$0xf]
      %v3763 = vld [vmem:[%s3758 + $0x10] sm:$0xf]
      %v3764 = vld [vmem:[%s3758 + $0x14] sm:$0xf]
      %v3765 = vld [vmem:[%s3758 + $0x18] sm:$0xf]
      %v3766 = vld [vmem:[%s3758 + $0x1c] sm:$0xf]
      %v3767 = vld [vmem:[%s3758 + $0x20] sm:$0xf]
      %v3768 = vld [vmem:[%s3758 + $0x24] sm:$0xf]
      %v3769 = vld [vmem:[%s3758 + $0x28] sm:$0xf]
      %v3770 = vld [vmem:[%s3758 + $0x2c] sm:$0xf]
      %v3771 = vld [vmem:[%s3758 + $0x30] sm:$0xf]
      %v3772 = vld [vmem:[%s3758 + $0x34] sm:$0xf]
      %v3773 = vld [vmem:[%s3758 + $0x38] sm:$0xf]
      %v3774 = vld [vmem:[%s3758 + $0x3c] sm:$0xf]
      %v3791 = vunpack.c.l.b16 %v3759
      %v3792 = vunpack.c.l.b16 %v3760
      %v3793 = vunpack.c.l.b16 %v3761
      %v3794 = vunpack.c.l.b16 %v3762
      %v3795 = vunpack.c.l.b16 %v3763
      %v3796 = vunpack.c.l.b16 %v3764
      %v3797 = vunpack.c.l.b16 %v3765
      %v3798 = vunpack.c.l.b16 %v3766
      %v3799 = vunpack.c.l.b16 %v3767
      %v3800 = vunpack.c.l.b16 %v3768
      %v3801 = vunpack.c.l.b16 %v3769
      %v3802 = vunpack.c.l.b16 %v3770
      %v3803 = vunpack.c.l.b16 %v3771
      %v3804 = vunpack.c.l.b16 %v3772
      %v3805 = vunpack.c.l.b16 %v3773
      %v3806 = vunpack.c.l.b16 %v3774
      %v3807 = vpack.c.b16 %v3792, %v3791
      %v3808 = vpack.c.b16 %v3794, %v3793
      %v3809 = vpack.c.b16 %v3796, %v3795
      %v3810 = vpack.c.b16 %v3798, %v3797
      %v3811 = vpack.c.b16 %v3800, %v3799
      %v3812 = vpack.c.b16 %v3802, %v3801
      %v3813 = vpack.c.b16 %v3804, %v3803
      %v3814 = vpack.c.b16 %v3806, %v3805
      %3823 = vmatpush.bf16.msra.mxu0 %v3814
      %3824 = vmatpush.bf16.msra.mxu0 %v3813
      %3825 = vmatpush.bf16.msra.mxu0 %v3812
      %3826 = vmatpush.bf16.msra.mxu0 %v3811
      %3827 = vmatpush.bf16.msra.mxu0 %v3810
      %3828 = vmatpush.bf16.msra.mxu0 %v3809
      %3829 = vmatpush.bf16.msra.mxu0 %v3808
      %3830 = vmatpush.bf16.msra.mxu0 %v3807
      %3831 = vmatmul.bf16.gmra.mxu0 %v3757
      %v3832 = vpop.f32.mrf.mxu0
      %v3833 = vadd.f32 0.0, %v3832
      %v3834 = vpop.f32.mrf.mxu0
      %3835 = vdwg.mxu0
      %v3836 = vadd.f32 %v3755, %v3833
      %v3837 = vld [vmem:[%s2 + $0x11] sm:$0x1]
      %v3838 = vadd.f32 %v3836, %v3837
      %v3839 = vperm.slane %v3838, 0
      %3840 = vst [vmem:[%s168] sm:$0xff] %v3839
      %p3841 = scmp.lt.s32.totalorder %s14, 1
      %s3842 = scalar_select %p3841, %s14, 1
      %s3843 = smul.addr %s3842, 8
      %s3844 = scalar_lea.vmem %s3, %s3843
      // Predicated region
      $region33: #{forward.1} parent=31 // pred_check
        %p3845 = pneg %p100
      $region34: #{forward.1} parent=31 // pred_check_branch
        %3847 = sbr.rel (%p3845) target = $region36
      $region35: #{forward.1} parent=31 // pred_region
        _
      $region36: #{forward.1} parent=31 // pred_fallthru
        _
    $region32: #{forward.1} parent=5 // pred_fallthru
      _
    %p3848 = scmp.le.s32.totalorder 2, %s9
    // Predicated region
    $region37: #{forward.1} parent=5 // pred_check
      %p3849 = pneg %p3848
    $region38: #{forward.1} parent=5 // pred_check_branch
      %3851 = sbr.rel (%p3849) target = $region40
    $region39: #{forward.1} parent=5 // pred_region
      %s3852 = ssub.s32 %s9, 2
      // Predicated region
      $region41: #{forward.1} parent=39 // pred_check
        %p3853 = pneg %p106
      $region42: #{forward.1} parent=39 // pred_check_branch
        %3855 = sbr.rel (%p3853) target = $region44
      $region43: #{forward.1} parent=39 // pred_region
        %p3856 = scmp.lt.s32.totalorder %s15, 1
        %s3857 = scalar_select %p3856, %s15, 1
        %s3858 = smul.addr %s3857, 8
        %s3859 = scalar_lea.vmem %s3, %s3858
      $region44: #{forward.1} parent=39 // pred_fallthru
        _
    $region40: #{forward.1} parent=5 // pred_fallthru
      _
  $region6: #{forward.1} parent=0 // loop_footer
    %s13 = sadd.s32 1, %s9
  $region7: #{forward.1} parent=0 // loop_footer_branch
    %8 = sbr.rel target = $region3
  $region8: #{forward.1} parent=0 // loop_exit
    _

</llo_original>
